<compile_context>
chip_gen: v7x
topology: tpu7x:2x2x1
jax: 0.10.0
libtpu: 0.0.40
codegen_flags: <defaults>
</compile_context>

<pallas_src>
import math
import functools

import jax
import jax.numpy as jnp
from jax import lax
from jax.experimental import pallas as pl
from jax.experimental.pallas import tpu as pltpu


def _layernorm(h, w, b, eps=1e-5):
    mu = jnp.mean(h, axis=-1, keepdims=True)
    var = jnp.mean((h - mu) ** 2, axis=-1, keepdims=True)
    return (h - mu) * lax.rsqrt(var + eps) * w + b


def clip_layer_kernel(x_ref,
                      ln1_w_ref, ln1_b_ref,
                      wqkv_ref, bqkv_ref,
                      wo_ref, bo_ref,
                      ln2_w_ref, ln2_b_ref,
                      w1_ref, b1_ref,
                      w2_ref, b2_ref,
                      o_ref,
                      qkv_sc, attn_sc,
                      *, n_heads):
    block_b, S, D = x_ref.shape            # S is already padded to a multiple of 8
    dh = D // n_heads
    rows = block_b * S

    # ---- LayerNorm 1 (f32) + fused QKV projection (bf16 MXU, f32 accum) ----
    # 1/sqrt(dh) is pre-folded into the q columns of wqkv / bqkv (wrapper).
    x = x_ref[...].reshape(rows, D)                      # layout no-op (S % 8 == 0)
    h = _layernorm(x, ln1_w_ref[0], ln1_b_ref[0])
    qkv = jnp.dot(h.astype(jnp.bfloat16), wqkv_ref[...],
                  preferred_element_type=jnp.float32) + bqkv_ref[0]
    # Park qkv in a bf16 VMEM scratch: the head loop reads static lane-slices
    # of the ref instead of keeping the full (rows, 3D) value live in vregs.
    qkv_sc[...] = qkv.astype(jnp.bfloat16).reshape(block_b, S, 3 * D)

    # ---- additive causal bias: 0 on/below the diagonal, -1e30 above ----
    r_idx = lax.broadcasted_iota(jnp.int32, (S, S), 0)
    c_idx = lax.broadcasted_iota(jnp.int32, (S, S), 1)
    bias = jnp.where(c_idx > r_idx, jnp.float32(-1e30), jnp.float32(0.0))

    # ---- attention: loop over heads, batched over the block's batch dim ----
    for hd in range(n_heads):
        q_off, k_off, v_off = hd * dh, D + hd * dh, 2 * D + hd * dh
        qh = qkv_sc[:, :, q_off:q_off + dh]              # (block_b, S, dh) bf16
        kh = qkv_sc[:, :, k_off:k_off + dh]
        vh = qkv_sc[:, :, v_off:v_off + dh]
        # contract dh directly: no explicit k transpose / XLU vxpose
        s = jnp.einsum('bqd,bkd->bqk', qh, kh,
                       preferred_element_type=jnp.float32) + bias[None, :, :]
        s = s - jnp.max(s, axis=-1, keepdims=True)
        p = jnp.exp(s)
        p = p * pl.reciprocal(jnp.sum(p, axis=-1, keepdims=True), approx=True)
        ctx = jnp.einsum('bqk,bkd->bqd', p.astype(jnp.bfloat16), vh,
                         preferred_element_type=jnp.float32)   # (block_b, S, dh)
        # stash this head's output; W_o is applied once at full depth below
        attn_sc[:, hd * dh:(hd + 1) * dh] = (
            ctx.reshape(rows, dh).astype(jnp.bfloat16))

    # ---- single (rows, D) @ (D, D) out-projection (K = D) + residual ----
    x2 = (jnp.dot(attn_sc[...], wo_ref[...], preferred_element_type=jnp.float32)
          + bo_ref[0] + x_ref[...].reshape(rows, D))

    # ---- LayerNorm 2 + QuickGELU MLP (bf16 MXU, f32 accum) + residual ----
    h2 = _layernorm(x2, ln2_w_ref[0], ln2_b_ref[0])
    h3 = jnp.dot(h2.astype(jnp.bfloat16), w1_ref[...],
                 preferred_element_type=jnp.float32) + b1_ref[0]
    h3 = h3 * jax.nn.sigmoid(1.702 * h3)
    h4 = jnp.dot(h3.astype(jnp.bfloat16), w2_ref[...],
                 preferred_element_type=jnp.float32) + b2_ref[0]

    o_ref[...] = (h4 + x2).reshape(block_b, S, D)


def clip_layer(x, params, n_heads, *, block_b=1):
    B, S, D = x.shape
    assert D % n_heads == 0
    (ln1_w, ln1_b, wqkv, bqkv, wo, bo, ln2_w, ln2_b, w1, b1, w2, b2) = params
    dh = D // n_heads
    scale = 1.0 / math.sqrt(dh)

    # One-time weight prep: fold 1/sqrt(dh) into the q columns, then cast all
    # MXU weight operands to bf16 (biases / LN params stay f32 — they are
    # added to f32 accumulators).
    wqkv = wqkv.astype(jnp.float32).at[:, :D].multiply(scale).astype(jnp.bfloat16)
    bqkv = bqkv.astype(jnp.float32).at[:, :D].multiply(scale)
    wo = wo.astype(jnp.bfloat16)
    w1 = w1.astype(jnp.bfloat16)
    w2 = w2.astype(jnp.bfloat16)

    # Keep the (single) parallel grid axis >= 2 so v7x's two TensorCores both
    # get work, and make block_b divide B.
    block_b = max(1, min(block_b, B // 2 if B >= 2 else 1))
    while B % block_b:
        block_b -= 1

    # Pad S to a sublane multiple so in-kernel reshapes are layout no-ops.
    # Causal masking keeps pad keys away from real queries; pad rows are
    # sliced off below.
    S_pad = ((S + 7) // 8) * 8
    x_in = x if S_pad == S else jnp.pad(x, ((0, 0), (0, S_pad - S), (0, 0)))
    rows = block_b * S_pad

    kernel = functools.partial(clip_layer_kernel, n_heads=n_heads)
    weights = (ln1_w, ln1_b, wqkv, bqkv, wo, bo, ln2_w, ln2_b, w1, b1, w2, b2)

    weight_bytes = sum(int(a.size) * a.dtype.itemsize for a in weights)
    # Rough per-step activation bound: x/out blocks (double-buffered, f32),
    # qkv + attn bf16 scratch, f32 intermediates incl. the 4D-wide FFN and
    # the per-head (block_b, S, S) scores.
    act_bytes = (rows * D * 4 * 6 + rows * 3 * D * 2 + rows * D * 2
                 + rows * 4 * D * 4 * 2 + block_b * S_pad * S_pad * 4 * 2)
    try:
        vmem_cap = pltpu.get_tpu_info().vmem_capacity_bytes
    except Exception:
        vmem_cap = 64 * 1024 * 1024          # v7x per-TensorCore (smallest gen)

    def build(weight_buffers):
        wb_factor = 2 if weight_buffers is None else weight_buffers
        compiler_kwargs = {}
        vmem_needed = wb_factor * weight_bytes + act_bytes
        if vmem_needed > 32 * 1024 * 1024:
            # Generation-aware cap: never request more than physical VMEM
            # minus headroom (v7x: 64 MiB/core; v5e/v6e: 128 MiB).
            compiler_kwargs["vmem_limit_bytes"] = int(
                min(vmem_needed * 5 // 4, vmem_cap - 8 * 1024 * 1024))
        # TODO(synk): for very large configs (D >= 1024, FFN 4K) on v7x, tile
        # the FFN weights with an inner pltpu.emit_pipeline instead of keeping
        # w1/w2 fully resident.

        def const_spec(arr):
            kw = {}
            if weight_buffers is not None:
                # Same block every grid step -> single buffer is enough.
                kw["pipeline_mode"] = pl.Buffered(weight_buffers)
            return pl.BlockSpec(arr.shape, lambda b: (0,) * arr.ndim, **kw)

        return pl.pallas_call(
            kernel,
            out_shape=jax.ShapeDtypeStruct((B, S_pad, D), jnp.float32),
            grid_spec=pltpu.PrefetchScalarGridSpec(
                num_scalar_prefetch=0,
                grid=(B // block_b,),
                in_specs=[pl.BlockSpec((block_b, S_pad, D), lambda b: (b, 0, 0))]
                         + [const_spec(a) for a in weights],
                out_specs=pl.BlockSpec((block_b, S_pad, D), lambda b: (b, 0, 0)),
                scratch_shapes=[
                    pltpu.VMEM((block_b, S_pad, 3 * D), jnp.bfloat16),   # qkv
                    pltpu.VMEM((rows, D), jnp.bfloat16),                 # attn
                ],
            ),
            compiler_params=pltpu.CompilerParams(
                dimension_semantics=("parallel",), **compiler_kwargs),
        )

    args = (x_in,) + weights
    try:
        out = build(1)(*args)        # single-buffered constant weights
    except Exception:
        out = build(None)(*args)     # fall back to default double buffering

    return out if S_pad == S else out[:, :S, :]


def clip_layer_reference(x, params, n_heads):
    """Pure-JAX f32 reference mirroring the PyTorch forward pass."""
    (ln1_w, ln1_b, wqkv, bqkv, wo, bo, ln2_w, ln2_b, w1, b1, w2, b2) = params
    B, S, D = x.shape
    dh = D // n_heads

    def ln(h, w, b):
        mu = jnp.mean(h, axis=-1, keepdims=True)
        var = jnp.mean((h - mu) ** 2, axis=-1, keepdims=True)
        return (h - mu) / jnp.sqrt(var + 1e-5) * w[0] + b[0]

    residual = x
    h = ln(x, ln1_w, ln1_b)
    qkv = h @ wqkv + bqkv[0]
    q, k, v = jnp.split(qkv, 3, axis=-1)
    q = q.reshape(B, S, n_heads, dh).transpose(0, 2, 1, 3)
    k = k.reshape(B, S, n_heads, dh).transpose(0, 2, 1, 3)
    v = v.reshape(B, S, n_heads, dh).transpose(0, 2, 1, 3)
    scores = jnp.einsum("bhqd,bhkd->bhqk", q, k)
    mask = jnp.triu(jnp.ones((S, S), dtype=bool), k=1)
    scores = jnp.where(mask, -jnp.inf, scores) / math.sqrt(dh)
    p = jax.nn.softmax(scores, axis=-1)
    attn = jnp.einsum("bhqk,bhkd->bhqd", p, v).transpose(0, 2, 1, 3).reshape(B, S, D)
    attn = attn @ wo + bo[0]
    x = attn + residual
    residual = x
    h = ln(x, ln2_w, ln2_b)
    h = h @ w1 + b1[0]
    h = h * jax.nn.sigmoid(1.702 * h)
    h = h @ w2 + b2[0]
    return h + residual


if __name__ == "__main__":
    B, S, D, H = 4, 8, 32, 4     # batch, seq, embedding_dim, n_attention_heads

    keys = jax.random.split(jax.random.PRNGKey(0), 9)

    # Deterministic synthetic parameters (weights stored pre-transposed so the
    # kernel computes x @ W; biases / LN params kept 2D (1, n) for TPU layout).
    ln1_w = jnp.ones((1, D), jnp.float32)
    ln1_b = jnp.zeros((1, D), jnp.float32)
    ln2_w = jnp.ones((1, D), jnp.float32)
    ln2_b = jnp.zeros((1, D), jnp.float32)
    wqkv = 0.02 * jax.random.normal(keys[0], (D, 3 * D), jnp.float32)
    bqkv = 0.01 * jax.random.normal(keys[1], (1, 3 * D), jnp.float32)
    wo = 0.02 * jax.random.normal(keys[2], (D, D), jnp.float32)
    bo = 0.01 * jax.random.normal(keys[3], (1, D), jnp.float32)
    w1 = 0.02 * jax.random.normal(keys[4], (D, 4 * D), jnp.float32)
    b1 = 0.01 * jax.random.normal(keys[5], (1, 4 * D), jnp.float32)
    w2 = 0.02 * jax.random.normal(keys[6], (4 * D, D), jnp.float32)
    b2 = 0.01 * jax.random.normal(keys[7], (1, D), jnp.float32)
    params = (ln1_w, ln1_b, wqkv, bqkv, wo, bo, ln2_w, ln2_b, w1, b1, w2, b2)

    x = jax.random.normal(keys[8], (B, S, D), jnp.float32)
    ref = clip_layer_reference(x, params, H)

    out1 = jax.block_until_ready(clip_layer(x, params, H, block_b=1))  # grid = 4
    out2 = jax.block_until_ready(clip_layer(x, params, H, block_b=2))  # grid = 2
    assert out1.shape == (B, S, D)
    # bf16 matmul operands (f32 accumulation) -> bf16-level tolerance.
    assert jnp.allclose(out1, ref, atol=1e-2, rtol=1e-2), "block_b=1 mismatch"
    assert jnp.allclose(out2, ref, atol=1e-2, rtol=1e-2), "block_b=2 mismatch"

    # Non-multiple-of-8 sequence exercises the wrapper-side pad/slice path.
    S_odd = 7
    x_odd = x[:, :S_odd, :]
    ref_odd = clip_layer_reference(x_odd, params, H)
    out3 = jax.block_until_ready(clip_layer(x_odd, params, H, block_b=1))
    assert out3.shape == (B, S_odd, D)
    assert jnp.allclose(out3, ref_odd, atol=1e-2, rtol=1e-2), "padded-S mismatch"

    print("KERNEL_OK")
</pallas_src>

<mosaic_0001>
module attributes {stable_mosaic.version = 11 : i64} {
  func.func @clip_layer_kernel(%arg0: i32, %arg1: memref<1x8x32xf32, #tpu.memory_space<vmem>>, %arg2: memref<1x32xf32, #tpu.memory_space<vmem>>, %arg3: memref<1x32xf32, #tpu.memory_space<vmem>>, %arg4: memref<32x96xbf16, #tpu.memory_space<vmem>>, %arg5: memref<1x96xf32, #tpu.memory_space<vmem>>, %arg6: memref<32x32xbf16, #tpu.memory_space<vmem>>, %arg7: memref<1x32xf32, #tpu.memory_space<vmem>>, %arg8: memref<1x32xf32, #tpu.memory_space<vmem>>, %arg9: memref<1x32xf32, #tpu.memory_space<vmem>>, %arg10: memref<32x128xbf16, #tpu.memory_space<vmem>>, %arg11: memref<1x128xf32, #tpu.memory_space<vmem>>, %arg12: memref<128x32xbf16, #tpu.memory_space<vmem>>, %arg13: memref<1x32xf32, #tpu.memory_space<vmem>>, %arg14: memref<1x8x32xf32, #tpu.memory_space<vmem>>, %arg15: memref<1x8x96xbf16, #tpu.memory_space<vmem>>, %arg16: memref<8x32xbf16, #tpu.memory_space<vmem>>) attributes {dimension_semantics = [#tpu.dimension_semantics<parallel>], iteration_bounds = array<i64: 4>, scalar_prefetch = 0 : i64, scratch_operands = 2 : i64, tpu.core_type = #tpu.core_type<tc>, window_params = [{transform_indices = @transform_0, window_bounds = array<i64: 1, 8, 32>}, {pipeline_mode = #tpu.pipeline_mode<synchronous>, transform_indices = @transform_1, window_bounds = array<i64: 1, 32>}, {pipeline_mode = #tpu.pipeline_mode<synchronous>, transform_indices = @transform_2, window_bounds = array<i64: 1, 32>}, {pipeline_mode = #tpu.pipeline_mode<synchronous>, transform_indices = @transform_3, window_bounds = array<i64: 32, 96>}, {pipeline_mode = #tpu.pipeline_mode<synchronous>, transform_indices = @transform_4, window_bounds = array<i64: 1, 96>}, {pipeline_mode = #tpu.pipeline_mode<synchronous>, transform_indices = @transform_5, window_bounds = array<i64: 32, 32>}, {pipeline_mode = #tpu.pipeline_mode<synchronous>, transform_indices = @transform_6, window_bounds = array<i64: 1, 32>}, {pipeline_mode = #tpu.pipeline_mode<synchronous>, transform_indices = @transform_7, window_bounds = array<i64: 1, 32>}, {pipeline_mode = #tpu.pipeline_mode<synchronous>, transform_indices = @transform_8, window_bounds = array<i64: 1, 32>}, {pipeline_mode = #tpu.pipeline_mode<synchronous>, transform_indices = @transform_9, window_bounds = array<i64: 32, 128>}, {pipeline_mode = #tpu.pipeline_mode<synchronous>, transform_indices = @transform_10, window_bounds = array<i64: 1, 128>}, {pipeline_mode = #tpu.pipeline_mode<synchronous>, transform_indices = @transform_11, window_bounds = array<i64: 128, 32>}, {pipeline_mode = #tpu.pipeline_mode<synchronous>, transform_indices = @transform_12, window_bounds = array<i64: 1, 32>}, {transform_indices = @transform_13, window_bounds = array<i64: 1, 8, 32>}]} {
    %c0 = arith.constant 0 : index
    %c0_0 = arith.constant 0 : index
    %c0_1 = arith.constant 0 : index
    %0 = vector.load %arg1[%c0, %c0_0, %c0_1] : memref<1x8x32xf32, #tpu.memory_space<vmem>>, vector<1x8x32xf32>
    %1 = vector.shape_cast %0 : vector<1x8x32xf32> to vector<8x32xf32>
    %c0_2 = arith.constant 0 : index
    %c0_3 = arith.constant 0 : index
    %2 = vector.load %arg2[%c0_2, %c0_3] : memref<1x32xf32, #tpu.memory_space<vmem>>, vector<1x32xf32>
    %3 = vector.shape_cast %2 : vector<1x32xf32> to vector<32xf32>
    %c0_4 = arith.constant 0 : index
    %c0_5 = arith.constant 0 : index
    %4 = vector.load %arg3[%c0_4, %c0_5] : memref<1x32xf32, #tpu.memory_space<vmem>>, vector<1x32xf32>
    %5 = vector.shape_cast %4 : vector<1x32xf32> to vector<32xf32>
    %cst = arith.constant dense<0.000000e+00> : vector<8xf32>
    %6 = vector.multi_reduction <add>, %1, %cst [1] : vector<8x32xf32> to vector<8xf32>
    %7 = vector.shape_cast %6 : vector<8xf32> to vector<8x1xf32>
    %cst_6 = arith.constant 3.200000e+01 : f32
    %8 = vector.broadcast %cst_6 : f32 to vector<8x1xf32>
    %9 = arith.divf %7, %8 : vector<8x1xf32>
    %10 = vector.broadcast %9 : vector<8x1xf32> to vector<8x32xf32>
    %11 = arith.subf %1, %10 : vector<8x32xf32>
    %12 = arith.mulf %11, %11 : vector<8x32xf32>
    %cst_7 = arith.constant dense<0.000000e+00> : vector<8xf32>
    %13 = vector.multi_reduction <add>, %12, %cst_7 [1] : vector<8x32xf32> to vector<8xf32>
    %14 = vector.shape_cast %13 : vector<8xf32> to vector<8x1xf32>
    %cst_8 = arith.constant 3.200000e+01 : f32
    %15 = vector.broadcast %cst_8 : f32 to vector<8x1xf32>
    %16 = arith.divf %14, %15 : vector<8x1xf32>
    %17 = vector.broadcast %9 : vector<8x1xf32> to vector<8x32xf32>
    %18 = arith.subf %1, %17 : vector<8x32xf32>
    %cst_9 = arith.constant 9.99999974E-6 : f32
    %19 = vector.broadcast %cst_9 : f32 to vector<8x1xf32>
    %20 = arith.addf %16, %19 : vector<8x1xf32>
    %21 = math.rsqrt %20 : vector<8x1xf32>
    %22 = vector.broadcast %21 : vector<8x1xf32> to vector<8x32xf32>
    %23 = arith.mulf %18, %22 : vector<8x32xf32>
    %24 = vector.shape_cast %3 : vector<32xf32> to vector<1x32xf32>
    %25 = vector.broadcast %24 : vector<1x32xf32> to vector<8x32xf32>
    %26 = arith.mulf %23, %25 : vector<8x32xf32>
    %27 = vector.shape_cast %5 : vector<32xf32> to vector<1x32xf32>
    %28 = vector.broadcast %27 : vector<1x32xf32> to vector<8x32xf32>
    %29 = arith.addf %26, %28 : vector<8x32xf32>
    %30 = arith.truncf %29 : vector<8x32xf32> to vector<8x32xbf16>
    %c0_10 = arith.constant 0 : index
    %c0_11 = arith.constant 0 : index
    %31 = vector.load %arg4[%c0_10, %c0_11] : memref<32x96xbf16, #tpu.memory_space<vmem>>, vector<32x96xbf16>
    %cst_12 = arith.constant dense<0.000000e+00> : vector<8x96xf32>
    %32 = tpu.matmul %30, %31, %cst_12 {dimension_numbers = #tpu.dot_dimension_numbers<[1], [0], [0], [1], [0, 0, 1, 1], [], []>} : vector<8x32xbf16>, vector<32x96xbf16>, vector<8x96xf32> -> vector<8x96xf32>
    %c0_13 = arith.constant 0 : index
    %c0_14 = arith.constant 0 : index
    %33 = vector.load %arg5[%c0_13, %c0_14] : memref<1x96xf32, #tpu.memory_space<vmem>>, vector<1x96xf32>
    %34 = vector.shape_cast %33 : vector<1x96xf32> to vector<96xf32>
    %35 = vector.shape_cast %34 : vector<96xf32> to vector<1x96xf32>
    %36 = vector.broadcast %35 : vector<1x96xf32> to vector<8x96xf32>
    %37 = arith.addf %32, %36 : vector<8x96xf32>
    %38 = arith.truncf %37 : vector<8x96xf32> to vector<8x96xbf16>
    %39 = vector.shape_cast %38 : vector<8x96xbf16> to vector<1x8x96xbf16>
    %c0_15 = arith.constant 0 : index
    %c0_16 = arith.constant 0 : index
    %c0_17 = arith.constant 0 : index
    %40 = vector.load %arg15[%c0_15, %c0_16, %c0_17] : memref<1x8x96xbf16, #tpu.memory_space<vmem>>, vector<1x8x96xbf16>
    tpu.vector_store %arg15[%c0_15, %c0_16, %c0_17], %39 {strides = array<i32>} : memref<1x8x96xbf16, #tpu.memory_space<vmem>>, vector<1x8x96xbf16>,
    %41 = tpu.iota {dimensions = array<i32: 0>} : vector<8x8xi32>
    %42 = tpu.iota {dimensions = array<i32: 1>} : vector<8x8xi32>
    %43 = arith.cmpi sgt, %42, %41 : vector<8x8xi32>
    %cst_18 = arith.constant -1.000000e+30 : f32
    %cst_19 = arith.constant 0.000000e+00 : f32
    %44 = vector.broadcast %cst_18 : f32 to vector<8x8xf32>
    %45 = vector.broadcast %cst_19 : f32 to vector<8x8xf32>
    %46 = arith.select %43, %44, %45 : vector<8x8xi1>, vector<8x8xf32>
    %c0_20 = arith.constant 0 : index
    %c0_21 = arith.constant 0 : index
    %c0_22 = arith.constant 0 : index
    %47 = vector.load %arg15[%c0_20, %c0_21, %c0_22] : memref<1x8x96xbf16, #tpu.memory_space<vmem>>, vector<1x8x8xbf16>
    %c0_23 = arith.constant 0 : index
    %c0_24 = arith.constant 0 : index
    %c32 = arith.constant 32 : index
    %48 = vector.load %arg15[%c0_23, %c0_24, %c32] : memref<1x8x96xbf16, #tpu.memory_space<vmem>>, vector<1x8x8xbf16>
    %c0_25 = arith.constant 0 : index
    %c0_26 = arith.constant 0 : index
    %c64 = arith.constant 64 : index
    %49 = vector.load %arg15[%c0_25, %c0_26, %c64] : memref<1x8x96xbf16, #tpu.memory_space<vmem>>, vector<1x8x8xbf16>
    "tpu.trace_start"() <{level = 10 : i32, message = "bqd,bkd->bqk"}> : () -> ()
    %cst_27 = arith.constant dense<0.000000e+00> : vector<1x8x8xf32>
    %50 = tpu.matmul %47, %48, %cst_27 {dimension_numbers = #tpu.dot_dimension_numbers<[2], [2], [1], [1], [0, 0, 0, 1, 1, 1], [0], [0]>} : vector<1x8x8xbf16>, vector<1x8x8xbf16>, vector<1x8x8xf32> -> vector<1x8x8xf32>
    "tpu.trace_stop"() : () -> ()
    %51 = vector.shape_cast %46 : vector<8x8xf32> to vector<1x8x8xf32>
    %52 = arith.addf %50, %51 : vector<1x8x8xf32>
    %cst_28 = arith.constant dense<0xFF800000> : vector<1x8xf32>
    %53 = vector.multi_reduction <maximumf>, %52, %cst_28 [2] : vector<1x8x8xf32> to vector<1x8xf32>
    %54 = vector.shape_cast %53 : vector<1x8xf32> to vector<1x8x1xf32>
    %55 = vector.broadcast %54 : vector<1x8x1xf32> to vector<1x8x8xf32>
    %56 = arith.subf %52, %55 : vector<1x8x8xf32>
    %57 = math.exp %56 : vector<1x8x8xf32>
    %cst_29 = arith.constant dense<0.000000e+00> : vector<1x8xf32>
    %58 = vector.multi_reduction <add>, %57, %cst_29 [2] : vector<1x8x8xf32> to vector<1x8xf32>
    %59 = vector.shape_cast %58 : vector<1x8xf32> to vector<1x8x1xf32>
    %60 = tpu.reciprocal %59 {approx = true} : vector<1x8x1xf32> -> vector<1x8x1xf32>
    %61 = vector.broadcast %60 : vector<1x8x1xf32> to vector<1x8x8xf32>
    %62 = arith.mulf %57, %61 : vector<1x8x8xf32>
    %63 = arith.truncf %62 : vector<1x8x8xf32> to vector<1x8x8xbf16>
    "tpu.trace_start"() <{level = 10 : i32, message = "bqk,bkd->bqd"}> : () -> ()
    %cst_30 = arith.constant dense<0.000000e+00> : vector<1x8x8xf32>
    %64 = tpu.matmul %63, %49, %cst_30 {dimension_numbers = #tpu.dot_dimension_numbers<[2], [1], [1], [2], [0, 0, 0, 1, 1, 2], [0], [0]>} : vector<1x8x8xbf16>, vector<1x8x8xbf16>, vector<1x8x8xf32> -> vector<1x8x8xf32>
    "tpu.trace_stop"() : () -> ()
    %65 = vector.shape_cast %64 : vector<1x8x8xf32> to vector<8x8xf32>
    %66 = arith.truncf %65 : vector<8x8xf32> to vector<8x8xbf16>
    %c0_31 = arith.constant 0 : index
    %c0_32 = arith.constant 0 : index
    %67 = vector.load %arg16[%c0_31, %c0_32] : memref<8x32xbf16, #tpu.memory_space<vmem>>, vector<8x8xbf16>
    tpu.vector_store %arg16[%c0_31, %c0_32], %66 {strides = array<i32>} : memref<8x32xbf16, #tpu.memory_space<vmem>>, vector<8x8xbf16>,
    %c0_33 = arith.constant 0 : index
    %c0_34 = arith.constant 0 : index
    %c8 = arith.constant 8 : index
    %68 = vector.load %arg15[%c0_33, %c0_34, %c8] : memref<1x8x96xbf16, #tpu.memory_space<vmem>>, vector<1x8x8xbf16>
    %c0_35 = arith.constant 0 : index
    %c0_36 = arith.constant 0 : index
    %c40 = arith.constant 40 : index
    %69 = vector.load %arg15[%c0_35, %c0_36, %c40] : memref<1x8x96xbf16, #tpu.memory_space<vmem>>, vector<1x8x8xbf16>
    %c0_37 = arith.constant 0 : index
    %c0_38 = arith.constant 0 : index
    %c72 = arith.constant 72 : index
    %70 = vector.load %arg15[%c0_37, %c0_38, %c72] : memref<1x8x96xbf16, #tpu.memory_space<vmem>>, vector<1x8x8xbf16>
    "tpu.trace_start"() <{level = 10 : i32, message = "bqd,bkd->bqk"}> : () -> ()
    %cst_39 = arith.constant dense<0.000000e+00> : vector<1x8x8xf32>
    %71 = tpu.matmul %68, %69, %cst_39 {dimension_numbers = #tpu.dot_dimension_numbers<[2], [2], [1], [1], [0, 0, 0, 1, 1, 1], [0], [0]>} : vector<1x8x8xbf16>, vector<1x8x8xbf16>, vector<1x8x8xf32> -> vector<1x8x8xf32>
    "tpu.trace_stop"() : () -> ()
    %72 = vector.shape_cast %46 : vector<8x8xf32> to vector<1x8x8xf32>
    %73 = arith.addf %71, %72 : vector<1x8x8xf32>
    %cst_40 = arith.constant dense<0xFF800000> : vector<1x8xf32>
    %74 = vector.multi_reduction <maximumf>, %73, %cst_40 [2] : vector<1x8x8xf32> to vector<1x8xf32>
    %75 = vector.shape_cast %74 : vector<1x8xf32> to vector<1x8x1xf32>
    %76 = vector.broadcast %75 : vector<1x8x1xf32> to vector<1x8x8xf32>
    %77 = arith.subf %73, %76 : vector<1x8x8xf32>
    %78 = math.exp %77 : vector<1x8x8xf32>
    %cst_41 = arith.constant dense<0.000000e+00> : vector<1x8xf32>
    %79 = vector.multi_reduction <add>, %78, %cst_41 [2] : vector<1x8x8xf32> to vector<1x8xf32>
    %80 = vector.shape_cast %79 : vector<1x8xf32> to vector<1x8x1xf32>
    %81 = tpu.reciprocal %80 {approx = true} : vector<1x8x1xf32> -> vector<1x8x1xf32>
    %82 = vector.broadcast %81 : vector<1x8x1xf32> to vector<1x8x8xf32>
    %83 = arith.mulf %78, %82 : vector<1x8x8xf32>
    %84 = arith.truncf %83 : vector<1x8x8xf32> to vector<1x8x8xbf16>
    "tpu.trace_start"() <{level = 10 : i32, message = "bqk,bkd->bqd"}> : () -> ()
    %cst_42 = arith.constant dense<0.000000e+00> : vector<1x8x8xf32>
    %85 = tpu.matmul %84, %70, %cst_42 {dimension_numbers = #tpu.dot_dimension_numbers<[2], [1], [1], [2], [0, 0, 0, 1, 1, 2], [0], [0]>} : vector<1x8x8xbf16>, vector<1x8x8xbf16>, vector<1x8x8xf32> -> vector<1x8x8xf32>
    "tpu.trace_stop"() : () -> ()
    %86 = vector.shape_cast %85 : vector<1x8x8xf32> to vector<8x8xf32>
    %87 = arith.truncf %86 : vector<8x8xf32> to vector<8x8xbf16>
    %c0_43 = arith.constant 0 : index
    %c8_44 = arith.constant 8 : index
    %88 = vector.load %arg16[%c0_43, %c8_44] : memref<8x32xbf16, #tpu.memory_space<vmem>>, vector<8x8xbf16>
    tpu.vector_store %arg16[%c0_43, %c8_44], %87 {strides = array<i32>} : memref<8x32xbf16, #tpu.memory_space<vmem>>, vector<8x8xbf16>,
    %c0_45 = arith.constant 0 : index
    %c0_46 = arith.constant 0 : index
    %c16 = arith.constant 16 : index
    %89 = vector.load %arg15[%c0_45, %c0_46, %c16] : memref<1x8x96xbf16, #tpu.memory_space<vmem>>, vector<1x8x8xbf16>
    %c0_47 = arith.constant 0 : index
    %c0_48 = arith.constant 0 : index
    %c48 = arith.constant 48 : index
    %90 = vector.load %arg15[%c0_47, %c0_48, %c48] : memref<1x8x96xbf16, #tpu.memory_space<vmem>>, vector<1x8x8xbf16>
    %c0_49 = arith.constant 0 : index
    %c0_50 = arith.constant 0 : index
    %c80 = arith.constant 80 : index
    %91 = vector.load %arg15[%c0_49, %c0_50, %c80] : memref<1x8x96xbf16, #tpu.memory_space<vmem>>, vector<1x8x8xbf16>
    "tpu.trace_start"() <{level = 10 : i32, message = "bqd,bkd->bqk"}> : () -> ()
    %cst_51 = arith.constant dense<0.000000e+00> : vector<1x8x8xf32>
    %92 = tpu.matmul %89, %90, %cst_51 {dimension_numbers = #tpu.dot_dimension_numbers<[2], [2], [1], [1], [0, 0, 0, 1, 1, 1], [0], [0]>} : vector<1x8x8xbf16>, vector<1x8x8xbf16>, vector<1x8x8xf32> -> vector<1x8x8xf32>
    "tpu.trace_stop"() : () -> ()
    %93 = vector.shape_cast %46 : vector<8x8xf32> to vector<1x8x8xf32>
    %94 = arith.addf %92, %93 : vector<1x8x8xf32>
    %cst_52 = arith.constant dense<0xFF800000> : vector<1x8xf32>
    %95 = vector.multi_reduction <maximumf>, %94, %cst_52 [2] : vector<1x8x8xf32> to vector<1x8xf32>
    %96 = vector.shape_cast %95 : vector<1x8xf32> to vector<1x8x1xf32>
    %97 = vector.broadcast %96 : vector<1x8x1xf32> to vector<1x8x8xf32>
    %98 = arith.subf %94, %97 : vector<1x8x8xf32>
    %99 = math.exp %98 : vector<1x8x8xf32>
    %cst_53 = arith.constant dense<0.000000e+00> : vector<1x8xf32>
    %100 = vector.multi_reduction <add>, %99, %cst_53 [2] : vector<1x8x8xf32> to vector<1x8xf32>
    %101 = vector.shape_cast %100 : vector<1x8xf32> to vector<1x8x1xf32>
    %102 = tpu.reciprocal %101 {approx = true} : vector<1x8x1xf32> -> vector<1x8x1xf32>
    %103 = vector.broadcast %102 : vector<1x8x1xf32> to vector<1x8x8xf32>
    %104 = arith.mulf %99, %103 : vector<1x8x8xf32>
    %105 = arith.truncf %104 : vector<1x8x8xf32> to vector<1x8x8xbf16>
    "tpu.trace_start"() <{level = 10 : i32, message = "bqk,bkd->bqd"}> : () -> ()
    %cst_54 = arith.constant dense<0.000000e+00> : vector<1x8x8xf32>
    %106 = tpu.matmul %105, %91, %cst_54 {dimension_numbers = #tpu.dot_dimension_numbers<[2], [1], [1], [2], [0, 0, 0, 1, 1, 2], [0], [0]>} : vector<1x8x8xbf16>, vector<1x8x8xbf16>, vector<1x8x8xf32> -> vector<1x8x8xf32>
    "tpu.trace_stop"() : () -> ()
    %107 = vector.shape_cast %106 : vector<1x8x8xf32> to vector<8x8xf32>
    %108 = arith.truncf %107 : vector<8x8xf32> to vector<8x8xbf16>
    %c0_55 = arith.constant 0 : index
    %c16_56 = arith.constant 16 : index
    %109 = vector.load %arg16[%c0_55, %c16_56] : memref<8x32xbf16, #tpu.memory_space<vmem>>, vector<8x8xbf16>
    tpu.vector_store %arg16[%c0_55, %c16_56], %108 {strides = array<i32>} : memref<8x32xbf16, #tpu.memory_space<vmem>>, vector<8x8xbf16>,
    %c0_57 = arith.constant 0 : index
    %c0_58 = arith.constant 0 : index
    %c24 = arith.constant 24 : index
    %110 = vector.load %arg15[%c0_57, %c0_58, %c24] : memref<1x8x96xbf16, #tpu.memory_space<vmem>>, vector<1x8x8xbf16>
    %c0_59 = arith.constant 0 : index
    %c0_60 = arith.constant 0 : index
    %c56 = arith.constant 56 : index
    %111 = vector.load %arg15[%c0_59, %c0_60, %c56] : memref<1x8x96xbf16, #tpu.memory_space<vmem>>, vector<1x8x8xbf16>
    %c0_61 = arith.constant 0 : index
    %c0_62 = arith.constant 0 : index
    %c88 = arith.constant 88 : index
    %112 = vector.load %arg15[%c0_61, %c0_62, %c88] : memref<1x8x96xbf16, #tpu.memory_space<vmem>>, vector<1x8x8xbf16>
    "tpu.trace_start"() <{level = 10 : i32, message = "bqd,bkd->bqk"}> : () -> ()
    %cst_63 = arith.constant dense<0.000000e+00> : vector<1x8x8xf32>
    %113 = tpu.matmul %110, %111, %cst_63 {dimension_numbers = #tpu.dot_dimension_numbers<[2], [2], [1], [1], [0, 0, 0, 1, 1, 1], [0], [0]>} : vector<1x8x8xbf16>, vector<1x8x8xbf16>, vector<1x8x8xf32> -> vector<1x8x8xf32>
    "tpu.trace_stop"() : () -> ()
    %114 = vector.shape_cast %46 : vector<8x8xf32> to vector<1x8x8xf32>
    %115 = arith.addf %113, %114 : vector<1x8x8xf32>
    %cst_64 = arith.constant dense<0xFF800000> : vector<1x8xf32>
    %116 = vector.multi_reduction <maximumf>, %115, %cst_64 [2] : vector<1x8x8xf32> to vector<1x8xf32>
    %117 = vector.shape_cast %116 : vector<1x8xf32> to vector<1x8x1xf32>
    %118 = vector.broadcast %117 : vector<1x8x1xf32> to vector<1x8x8xf32>
    %119 = arith.subf %115, %118 : vector<1x8x8xf32>
    %120 = math.exp %119 : vector<1x8x8xf32>
    %cst_65 = arith.constant dense<0.000000e+00> : vector<1x8xf32>
    %121 = vector.multi_reduction <add>, %120, %cst_65 [2] : vector<1x8x8xf32> to vector<1x8xf32>
    %122 = vector.shape_cast %121 : vector<1x8xf32> to vector<1x8x1xf32>
    %123 = tpu.reciprocal %122 {approx = true} : vector<1x8x1xf32> -> vector<1x8x1xf32>
    %124 = vector.broadcast %123 : vector<1x8x1xf32> to vector<1x8x8xf32>
    %125 = arith.mulf %120, %124 : vector<1x8x8xf32>
    %126 = arith.truncf %125 : vector<1x8x8xf32> to vector<1x8x8xbf16>
    "tpu.trace_start"() <{level = 10 : i32, message = "bqk,bkd->bqd"}> : () -> ()
    %cst_66 = arith.constant dense<0.000000e+00> : vector<1x8x8xf32>
    %127 = tpu.matmul %126, %112, %cst_66 {dimension_numbers = #tpu.dot_dimension_numbers<[2], [1], [1], [2], [0, 0, 0, 1, 1, 2], [0], [0]>} : vector<1x8x8xbf16>, vector<1x8x8xbf16>, vector<1x8x8xf32> -> vector<1x8x8xf32>
    "tpu.trace_stop"() : () -> ()
    %128 = vector.shape_cast %127 : vector<1x8x8xf32> to vector<8x8xf32>
    %129 = arith.truncf %128 : vector<8x8xf32> to vector<8x8xbf16>
    %c0_67 = arith.constant 0 : index
    %c24_68 = arith.constant 24 : index
    %130 = vector.load %arg16[%c0_67, %c24_68] : memref<8x32xbf16, #tpu.memory_space<vmem>>, vector<8x8xbf16>
    tpu.vector_store %arg16[%c0_67, %c24_68], %129 {strides = array<i32>} : memref<8x32xbf16, #tpu.memory_space<vmem>>, vector<8x8xbf16>,
    %c0_69 = arith.constant 0 : index
    %c0_70 = arith.constant 0 : index
    %131 = vector.load %arg16[%c0_69, %c0_70] : memref<8x32xbf16, #tpu.memory_space<vmem>>, vector<8x32xbf16>
    %c0_71 = arith.constant 0 : index
    %c0_72 = arith.constant 0 : index
    %132 = vector.load %arg6[%c0_71, %c0_72] : memref<32x32xbf16, #tpu.memory_space<vmem>>, vector<32x32xbf16>
    %cst_73 = arith.constant dense<0.000000e+00> : vector<8x32xf32>
    %133 = tpu.matmul %131, %132, %cst_73 {dimension_numbers = #tpu.dot_dimension_numbers<[1], [0], [0], [1], [0, 0, 1, 1], [], []>} : vector<8x32xbf16>, vector<32x32xbf16>, vector<8x32xf32> -> vector<8x32xf32>
    %c0_74 = arith.constant 0 : index
    %c0_75 = arith.constant 0 : index
    %134 = vector.load %arg7[%c0_74, %c0_75] : memref<1x32xf32, #tpu.memory_space<vmem>>, vector<1x32xf32>
    %135 = vector.shape_cast %134 : vector<1x32xf32> to vector<32xf32>
    %136 = vector.shape_cast %135 : vector<32xf32> to vector<1x32xf32>
    %137 = vector.broadcast %136 : vector<1x32xf32> to vector<8x32xf32>
    %138 = arith.addf %133, %137 : vector<8x32xf32>
    %c0_76 = arith.constant 0 : index
    %c0_77 = arith.constant 0 : index
    %c0_78 = arith.constant 0 : index
    %139 = vector.load %arg1[%c0_76, %c0_77, %c0_78] : memref<1x8x32xf32, #tpu.memory_space<vmem>>, vector<1x8x32xf32>
    %140 = vector.shape_cast %139 : vector<1x8x32xf32> to vector<8x32xf32>
    %141 = arith.addf %138, %140 : vector<8x32xf32>
    %c0_79 = arith.constant 0 : index
    %c0_80 = arith.constant 0 : index
    %142 = vector.load %arg8[%c0_79, %c0_80] : memref<1x32xf32, #tpu.memory_space<vmem>>, vector<1x32xf32>
    %143 = vector.shape_cast %142 : vector<1x32xf32> to vector<32xf32>
    %c0_81 = arith.constant 0 : index
    %c0_82 = arith.constant 0 : index
    %144 = vector.load %arg9[%c0_81, %c0_82] : memref<1x32xf32, #tpu.memory_space<vmem>>, vector<1x32xf32>
    %145 = vector.shape_cast %144 : vector<1x32xf32> to vector<32xf32>
    %cst_83 = arith.constant dense<0.000000e+00> : vector<8xf32>
    %146 = vector.multi_reduction <add>, %141, %cst_83 [1] : vector<8x32xf32> to vector<8xf32>
    %147 = vector.shape_cast %146 : vector<8xf32> to vector<8x1xf32>
    %cst_84 = arith.constant 3.200000e+01 : f32
    %148 = vector.broadcast %cst_84 : f32 to vector<8x1xf32>
    %149 = arith.divf %147, %148 : vector<8x1xf32>
    %150 = vector.broadcast %149 : vector<8x1xf32> to vector<8x32xf32>
    %151 = arith.subf %141, %150 : vector<8x32xf32>
    %152 = arith.mulf %151, %151 : vector<8x32xf32>
    %cst_85 = arith.constant dense<0.000000e+00> : vector<8xf32>
    %153 = vector.multi_reduction <add>, %152, %cst_85 [1] : vector<8x32xf32> to vector<8xf32>
    %154 = vector.shape_cast %153 : vector<8xf32> to vector<8x1xf32>
    %cst_86 = arith.constant 3.200000e+01 : f32
    %155 = vector.broadcast %cst_86 : f32 to vector<8x1xf32>
    %156 = arith.divf %154, %155 : vector<8x1xf32>
    %157 = vector.broadcast %149 : vector<8x1xf32> to vector<8x32xf32>
    %158 = arith.subf %141, %157 : vector<8x32xf32>
    %cst_87 = arith.constant 9.99999974E-6 : f32
    %159 = vector.broadcast %cst_87 : f32 to vector<8x1xf32>
    %160 = arith.addf %156, %159 : vector<8x1xf32>
    %161 = math.rsqrt %160 : vector<8x1xf32>
    %162 = vector.broadcast %161 : vector<8x1xf32> to vector<8x32xf32>
    %163 = arith.mulf %158, %162 : vector<8x32xf32>
    %164 = vector.shape_cast %143 : vector<32xf32> to vector<1x32xf32>
    %165 = vector.broadcast %164 : vector<1x32xf32> to vector<8x32xf32>
    %166 = arith.mulf %163, %165 : vector<8x32xf32>
    %167 = vector.shape_cast %145 : vector<32xf32> to vector<1x32xf32>
    %168 = vector.broadcast %167 : vector<1x32xf32> to vector<8x32xf32>
    %169 = arith.addf %166, %168 : vector<8x32xf32>
    %170 = arith.truncf %169 : vector<8x32xf32> to vector<8x32xbf16>
    %c0_88 = arith.constant 0 : index
    %c0_89 = arith.constant 0 : index
    %171 = vector.load %arg10[%c0_88, %c0_89] : memref<32x128xbf16, #tpu.memory_space<vmem>>, vector<32x128xbf16>
    %cst_90 = arith.constant dense<0.000000e+00> : vector<8x128xf32>
    %172 = tpu.matmul %170, %171, %cst_90 {dimension_numbers = #tpu.dot_dimension_numbers<[1], [0], [0], [1], [0, 0, 1, 1], [], []>} : vector<8x32xbf16>, vector<32x128xbf16>, vector<8x128xf32> -> vector<8x128xf32>
    %c0_91 = arith.constant 0 : index
    %c0_92 = arith.constant 0 : index
    %173 = vector.load %arg11[%c0_91, %c0_92] : memref<1x128xf32, #tpu.memory_space<vmem>>, vector<1x128xf32>
    %174 = vector.shape_cast %173 : vector<1x128xf32> to vector<128xf32>
    %175 = vector.shape_cast %174 : vector<128xf32> to vector<1x128xf32>
    %176 = vector.broadcast %175 : vector<1x128xf32> to vector<8x128xf32>
    %177 = arith.addf %172, %176 : vector<8x128xf32>
    %cst_93 = arith.constant 1.702000e+00 : f32
    %178 = vector.broadcast %cst_93 : f32 to vector<8x128xf32>
    %179 = arith.mulf %178, %177 : vector<8x128xf32>
    %180 = arith.negf %179 : vector<8x128xf32>
    %181 = math.exp %180 : vector<8x128xf32>
    %cst_94 = arith.constant 1.000000e+00 : f32
    %182 = vector.broadcast %cst_94 : f32 to vector<8x128xf32>
    %183 = arith.addf %182, %181 : vector<8x128xf32>
    %184 = arith.divf %182, %183 : vector<8x128xf32>
    %185 = arith.mulf %177, %184 : vector<8x128xf32>
    %186 = arith.truncf %185 : vector<8x128xf32> to vector<8x128xbf16>
    %c0_95 = arith.constant 0 : index
    %c0_96 = arith.constant 0 : index
    %187 = vector.load %arg12[%c0_95, %c0_96] : memref<128x32xbf16, #tpu.memory_space<vmem>>, vector<128x32xbf16>
    %cst_97 = arith.constant dense<0.000000e+00> : vector<8x32xf32>
    %188 = tpu.matmul %186, %187, %cst_97 {dimension_numbers = #tpu.dot_dimension_numbers<[1], [0], [0], [1], [0, 0, 1, 1], [], []>} : vector<8x128xbf16>, vector<128x32xbf16>, vector<8x32xf32> -> vector<8x32xf32>
    %c0_98 = arith.constant 0 : index
    %c0_99 = arith.constant 0 : index
    %189 = vector.load %arg13[%c0_98, %c0_99] : memref<1x32xf32, #tpu.memory_space<vmem>>, vector<1x32xf32>
    %190 = vector.shape_cast %189 : vector<1x32xf32> to vector<32xf32>
    %191 = vector.shape_cast %190 : vector<32xf32> to vector<1x32xf32>
    %192 = vector.broadcast %191 : vector<1x32xf32> to vector<8x32xf32>
    %193 = arith.addf %188, %192 : vector<8x32xf32>
    %194 = arith.addf %193, %141 : vector<8x32xf32>
    %195 = vector.shape_cast %194 : vector<8x32xf32> to vector<1x8x32xf32>
    %c0_100 = arith.constant 0 : index
    %c0_101 = arith.constant 0 : index
    %c0_102 = arith.constant 0 : index
    %196 = vector.load %arg14[%c0_100, %c0_101, %c0_102] : memref<1x8x32xf32, #tpu.memory_space<vmem>>, vector<1x8x32xf32>
    tpu.vector_store %arg14[%c0_100, %c0_101, %c0_102], %195 {strides = array<i32>} : memref<1x8x32xf32, #tpu.memory_space<vmem>>, vector<1x8x32xf32>,
    return
  }
  func.func @transform_0(%arg0: i32) -> (i32, i32, i32) {
    %c0_i32 = arith.constant 0 : i32
    %c0_i32_0 = arith.constant 0 : i32
    %c0_i32_1 = arith.constant 0 : i32
    return %arg0, %c0_i32, %c0_i32_0 : i32, i32, i32
  }
  func.func @transform_1(%arg0: i32) -> (i32, i32) {
    %c0_i32 = arith.constant 0 : i32
    %c0_i32_0 = arith.constant 0 : i32
    %c0_i32_1 = arith.constant 0 : i32
    return %c0_i32, %c0_i32_0 : i32, i32
  }
  func.func @transform_2(%arg0: i32) -> (i32, i32) {
    %c0_i32 = arith.constant 0 : i32
    %c0_i32_0 = arith.constant 0 : i32
    %c0_i32_1 = arith.constant 0 : i32
    return %c0_i32, %c0_i32_0 : i32, i32
  }
  func.func @transform_3(%arg0: i32) -> (i32, i32) {
    %c0_i32 = arith.constant 0 : i32
    %c0_i32_0 = arith.constant 0 : i32
    %c0_i32_1 = arith.constant 0 : i32
    return %c0_i32, %c0_i32_0 : i32, i32
  }
  func.func @transform_4(%arg0: i32) -> (i32, i32) {
    %c0_i32 = arith.constant 0 : i32
    %c0_i32_0 = arith.constant 0 : i32
    %c0_i32_1 = arith.constant 0 : i32
    return %c0_i32, %c0_i32_0 : i32, i32
  }
  func.func @transform_5(%arg0: i32) -> (i32, i32) {
    %c0_i32 = arith.constant 0 : i32
    %c0_i32_0 = arith.constant 0 : i32
    %c0_i32_1 = arith.constant 0 : i32
    return %c0_i32, %c0_i32_0 : i32, i32
  }
  func.func @transform_6(%arg0: i32) -> (i32, i32) {
    %c0_i32 = arith.constant 0 : i32
    %c0_i32_0 = arith.constant 0 : i32
    %c0_i32_1 = arith.constant 0 : i32
    return %c0_i32, %c0_i32_0 : i32, i32
  }
  func.func @transform_7(%arg0: i32) -> (i32, i32) {
    %c0_i32 = arith.constant 0 : i32
    %c0_i32_0 = arith.constant 0 : i32
    %c0_i32_1 = arith.constant 0 : i32
    return %c0_i32, %c0_i32_0 : i32, i32
  }
  func.func @transform_8(%arg0: i32) -> (i32, i32) {
    %c0_i32 = arith.constant 0 : i32
    %c0_i32_0 = arith.constant 0 : i32
    %c0_i32_1 = arith.constant 0 : i32
    return %c0_i32, %c0_i32_0 : i32, i32
  }
  func.func @transform_9(%arg0: i32) -> (i32, i32) {
    %c0_i32 = arith.constant 0 : i32
    %c0_i32_0 = arith.constant 0 : i32
    %c0_i32_1 = arith.constant 0 : i32
    return %c0_i32, %c0_i32_0 : i32, i32
  }
  func.func @transform_10(%arg0: i32) -> (i32, i32) {
    %c0_i32 = arith.constant 0 : i32
    %c0_i32_0 = arith.constant 0 : i32
    %c0_i32_1 = arith.constant 0 : i32
    return %c0_i32, %c0_i32_0 : i32, i32
  }
  func.func @transform_11(%arg0: i32) -> (i32, i32) {
    %c0_i32 = arith.constant 0 : i32
    %c0_i32_0 = arith.constant 0 : i32
    %c0_i32_1 = arith.constant 0 : i32
    return %c0_i32, %c0_i32_0 : i32, i32
  }
  func.func @transform_12(%arg0: i32) -> (i32, i32) {
    %c0_i32 = arith.constant 0 : i32
    %c0_i32_0 = arith.constant 0 : i32
    %c0_i32_1 = arith.constant 0 : i32
    return %c0_i32, %c0_i32_0 : i32, i32
  }
  func.func @transform_13(%arg0: i32) -> (i32, i32, i32) {
    %c0_i32 = arith.constant 0 : i32
    %c0_i32_0 = arith.constant 0 : i32
    %c0_i32_1 = arith.constant 0 : i32
    return %arg0, %c0_i32, %c0_i32_0 : i32, i32, i32
  }
}

module attributes {stable_mosaic.version = 11 : i64} {
  func.func @clip_layer_kernel(%arg0: i32, %arg1: memref<1x8x32xf32, #tpu.memory_space<vmem>>, %arg2: memref<1x32xf32, #tpu.memory_space<vmem>>, %arg3: memref<1x32xf32, #tpu.memory_space<vmem>>, %arg4: memref<32x96xbf16, #tpu.memory_space<vmem>>, %arg5: memref<1x96xf32, #tpu.memory_space<vmem>>, %arg6: memref<32x32xbf16, #tpu.memory_space<vmem>>, %arg7: memref<1x32xf32, #tpu.memory_space<vmem>>, %arg8: memref<1x32xf32, #tpu.memory_space<vmem>>, %arg9: memref<1x32xf32, #tpu.memory_space<vmem>>, %arg10: memref<32x128xbf16, #tpu.memory_space<vmem>>, %arg11: memref<1x128xf32, #tpu.memory_space<vmem>>, %arg12: memref<128x32xbf16, #tpu.memory_space<vmem>>, %arg13: memref<1x32xf32, #tpu.memory_space<vmem>>, %arg14: memref<1x8x32xf32, #tpu.memory_space<vmem>>, %arg15: memref<1x8x96xbf16, #tpu.memory_space<vmem>>, %arg16: memref<8x32xbf16, #tpu.memory_space<vmem>>) attributes {dimension_semantics = [#tpu.dimension_semantics<parallel>], iteration_bounds = array<i64: 4>, scalar_prefetch = 0 : i64, scratch_operands = 2 : i64, tpu.core_type = #tpu.core_type<tc>, window_params = [{transform_indices = @transform_0, window_bounds = array<i64: 1, 8, 32>}, {pipeline_mode = #tpu.pipeline_mode<synchronous>, transform_indices = @transform_1, window_bounds = array<i64: 1, 32>}, {pipeline_mode = #tpu.pipeline_mode<synchronous>, transform_indices = @transform_2, window_bounds = array<i64: 1, 32>}, {pipeline_mode = #tpu.pipeline_mode<synchronous>, transform_indices = @transform_3, window_bounds = array<i64: 32, 96>}, {pipeline_mode = #tpu.pipeline_mode<synchronous>, transform_indices = @transform_4, window_bounds = array<i64: 1, 96>}, {pipeline_mode = #tpu.pipeline_mode<synchronous>, transform_indices = @transform_5, window_bounds = array<i64: 32, 32>}, {pipeline_mode = #tpu.pipeline_mode<synchronous>, transform_indices = @transform_6, window_bounds = array<i64: 1, 32>}, {pipeline_mode = #tpu.pipeline_mode<synchronous>, transform_indices = @transform_7, window_bounds = array<i64: 1, 32>}, {pipeline_mode = #tpu.pipeline_mode<synchronous>, transform_indices = @transform_8, window_bounds = array<i64: 1, 32>}, {pipeline_mode = #tpu.pipeline_mode<synchronous>, transform_indices = @transform_9, window_bounds = array<i64: 32, 128>}, {pipeline_mode = #tpu.pipeline_mode<synchronous>, transform_indices = @transform_10, window_bounds = array<i64: 1, 128>}, {pipeline_mode = #tpu.pipeline_mode<synchronous>, transform_indices = @transform_11, window_bounds = array<i64: 128, 32>}, {pipeline_mode = #tpu.pipeline_mode<synchronous>, transform_indices = @transform_12, window_bounds = array<i64: 1, 32>}, {transform_indices = @transform_13, window_bounds = array<i64: 1, 8, 32>}]} {
    %c0 = arith.constant 0 : index
    %c0_0 = arith.constant 0 : index
    %c0_1 = arith.constant 0 : index
    %0 = vector.load %arg1[%c0, %c0_0, %c0_1] : memref<1x8x32xf32, #tpu.memory_space<vmem>>, vector<1x8x32xf32>
    %1 = vector.shape_cast %0 : vector<1x8x32xf32> to vector<8x32xf32>
    %c0_2 = arith.constant 0 : index
    %c0_3 = arith.constant 0 : index
    %2 = vector.load %arg2[%c0_2, %c0_3] : memref<1x32xf32, #tpu.memory_space<vmem>>, vector<1x32xf32>
    %3 = vector.shape_cast %2 : vector<1x32xf32> to vector<32xf32>
    %c0_4 = arith.constant 0 : index
    %c0_5 = arith.constant 0 : index
    %4 = vector.load %arg3[%c0_4, %c0_5] : memref<1x32xf32, #tpu.memory_space<vmem>>, vector<1x32xf32>
    %5 = vector.shape_cast %4 : vector<1x32xf32> to vector<32xf32>
    %cst = arith.constant dense<0.000000e+00> : vector<8xf32>
    %6 = vector.multi_reduction <add>, %1, %cst [1] : vector<8x32xf32> to vector<8xf32>
    %7 = vector.shape_cast %6 : vector<8xf32> to vector<8x1xf32>
    %cst_6 = arith.constant 3.200000e+01 : f32
    %8 = vector.broadcast %cst_6 : f32 to vector<8x1xf32>
    %9 = arith.divf %7, %8 : vector<8x1xf32>
    %10 = vector.broadcast %9 : vector<8x1xf32> to vector<8x32xf32>
    %11 = arith.subf %1, %10 : vector<8x32xf32>
    %12 = arith.mulf %11, %11 : vector<8x32xf32>
    %cst_7 = arith.constant dense<0.000000e+00> : vector<8xf32>
    %13 = vector.multi_reduction <add>, %12, %cst_7 [1] : vector<8x32xf32> to vector<8xf32>
    %14 = vector.shape_cast %13 : vector<8xf32> to vector<8x1xf32>
    %cst_8 = arith.constant 3.200000e+01 : f32
    %15 = vector.broadcast %cst_8 : f32 to vector<8x1xf32>
    %16 = arith.divf %14, %15 : vector<8x1xf32>
    %17 = vector.broadcast %9 : vector<8x1xf32> to vector<8x32xf32>
    %18 = arith.subf %1, %17 : vector<8x32xf32>
    %cst_9 = arith.constant 9.99999974E-6 : f32
    %19 = vector.broadcast %cst_9 : f32 to vector<8x1xf32>
    %20 = arith.addf %16, %19 : vector<8x1xf32>
    %21 = math.rsqrt %20 : vector<8x1xf32>
    %22 = vector.broadcast %21 : vector<8x1xf32> to vector<8x32xf32>
    %23 = arith.mulf %18, %22 : vector<8x32xf32>
    %24 = vector.shape_cast %3 : vector<32xf32> to vector<1x32xf32>
    %25 = vector.broadcast %24 : vector<1x32xf32> to vector<8x32xf32>
    %26 = arith.mulf %23, %25 : vector<8x32xf32>
    %27 = vector.shape_cast %5 : vector<32xf32> to vector<1x32xf32>
    %28 = vector.broadcast %27 : vector<1x32xf32> to vector<8x32xf32>
    %29 = arith.addf %26, %28 : vector<8x32xf32>
    %30 = arith.truncf %29 : vector<8x32xf32> to vector<8x32xbf16>
    %c0_10 = arith.constant 0 : index
    %c0_11 = arith.constant 0 : index
    %31 = vector.load %arg4[%c0_10, %c0_11] : memref<32x96xbf16, #tpu.memory_space<vmem>>, vector<32x96xbf16>
    %cst_12 = arith.constant dense<0.000000e+00> : vector<8x96xf32>
    %32 = tpu.matmul %30, %31, %cst_12 {dimension_numbers = #tpu.dot_dimension_numbers<[1], [0], [0], [1], [0, 0, 1, 1], [], []>} : vector<8x32xbf16>, vector<32x96xbf16>, vector<8x96xf32> -> vector<8x96xf32>
    %c0_13 = arith.constant 0 : index
    %c0_14 = arith.constant 0 : index
    %33 = vector.load %arg5[%c0_13, %c0_14] : memref<1x96xf32, #tpu.memory_space<vmem>>, vector<1x96xf32>
    %34 = vector.shape_cast %33 : vector<1x96xf32> to vector<96xf32>
    %35 = vector.shape_cast %34 : vector<96xf32> to vector<1x96xf32>
    %36 = vector.broadcast %35 : vector<1x96xf32> to vector<8x96xf32>
    %37 = arith.addf %32, %36 : vector<8x96xf32>
    %38 = arith.truncf %37 : vector<8x96xf32> to vector<8x96xbf16>
    %39 = vector.shape_cast %38 : vector<8x96xbf16> to vector<1x8x96xbf16>
    %c0_15 = arith.constant 0 : index
    %c0_16 = arith.constant 0 : index
    %c0_17 = arith.constant 0 : index
    %40 = vector.load %arg15[%c0_15, %c0_16, %c0_17] : memref<1x8x96xbf16, #tpu.memory_space<vmem>>, vector<1x8x96xbf16>
    tpu.vector_store %arg15[%c0_15, %c0_16, %c0_17], %39 {strides = array<i32>} : memref<1x8x96xbf16, #tpu.memory_space<vmem>>, vector<1x8x96xbf16>,
    %41 = tpu.iota {dimensions = array<i32: 0>} : vector<8x8xi32>
    %42 = tpu.iota {dimensions = array<i32: 1>} : vector<8x8xi32>
    %43 = arith.cmpi sgt, %42, %41 : vector<8x8xi32>
    %cst_18 = arith.constant -1.000000e+30 : f32
    %cst_19 = arith.constant 0.000000e+00 : f32
    %44 = vector.broadcast %cst_18 : f32 to vector<8x8xf32>
    %45 = vector.broadcast %cst_19 : f32 to vector<8x8xf32>
    %46 = arith.select %43, %44, %45 : vector<8x8xi1>, vector<8x8xf32>
    %c0_20 = arith.constant 0 : index
    %c0_21 = arith.constant 0 : index
    %c0_22 = arith.constant 0 : index
    %47 = vector.load %arg15[%c0_20, %c0_21, %c0_22] : memref<1x8x96xbf16, #tpu.memory_space<vmem>>, vector<1x8x8xbf16>
    %c0_23 = arith.constant 0 : index
    %c0_24 = arith.constant 0 : index
    %c32 = arith.constant 32 : index
    %48 = vector.load %arg15[%c0_23, %c0_24, %c32] : memref<1x8x96xbf16, #tpu.memory_space<vmem>>, vector<1x8x8xbf16>
    %c0_25 = arith.constant 0 : index
    %c0_26 = arith.constant 0 : index
    %c64 = arith.constant 64 : index
    %49 = vector.load %arg15[%c0_25, %c0_26, %c64] : memref<1x8x96xbf16, #tpu.memory_space<vmem>>, vector<1x8x8xbf16>
    "tpu.trace_start"() <{level = 10 : i32, message = "bqd,bkd->bqk"}> : () -> ()
    %cst_27 = arith.constant dense<0.000000e+00> : vector<1x8x8xf32>
    %50 = tpu.matmul %47, %48, %cst_27 {dimension_numbers = #tpu.dot_dimension_numbers<[2], [2], [1], [1], [0, 0, 0, 1, 1, 1], [0], [0]>} : vector<1x8x8xbf16>, vector<1x8x8xbf16>, vector<1x8x8xf32> -> vector<1x8x8xf32>
    "tpu.trace_stop"() : () -> ()
    %51 = vector.shape_cast %46 : vector<8x8xf32> to vector<1x8x8xf32>
    %52 = arith.addf %50, %51 : vector<1x8x8xf32>
    %cst_28 = arith.constant dense<0xFF800000> : vector<1x8xf32>
    %53 = vector.multi_reduction <maximumf>, %52, %cst_28 [2] : vector<1x8x8xf32> to vector<1x8xf32>
    %54 = vector.shape_cast %53 : vector<1x8xf32> to vector<1x8x1xf32>
    %55 = vector.broadcast %54 : vector<1x8x1xf32> to vector<1x8x8xf32>
    %56 = arith.subf %52, %55 : vector<1x8x8xf32>
    %57 = math.exp %56 : vector<1x8x8xf32>
    %cst_29 = arith.constant dense<0.000000e+00> : vector<1x8xf32>
    %58 = vector.multi_reduction <add>, %57, %cst_29 [2] : vector<1x8x8xf32> to vector<1x8xf32>
    %59 = vector.shape_cast %58 : vector<1x8xf32> to vector<1x8x1xf32>
    %60 = tpu.reciprocal %59 {approx = true} : vector<1x8x1xf32> -> vector<1x8x1xf32>
    %61 = vector.broadcast %60 : vector<1x8x1xf32> to vector<1x8x8xf32>
    %62 = arith.mulf %57, %61 : vector<1x8x8xf32>
    %63 = arith.truncf %62 : vector<1x8x8xf32> to vector<1x8x8xbf16>
    "tpu.trace_start"() <{level = 10 : i32, message = "bqk,bkd->bqd"}> : () -> ()
    %cst_30 = arith.constant dense<0.000000e+00> : vector<1x8x8xf32>
    %64 = tpu.matmul %63, %49, %cst_30 {dimension_numbers = #tpu.dot_dimension_numbers<[2], [1], [1], [2], [0, 0, 0, 1, 1, 2], [0], [0]>} : vector<1x8x8xbf16>, vector<1x8x8xbf16>, vector<1x8x8xf32> -> vector<1x8x8xf32>
    "tpu.trace_stop"() : () -> ()
    %65 = vector.shape_cast %64 : vector<1x8x8xf32> to vector<8x8xf32>
    %66 = arith.truncf %65 : vector<8x8xf32> to vector<8x8xbf16>
    %c0_31 = arith.constant 0 : index
    %c0_32 = arith.constant 0 : index
    %67 = vector.load %arg16[%c0_31, %c0_32] : memref<8x32xbf16, #tpu.memory_space<vmem>>, vector<8x8xbf16>
    tpu.vector_store %arg16[%c0_31, %c0_32], %66 {strides = array<i32>} : memref<8x32xbf16, #tpu.memory_space<vmem>>, vector<8x8xbf16>,
    %c0_33 = arith.constant 0 : index
    %c0_34 = arith.constant 0 : index
    %c8 = arith.constant 8 : index
    %68 = vector.load %arg15[%c0_33, %c0_34, %c8] : memref<1x8x96xbf16, #tpu.memory_space<vmem>>, vector<1x8x8xbf16>
    %c0_35 = arith.constant 0 : index
    %c0_36 = arith.constant 0 : index
    %c40 = arith.constant 40 : index
    %69 = vector.load %arg15[%c0_35, %c0_36, %c40] : memref<1x8x96xbf16, #tpu.memory_space<vmem>>, vector<1x8x8xbf16>
    %c0_37 = arith.constant 0 : index
    %c0_38 = arith.constant 0 : index
    %c72 = arith.constant 72 : index
    %70 = vector.load %arg15[%c0_37, %c0_38, %c72] : memref<1x8x96xbf16, #tpu.memory_space<vmem>>, vector<1x8x8xbf16>
    "tpu.trace_start"() <{level = 10 : i32, message = "bqd,bkd->bqk"}> : () -> ()
    %cst_39 = arith.constant dense<0.000000e+00> : vector<1x8x8xf32>
    %71 = tpu.matmul %68, %69, %cst_39 {dimension_numbers = #tpu.dot_dimension_numbers<[2], [2], [1], [1], [0, 0, 0, 1, 1, 1], [0], [0]>} : vector<1x8x8xbf16>, vector<1x8x8xbf16>, vector<1x8x8xf32> -> vector<1x8x8xf32>
    "tpu.trace_stop"() : () -> ()
    %72 = vector.shape_cast %46 : vector<8x8xf32> to vector<1x8x8xf32>
    %73 = arith.addf %71, %72 : vector<1x8x8xf32>
    %cst_40 = arith.constant dense<0xFF800000> : vector<1x8xf32>
    %74 = vector.multi_reduction <maximumf>, %73, %cst_40 [2] : vector<1x8x8xf32> to vector<1x8xf32>
    %75 = vector.shape_cast %74 : vector<1x8xf32> to vector<1x8x1xf32>
    %76 = vector.broadcast %75 : vector<1x8x1xf32> to vector<1x8x8xf32>
    %77 = arith.subf %73, %76 : vector<1x8x8xf32>
    %78 = math.exp %77 : vector<1x8x8xf32>
    %cst_41 = arith.constant dense<0.000000e+00> : vector<1x8xf32>
    %79 = vector.multi_reduction <add>, %78, %cst_41 [2] : vector<1x8x8xf32> to vector<1x8xf32>
    %80 = vector.shape_cast %79 : vector<1x8xf32> to vector<1x8x1xf32>
    %81 = tpu.reciprocal %80 {approx = true} : vector<1x8x1xf32> -> vector<1x8x1xf32>
    %82 = vector.broadcast %81 : vector<1x8x1xf32> to vector<1x8x8xf32>
    %83 = arith.mulf %78, %82 : vector<1x8x8xf32>
    %84 = arith.truncf %83 : vector<1x8x8xf32> to vector<1x8x8xbf16>
    "tpu.trace_start"() <{level = 10 : i32, message = "bqk,bkd->bqd"}> : () -> ()
    %cst_42 = arith.constant dense<0.000000e+00> : vector<1x8x8xf32>
    %85 = tpu.matmul %84, %70, %cst_42 {dimension_numbers = #tpu.dot_dimension_numbers<[2], [1], [1], [2], [0, 0, 0, 1, 1, 2], [0], [0]>} : vector<1x8x8xbf16>, vector<1x8x8xbf16>, vector<1x8x8xf32> -> vector<1x8x8xf32>
    "tpu.trace_stop"() : () -> ()
    %86 = vector.shape_cast %85 : vector<1x8x8xf32> to vector<8x8xf32>
    %87 = arith.truncf %86 : vector<8x8xf32> to vector<8x8xbf16>
    %c0_43 = arith.constant 0 : index
    %c8_44 = arith.constant 8 : index
    %88 = vector.load %arg16[%c0_43, %c8_44] : memref<8x32xbf16, #tpu.memory_space<vmem>>, vector<8x8xbf16>
    tpu.vector_store %arg16[%c0_43, %c8_44], %87 {strides = array<i32>} : memref<8x32xbf16, #tpu.memory_space<vmem>>, vector<8x8xbf16>,
    %c0_45 = arith.constant 0 : index
    %c0_46 = arith.constant 0 : index
    %c16 = arith.constant 16 : index
    %89 = vector.load %arg15[%c0_45, %c0_46, %c16] : memref<1x8x96xbf16, #tpu.memory_space<vmem>>, vector<1x8x8xbf16>
    %c0_47 = arith.constant 0 : index
    %c0_48 = arith.constant 0 : index
    %c48 = arith.constant 48 : index
    %90 = vector.load %arg15[%c0_47, %c0_48, %c48] : memref<1x8x96xbf16, #tpu.memory_space<vmem>>, vector<1x8x8xbf16>
    %c0_49 = arith.constant 0 : index
    %c0_50 = arith.constant 0 : index
    %c80 = arith.constant 80 : index
    %91 = vector.load %arg15[%c0_49, %c0_50, %c80] : memref<1x8x96xbf16, #tpu.memory_space<vmem>>, vector<1x8x8xbf16>
    "tpu.trace_start"() <{level = 10 : i32, message = "bqd,bkd->bqk"}> : () -> ()
    %cst_51 = arith.constant dense<0.000000e+00> : vector<1x8x8xf32>
    %92 = tpu.matmul %89, %90, %cst_51 {dimension_numbers = #tpu.dot_dimension_numbers<[2], [2], [1], [1], [0, 0, 0, 1, 1, 1], [0], [0]>} : vector<1x8x8xbf16>, vector<1x8x8xbf16>, vector<1x8x8xf32> -> vector<1x8x8xf32>
    "tpu.trace_stop"() : () -> ()
    %93 = vector.shape_cast %46 : vector<8x8xf32> to vector<1x8x8xf32>
    %94 = arith.addf %92, %93 : vector<1x8x8xf32>
    %cst_52 = arith.constant dense<0xFF800000> : vector<1x8xf32>
    %95 = vector.multi_reduction <maximumf>, %94, %cst_52 [2] : vector<1x8x8xf32> to vector<1x8xf32>
    %96 = vector.shape_cast %95 : vector<1x8xf32> to vector<1x8x1xf32>
    %97 = vector.broadcast %96 : vector<1x8x1xf32> to vector<1x8x8xf32>
    %98 = arith.subf %94, %97 : vector<1x8x8xf32>
    %99 = math.exp %98 : vector<1x8x8xf32>
    %cst_53 = arith.constant dense<0.000000e+00> : vector<1x8xf32>
    %100 = vector.multi_reduction <add>, %99, %cst_53 [2] : vector<1x8x8xf32> to vector<1x8xf32>
    %101 = vector.shape_cast %100 : vector<1x8xf32> to vector<1x8x1xf32>
    %102 = tpu.reciprocal %101 {approx = true} : vector<1x8x1xf32> -> vector<1x8x1xf32>
    %103 = vector.broadcast %102 : vector<1x8x1xf32> to vector<1x8x8xf32>
    %104 = arith.mulf %99, %103 : vector<1x8x8xf32>
    %105 = arith.truncf %104 : vector<1x8x8xf32> to vector<1x8x8xbf16>
    "tpu.trace_start"() <{level = 10 : i32, message = "bqk,bkd->bqd"}> : () -> ()
    %cst_54 = arith.constant dense<0.000000e+00> : vector<1x8x8xf32>
    %106 = tpu.matmul %105, %91, %cst_54 {dimension_numbers = #tpu.dot_dimension_numbers<[2], [1], [1], [2], [0, 0, 0, 1, 1, 2], [0], [0]>} : vector<1x8x8xbf16>, vector<1x8x8xbf16>, vector<1x8x8xf32> -> vector<1x8x8xf32>
    "tpu.trace_stop"() : () -> ()
    %107 = vector.shape_cast %106 : vector<1x8x8xf32> to vector<8x8xf32>
    %108 = arith.truncf %107 : vector<8x8xf32> to vector<8x8xbf16>
    %c0_55 = arith.constant 0 : index
    %c16_56 = arith.constant 16 : index
    %109 = vector.load %arg16[%c0_55, %c16_56] : memref<8x32xbf16, #tpu.memory_space<vmem>>, vector<8x8xbf16>
    tpu.vector_store %arg16[%c0_55, %c16_56], %108 {strides = array<i32>} : memref<8x32xbf16, #tpu.memory_space<vmem>>, vector<8x8xbf16>,
    %c0_57 = arith.constant 0 : index
    %c0_58 = arith.constant 0 : index
    %c24 = arith.constant 24 : index
    %110 = vector.load %arg15[%c0_57, %c0_58, %c24] : memref<1x8x96xbf16, #tpu.memory_space<vmem>>, vector<1x8x8xbf16>
    %c0_59 = arith.constant 0 : index
    %c0_60 = arith.constant 0 : index
    %c56 = arith.constant 56 : index
    %111 = vector.load %arg15[%c0_59, %c0_60, %c56] : memref<1x8x96xbf16, #tpu.memory_space<vmem>>, vector<1x8x8xbf16>
    %c0_61 = arith.constant 0 : index
    %c0_62 = arith.constant 0 : index
    %c88 = arith.constant 88 : index
    %112 = vector.load %arg15[%c0_61, %c0_62, %c88] : memref<1x8x96xbf16, #tpu.memory_space<vmem>>, vector<1x8x8xbf16>
    "tpu.trace_start"() <{level = 10 : i32, message = "bqd,bkd->bqk"}> : () -> ()
    %cst_63 = arith.constant dense<0.000000e+00> : vector<1x8x8xf32>
    %113 = tpu.matmul %110, %111, %cst_63 {dimension_numbers = #tpu.dot_dimension_numbers<[2], [2], [1], [1], [0, 0, 0, 1, 1, 1], [0], [0]>} : vector<1x8x8xbf16>, vector<1x8x8xbf16>, vector<1x8x8xf32> -> vector<1x8x8xf32>
    "tpu.trace_stop"() : () -> ()
    %114 = vector.shape_cast %46 : vector<8x8xf32> to vector<1x8x8xf32>
    %115 = arith.addf %113, %114 : vector<1x8x8xf32>
    %cst_64 = arith.constant dense<0xFF800000> : vector<1x8xf32>
    %116 = vector.multi_reduction <maximumf>, %115, %cst_64 [2] : vector<1x8x8xf32> to vector<1x8xf32>
    %117 = vector.shape_cast %116 : vector<1x8xf32> to vector<1x8x1xf32>
    %118 = vector.broadcast %117 : vector<1x8x1xf32> to vector<1x8x8xf32>
    %119 = arith.subf %115, %118 : vector<1x8x8xf32>
    %120 = math.exp %119 : vector<1x8x8xf32>
    %cst_65 = arith.constant dense<0.000000e+00> : vector<1x8xf32>
    %121 = vector.multi_reduction <add>, %120, %cst_65 [2] : vector<1x8x8xf32> to vector<1x8xf32>
    %122 = vector.shape_cast %121 : vector<1x8xf32> to vector<1x8x1xf32>
    %123 = tpu.reciprocal %122 {approx = true} : vector<1x8x1xf32> -> vector<1x8x1xf32>
    %124 = vector.broadcast %123 : vector<1x8x1xf32> to vector<1x8x8xf32>
    %125 = arith.mulf %120, %124 : vector<1x8x8xf32>
    %126 = arith.truncf %125 : vector<1x8x8xf32> to vector<1x8x8xbf16>
    "tpu.trace_start"() <{level = 10 : i32, message = "bqk,bkd->bqd"}> : () -> ()
    %cst_66 = arith.constant dense<0.000000e+00> : vector<1x8x8xf32>
    %127 = tpu.matmul %126, %112, %cst_66 {dimension_numbers = #tpu.dot_dimension_numbers<[2], [1], [1], [2], [0, 0, 0, 1, 1, 2], [0], [0]>} : vector<1x8x8xbf16>, vector<1x8x8xbf16>, vector<1x8x8xf32> -> vector<1x8x8xf32>
    "tpu.trace_stop"() : () -> ()
    %128 = vector.shape_cast %127 : vector<1x8x8xf32> to vector<8x8xf32>
    %129 = arith.truncf %128 : vector<8x8xf32> to vector<8x8xbf16>
    %c0_67 = arith.constant 0 : index
    %c24_68 = arith.constant 24 : index
    %130 = vector.load %arg16[%c0_67, %c24_68] : memref<8x32xbf16, #tpu.memory_space<vmem>>, vector<8x8xbf16>
    tpu.vector_store %arg16[%c0_67, %c24_68], %129 {strides = array<i32>} : memref<8x32xbf16, #tpu.memory_space<vmem>>, vector<8x8xbf16>,
    %c0_69 = arith.constant 0 : index
    %c0_70 = arith.constant 0 : index
    %131 = vector.load %arg16[%c0_69, %c0_70] : memref<8x32xbf16, #tpu.memory_space<vmem>>, vector<8x32xbf16>
    %c0_71 = arith.constant 0 : index
    %c0_72 = arith.constant 0 : index
    %132 = vector.load %arg6[%c0_71, %c0_72] : memref<32x32xbf16, #tpu.memory_space<vmem>>, vector<32x32xbf16>
    %cst_73 = arith.constant dense<0.000000e+00> : vector<8x32xf32>
    %133 = tpu.matmul %131, %132, %cst_73 {dimension_numbers = #tpu.dot_dimension_numbers<[1], [0], [0], [1], [0, 0, 1, 1], [], []>} : vector<8x32xbf16>, vector<32x32xbf16>, vector<8x32xf32> -> vector<8x32xf32>
    %c0_74 = arith.constant 0 : index
    %c0_75 = arith.constant 0 : index
    %134 = vector.load %arg7[%c0_74, %c0_75] : memref<1x32xf32, #tpu.memory_space<vmem>>, vector<1x32xf32>
    %135 = vector.shape_cast %134 : vector<1x32xf32> to vector<32xf32>
    %136 = vector.shape_cast %135 : vector<32xf32> to vector<1x32xf32>
    %137 = vector.broadcast %136 : vector<1x32xf32> to vector<8x32xf32>
    %138 = arith.addf %133, %137 : vector<8x32xf32>
    %c0_76 = arith.constant 0 : index
    %c0_77 = arith.constant 0 : index
    %c0_78 = arith.constant 0 : index
    %139 = vector.load %arg1[%c0_76, %c0_77, %c0_78] : memref<1x8x32xf32, #tpu.memory_space<vmem>>, vector<1x8x32xf32>
    %140 = vector.shape_cast %139 : vector<1x8x32xf32> to vector<8x32xf32>
    %141 = arith.addf %138, %140 : vector<8x32xf32>
    %c0_79 = arith.constant 0 : index
    %c0_80 = arith.constant 0 : index
    %142 = vector.load %arg8[%c0_79, %c0_80] : memref<1x32xf32, #tpu.memory_space<vmem>>, vector<1x32xf32>
    %143 = vector.shape_cast %142 : vector<1x32xf32> to vector<32xf32>
    %c0_81 = arith.constant 0 : index
    %c0_82 = arith.constant 0 : index
    %144 = vector.load %arg9[%c0_81, %c0_82] : memref<1x32xf32, #tpu.memory_space<vmem>>, vector<1x32xf32>
    %145 = vector.shape_cast %144 : vector<1x32xf32> to vector<32xf32>
    %cst_83 = arith.constant dense<0.000000e+00> : vector<8xf32>
    %146 = vector.multi_reduction <add>, %141, %cst_83 [1] : vector<8x32xf32> to vector<8xf32>
    %147 = vector.shape_cast %146 : vector<8xf32> to vector<8x1xf32>
    %cst_84 = arith.constant 3.200000e+01 : f32
    %148 = vector.broadcast %cst_84 : f32 to vector<8x1xf32>
    %149 = arith.divf %147, %148 : vector<8x1xf32>
    %150 = vector.broadcast %149 : vector<8x1xf32> to vector<8x32xf32>
    %151 = arith.subf %141, %150 : vector<8x32xf32>
    %152 = arith.mulf %151, %151 : vector<8x32xf32>
    %cst_85 = arith.constant dense<0.000000e+00> : vector<8xf32>
    %153 = vector.multi_reduction <add>, %152, %cst_85 [1] : vector<8x32xf32> to vector<8xf32>
    %154 = vector.shape_cast %153 : vector<8xf32> to vector<8x1xf32>
    %cst_86 = arith.constant 3.200000e+01 : f32
    %155 = vector.broadcast %cst_86 : f32 to vector<8x1xf32>
    %156 = arith.divf %154, %155 : vector<8x1xf32>
    %157 = vector.broadcast %149 : vector<8x1xf32> to vector<8x32xf32>
    %158 = arith.subf %141, %157 : vector<8x32xf32>
    %cst_87 = arith.constant 9.99999974E-6 : f32
    %159 = vector.broadcast %cst_87 : f32 to vector<8x1xf32>
    %160 = arith.addf %156, %159 : vector<8x1xf32>
    %161 = math.rsqrt %160 : vector<8x1xf32>
    %162 = vector.broadcast %161 : vector<8x1xf32> to vector<8x32xf32>
    %163 = arith.mulf %158, %162 : vector<8x32xf32>
    %164 = vector.shape_cast %143 : vector<32xf32> to vector<1x32xf32>
    %165 = vector.broadcast %164 : vector<1x32xf32> to vector<8x32xf32>
    %166 = arith.mulf %163, %165 : vector<8x32xf32>
    %167 = vector.shape_cast %145 : vector<32xf32> to vector<1x32xf32>
    %168 = vector.broadcast %167 : vector<1x32xf32> to vector<8x32xf32>
    %169 = arith.addf %166, %168 : vector<8x32xf32>
    %170 = arith.truncf %169 : vector<8x32xf32> to vector<8x32xbf16>
    %c0_88 = arith.constant 0 : index
    %c0_89 = arith.constant 0 : index
    %171 = vector.load %arg10[%c0_88, %c0_89] : memref<32x128xbf16, #tpu.memory_space<vmem>>, vector<32x128xbf16>
    %cst_90 = arith.constant dense<0.000000e+00> : vector<8x128xf32>
    %172 = tpu.matmul %170, %171, %cst_90 {dimension_numbers = #tpu.dot_dimension_numbers<[1], [0], [0], [1], [0, 0, 1, 1], [], []>} : vector<8x32xbf16>, vector<32x128xbf16>, vector<8x128xf32> -> vector<8x128xf32>
    %c0_91 = arith.constant 0 : index
    %c0_92 = arith.constant 0 : index
    %173 = vector.load %arg11[%c0_91, %c0_92] : memref<1x128xf32, #tpu.memory_space<vmem>>, vector<1x128xf32>
    %174 = vector.shape_cast %173 : vector<1x128xf32> to vector<128xf32>
    %175 = vector.shape_cast %174 : vector<128xf32> to vector<1x128xf32>
    %176 = vector.broadcast %175 : vector<1x128xf32> to vector<8x128xf32>
    %177 = arith.addf %172, %176 : vector<8x128xf32>
    %cst_93 = arith.constant 1.702000e+00 : f32
    %178 = vector.broadcast %cst_93 : f32 to vector<8x128xf32>
    %179 = arith.mulf %178, %177 : vector<8x128xf32>
    %180 = arith.negf %179 : vector<8x128xf32>
    %181 = math.exp %180 : vector<8x128xf32>
    %cst_94 = arith.constant 1.000000e+00 : f32
    %182 = vector.broadcast %cst_94 : f32 to vector<8x128xf32>
    %183 = arith.addf %182, %181 : vector<8x128xf32>
    %184 = arith.divf %182, %183 : vector<8x128xf32>
    %185 = arith.mulf %177, %184 : vector<8x128xf32>
    %186 = arith.truncf %185 : vector<8x128xf32> to vector<8x128xbf16>
    %c0_95 = arith.constant 0 : index
    %c0_96 = arith.constant 0 : index
    %187 = vector.load %arg12[%c0_95, %c0_96] : memref<128x32xbf16, #tpu.memory_space<vmem>>, vector<128x32xbf16>
    %cst_97 = arith.constant dense<0.000000e+00> : vector<8x32xf32>
    %188 = tpu.matmul %186, %187, %cst_97 {dimension_numbers = #tpu.dot_dimension_numbers<[1], [0], [0], [1], [0, 0, 1, 1], [], []>} : vector<8x128xbf16>, vector<128x32xbf16>, vector<8x32xf32> -> vector<8x32xf32>
    %c0_98 = arith.constant 0 : index
    %c0_99 = arith.constant 0 : index
    %189 = vector.load %arg13[%c0_98, %c0_99] : memref<1x32xf32, #tpu.memory_space<vmem>>, vector<1x32xf32>
    %190 = vector.shape_cast %189 : vector<1x32xf32> to vector<32xf32>
    %191 = vector.shape_cast %190 : vector<32xf32> to vector<1x32xf32>
    %192 = vector.broadcast %191 : vector<1x32xf32> to vector<8x32xf32>
    %193 = arith.addf %188, %192 : vector<8x32xf32>
    %194 = arith.addf %193, %141 : vector<8x32xf32>
    %195 = vector.shape_cast %194 : vector<8x32xf32> to vector<1x8x32xf32>
    %c0_100 = arith.constant 0 : index
    %c0_101 = arith.constant 0 : index
    %c0_102 = arith.constant 0 : index
    %196 = vector.load %arg14[%c0_100, %c0_101, %c0_102] : memref<1x8x32xf32, #tpu.memory_space<vmem>>, vector<1x8x32xf32>
    tpu.vector_store %arg14[%c0_100, %c0_101, %c0_102], %195 {strides = array<i32>} : memref<1x8x32xf32, #tpu.memory_space<vmem>>, vector<1x8x32xf32>,
    return
  }
  func.func @transform_0(%arg0: i32) -> (i32, i32, i32) {
    %c0_i32 = arith.constant 0 : i32
    %c0_i32_0 = arith.constant 0 : i32
    %c0_i32_1 = arith.constant 0 : i32
    return %arg0, %c0_i32, %c0_i32_0 : i32, i32, i32
  }
  func.func @transform_1(%arg0: i32) -> (i32, i32) {
    %c0_i32 = arith.constant 0 : i32
    %c0_i32_0 = arith.constant 0 : i32
    %c0_i32_1 = arith.constant 0 : i32
    return %c0_i32, %c0_i32_0 : i32, i32
  }
  func.func @transform_2(%arg0: i32) -> (i32, i32) {
    %c0_i32 = arith.constant 0 : i32
    %c0_i32_0 = arith.constant 0 : i32
    %c0_i32_1 = arith.constant 0 : i32
    return %c0_i32, %c0_i32_0 : i32, i32
  }
  func.func @transform_3(%arg0: i32) -> (i32, i32) {
    %c0_i32 = arith.constant 0 : i32
    %c0_i32_0 = arith.constant 0 : i32
    %c0_i32_1 = arith.constant 0 : i32
    return %c0_i32, %c0_i32_0 : i32, i32
  }
  func.func @transform_4(%arg0: i32) -> (i32, i32) {
    %c0_i32 = arith.constant 0 : i32
    %c0_i32_0 = arith.constant 0 : i32
    %c0_i32_1 = arith.constant 0 : i32
    return %c0_i32, %c0_i32_0 : i32, i32
  }
  func.func @transform_5(%arg0: i32) -> (i32, i32) {
    %c0_i32 = arith.constant 0 : i32
    %c0_i32_0 = arith.constant 0 : i32
    %c0_i32_1 = arith.constant 0 : i32
    return %c0_i32, %c0_i32_0 : i32, i32
  }
  func.func @transform_6(%arg0: i32) -> (i32, i32) {
    %c0_i32 = arith.constant 0 : i32
    %c0_i32_0 = arith.constant 0 : i32
    %c0_i32_1 = arith.constant 0 : i32
    return %c0_i32, %c0_i32_0 : i32, i32
  }
  func.func @transform_7(%arg0: i32) -> (i32, i32) {
    %c0_i32 = arith.constant 0 : i32
    %c0_i32_0 = arith.constant 0 : i32
    %c0_i32_1 = arith.constant 0 : i32
    return %c0_i32, %c0_i32_0 : i32, i32
  }
  func.func @transform_8(%arg0: i32) -> (i32, i32) {
    %c0_i32 = arith.constant 0 : i32
    %c0_i32_0 = arith.constant 0 : i32
    %c0_i32_1 = arith.constant 0 : i32
    return %c0_i32, %c0_i32_0 : i32, i32
  }
  func.func @transform_9(%arg0: i32) -> (i32, i32) {
    %c0_i32 = arith.constant 0 : i32
    %c0_i32_0 = arith.constant 0 : i32
    %c0_i32_1 = arith.constant 0 : i32
    return %c0_i32, %c0_i32_0 : i32, i32
  }
  func.func @transform_10(%arg0: i32) -> (i32, i32) {
    %c0_i32 = arith.constant 0 : i32
    %c0_i32_0 = arith.constant 0 : i32
    %c0_i32_1 = arith.constant 0 : i32
    return %c0_i32, %c0_i32_0 : i32, i32
  }
  func.func @transform_11(%arg0: i32) -> (i32, i32) {
    %c0_i32 = arith.constant 0 : i32
    %c0_i32_0 = arith.constant 0 : i32
    %c0_i32_1 = arith.constant 0 : i32
    return %c0_i32, %c0_i32_0 : i32, i32
  }
  func.func @transform_12(%arg0: i32) -> (i32, i32) {
    %c0_i32 = arith.constant 0 : i32
    %c0_i32_0 = arith.constant 0 : i32
    %c0_i32_1 = arith.constant 0 : i32
    return %c0_i32, %c0_i32_0 : i32, i32
  }
  func.func @transform_13(%arg0: i32) -> (i32, i32, i32) {
    %c0_i32 = arith.constant 0 : i32
    %c0_i32_0 = arith.constant 0 : i32
    %c0_i32_1 = arith.constant 0 : i32
    return %arg0, %c0_i32, %c0_i32_0 : i32, i32, i32
  }
}

</mosaic_0001>

<llo_original>
// kernel: tpu_custom_call.1
$region0: #{tpu_custom_call.1}
  #allocation0 [shape = 'u32[]', space=smem, size = 0x4, offset = 0x4, fixed_abs, tag = 'smem constant byte address 0x4 - core index']
  #allocation1 [shape = 'u32[144,128]{1,0:T(1,128)}', space=vmem, size = 0x12000, scoped, tag = 'internal scratch']
  #allocation2 [shape = 'bf16[1,8,96]{2,1,0:T(8,128)(2,1)}', space=vmem, size = 0x800, scoped, tag = 'scratch operand']
  #allocation3 [shape = 'bf16[8,32]{1,0:T(8,128)(2,1)}', space=vmem, size = 0x800, scoped, tag = 'scratch operand']
  %s0 = inlined_call_operand.vmem [shape: f32[4,8,32], index: 0, kind: input, shape index: {}]
  %s1 = inlined_call_operand.vmem [shape: f32[1,32], index: 1, kind: input, shape index: {}]
  %s2 = inlined_call_operand.vmem [shape: f32[1,32], index: 2, kind: input, shape index: {}]
  %s3 = inlined_call_operand.vmem [shape: bf16[32,96], index: 3, kind: input, shape index: {}]
  %s4 = inlined_call_operand.vmem [shape: f32[1,96], index: 4, kind: input, shape index: {}]
  %s5 = inlined_call_operand.vmem [shape: bf16[32,32], index: 5, kind: input, shape index: {}]
  %s6 = inlined_call_operand.vmem [shape: f32[1,32], index: 6, kind: input, shape index: {}]
  %s7 = inlined_call_operand.vmem [shape: f32[1,32], index: 7, kind: input, shape index: {}]
  %s8 = inlined_call_operand.vmem [shape: f32[1,32], index: 8, kind: input, shape index: {}]
  %s9 = inlined_call_operand.vmem [shape: bf16[32,128], index: 9, kind: input, shape index: {}]
  %s10 = inlined_call_operand.vmem [shape: f32[1,128], index: 10, kind: input, shape index: {}]
  %s11 = inlined_call_operand.vmem [shape: bf16[128,32], index: 11, kind: input, shape index: {}]
  %s12 = inlined_call_operand.vmem [shape: f32[1,32], index: 12, kind: input, shape index: {}]
  %s13 = inlined_call_operand.hbm [shape: f32[4,8,32], index: 13, kind: output, shape index: {}]
  %s14 = sld [smem:[#allocation0]]
  $region85: #{tpu_custom_call.1} parent=0
    _
  %s16 = ssub.s32 1, %s14
  %s17 = scalar_select 0, %s16, %s14
  $region1: #{tpu_custom_call.1} parent=0
    #allocation4 [shape = 'u8[8192]{0}', space=vmem, size = 0x2000, scoped, tag = 'output window, operand 0']
    #allocation5 [shape = 's32[2]{0}', space=sflag, size = 0x8, scoped, tag = 'scoped memory for tpu_custom_call.1']
    %18 = vsyncpa [#allocation5], 0
    %s19 = scalar_lea.sflag [#allocation5], 1
    %20 = vsyncpa %s19, 0
    loop: start=0, step=1, limit=6
    $region2: #{tpu_custom_call.1} parent=1 // loop_pre_header
      _
    $region3: #{tpu_custom_call.1} parent=1 // loop_header
      %s22 = sphi 0, %s26
      %p23 = scmp.ge.s32.totalorder %s22, 6
      %s32 = sphi 0, %s34
      %s35 = sphi 0, %s32
      %s36 = sphi 0, %s35
      %s52 = sphi 0, %s36
      %s56 = sphi 0, %s56
      %s58 = sphi 0, %s56
      %s59 = sphi 0, %s58
      %s73 = sphi 0, %s59
      %s77 = sphi 0, %s77
      %s79 = sphi 0, %s77
      %s80 = sphi 0, %s79
      %s94 = sphi 0, %s80
      %s98 = sphi 0, %s98
      %s100 = sphi 0, %s98
      %s101 = sphi 0, %s100
      %s115 = sphi 0, %s101
      %s119 = sphi 0, %s119
      %s121 = sphi 0, %s119
      %s122 = sphi 0, %s121
      %s136 = sphi 0, %s122
      %s140 = sphi 0, %s140
      %s142 = sphi 0, %s140
      %s143 = sphi 0, %s142
      %s157 = sphi 0, %s143
      %s161 = sphi 0, %s161
      %s163 = sphi 0, %s161
      %s164 = sphi 0, %s163
      %s178 = sphi 0, %s164
      %s182 = sphi 0, %s182
      %s184 = sphi 0, %s182
      %s185 = sphi 0, %s184
      %s199 = sphi 0, %s185
      %s203 = sphi 0, %s203
      %s205 = sphi 0, %s203
      %s206 = sphi 0, %s205
      %s220 = sphi 0, %s206
      %s224 = sphi 0, %s224
      %s226 = sphi 0, %s224
      %s227 = sphi 0, %s226
      %s241 = sphi 0, %s227
      %s245 = sphi 0, %s245
      %s247 = sphi 0, %s245
      %s248 = sphi 0, %s247
      %s262 = sphi 0, %s248
      %s266 = sphi 0, %s266
      %s268 = sphi 0, %s266
      %s269 = sphi 0, %s268
      %s283 = sphi 0, %s269
      %s287 = sphi 0, %s287
      %s289 = sphi 0, %s287
      %s290 = sphi 0, %s289
      %s304 = sphi 0, %s290
      %s310 = sphi 0, %s312
      %s313 = sphi 0, %s310
      %s314 = sphi 0, %s313
      %s330 = sphi 0, %s314
    $region4: #{tpu_custom_call.1} parent=1 // loop_header_branch
      %25 = sbr.rel (%p23) target = $region8
    $region5: #{tpu_custom_call.1} parent=1 // loop_body
      %s27 = ssub.s32 %s22, 1
      %s28 = ssub.s32 %s22, 2
      %s29 = sadd.s32 %s22, 1
      %s30 = ssub.s32 %s22, %s29
      %p31 = scmp.eq.s32.totalorder %s30, 0
      %s33 = sadd.s32 %s32, 1
      %s34 = scalar_select %p31, %s32, %s33
      %p37 = pneg %p31
      %p38 = scmp.eq.s32.totalorder %s22, 3
      %p39 = por %p37, %p38
      %p40 = scmp.ne.s32.totalorder %s32, %s35
      %p41 = scmp.eq.s32.totalorder %s22, 0
      %p42 = por %p40, %p41
      %p43 = scmp.ne.s32.totalorder %s32, %s35
      %p44 = scmp.eq.s32.totalorder %s27, 3
      %p45 = por %p43, %p44
      %p46 = scmp.ne.s32.totalorder %s35, %s36
      %p47 = scmp.eq.s32.totalorder %s27, 0
      %p48 = por %p46, %p47
      %p49 = scmp.ne.s32.totalorder %s35, %s36
      %p50 = scmp.eq.s32.totalorder %s28, 3
      %p51 = por %p49, %p50
      %p53 = scmp.ne.s32.totalorder %s36, %s52
      %p54 = scmp.eq.s32.totalorder %s28, 0
      %p55 = por %p53, %p54
      %s57 = sadd.s32 %s56, 1
      %p60 = scmp.eq.s32.totalorder %s22, 3
      %p61 = scmp.ne.s32.totalorder %s56, %s58
      %p62 = scmp.eq.s32.totalorder %s22, 0
      %p63 = por %p61, %p62
      %p64 = scmp.ne.s32.totalorder %s56, %s58
      %p65 = scmp.eq.s32.totalorder %s27, 3
      %p66 = por %p64, %p65
      %p67 = scmp.ne.s32.totalorder %s58, %s59
      %p68 = scmp.eq.s32.totalorder %s27, 0
      %p69 = por %p67, %p68
      %p70 = scmp.ne.s32.totalorder %s58, %s59
      %p71 = scmp.eq.s32.totalorder %s28, 3
      %p72 = por %p70, %p71
      %p74 = scmp.ne.s32.totalorder %s59, %s73
      %p75 = scmp.eq.s32.totalorder %s28, 0
      %p76 = por %p74, %p75
      %s78 = sadd.s32 %s77, 1
      %p81 = scmp.eq.s32.totalorder %s22, 3
      %p82 = scmp.ne.s32.totalorder %s77, %s79
      %p83 = scmp.eq.s32.totalorder %s22, 0
      %p84 = por %p82, %p83
      %p85 = scmp.ne.s32.totalorder %s77, %s79
      %p86 = scmp.eq.s32.totalorder %s27, 3
      %p87 = por %p85, %p86
      %p88 = scmp.ne.s32.totalorder %s79, %s80
      %p89 = scmp.eq.s32.totalorder %s27, 0
      %p90 = por %p88, %p89
      %p91 = scmp.ne.s32.totalorder %s79, %s80
      %p92 = scmp.eq.s32.totalorder %s28, 3
      %p93 = por %p91, %p92
      %p95 = scmp.ne.s32.totalorder %s80, %s94
      %p96 = scmp.eq.s32.totalorder %s28, 0
      %p97 = por %p95, %p96
      %s99 = sadd.s32 %s98, 1
      %p102 = scmp.eq.s32.totalorder %s22, 3
      %p103 = scmp.ne.s32.totalorder %s98, %s100
      %p104 = scmp.eq.s32.totalorder %s22, 0
      %p105 = por %p103, %p104
      %p106 = scmp.ne.s32.totalorder %s98, %s100
      %p107 = scmp.eq.s32.totalorder %s27, 3
      %p108 = por %p106, %p107
      %p109 = scmp.ne.s32.totalorder %s100, %s101
      %p110 = scmp.eq.s32.totalorder %s27, 0
      %p111 = por %p109, %p110
      %p112 = scmp.ne.s32.totalorder %s100, %s101
      %p113 = scmp.eq.s32.totalorder %s28, 3
      %p114 = por %p112, %p113
      %p116 = scmp.ne.s32.totalorder %s101, %s115
      %p117 = scmp.eq.s32.totalorder %s28, 0
      %p118 = por %p116, %p117
      %s120 = sadd.s32 %s119, 1
      %p123 = scmp.eq.s32.totalorder %s22, 3
      %p124 = scmp.ne.s32.totalorder %s119, %s121
      %p125 = scmp.eq.s32.totalorder %s22, 0
      %p126 = por %p124, %p125
      %p127 = scmp.ne.s32.totalorder %s119, %s121
      %p128 = scmp.eq.s32.totalorder %s27, 3
      %p129 = por %p127, %p128
      %p130 = scmp.ne.s32.totalorder %s121, %s122
      %p131 = scmp.eq.s32.totalorder %s27, 0
      %p132 = por %p130, %p131
      %p133 = scmp.ne.s32.totalorder %s121, %s122
      %p134 = scmp.eq.s32.totalorder %s28, 3
      %p135 = por %p133, %p134
      %p137 = scmp.ne.s32.totalorder %s122, %s136
      %p138 = scmp.eq.s32.totalorder %s28, 0
      %p139 = por %p137, %p138
      %s141 = sadd.s32 %s140, 1
      %p144 = scmp.eq.s32.totalorder %s22, 3
      %p145 = scmp.ne.s32.totalorder %s140, %s142
      %p146 = scmp.eq.s32.totalorder %s22, 0
      %p147 = por %p145, %p146
      %p148 = scmp.ne.s32.totalorder %s140, %s142
      %p149 = scmp.eq.s32.totalorder %s27, 3
      %p150 = por %p148, %p149
      %p151 = scmp.ne.s32.totalorder %s142, %s143
      %p152 = scmp.eq.s32.totalorder %s27, 0
      %p153 = por %p151, %p152
      %p154 = scmp.ne.s32.totalorder %s142, %s143
      %p155 = scmp.eq.s32.totalorder %s28, 3
      %p156 = por %p154, %p155
      %p158 = scmp.ne.s32.totalorder %s143, %s157
      %p159 = scmp.eq.s32.totalorder %s28, 0
      %p160 = por %p158, %p159
      %s162 = sadd.s32 %s161, 1
      %p165 = scmp.eq.s32.totalorder %s22, 3
      %p166 = scmp.ne.s32.totalorder %s161, %s163
      %p167 = scmp.eq.s32.totalorder %s22, 0
      %p168 = por %p166, %p167
      %p169 = scmp.ne.s32.totalorder %s161, %s163
      %p170 = scmp.eq.s32.totalorder %s27, 3
      %p171 = por %p169, %p170
      %p172 = scmp.ne.s32.totalorder %s163, %s164
      %p173 = scmp.eq.s32.totalorder %s27, 0
      %p174 = por %p172, %p173
      %p175 = scmp.ne.s32.totalorder %s163, %s164
      %p176 = scmp.eq.s32.totalorder %s28, 3
      %p177 = por %p175, %p176
      %p179 = scmp.ne.s32.totalorder %s164, %s178
      %p180 = scmp.eq.s32.totalorder %s28, 0
      %p181 = por %p179, %p180
      %s183 = sadd.s32 %s182, 1
      %p186 = scmp.eq.s32.totalorder %s22, 3
      %p187 = scmp.ne.s32.totalorder %s182, %s184
      %p188 = scmp.eq.s32.totalorder %s22, 0
      %p189 = por %p187, %p188
      %p190 = scmp.ne.s32.totalorder %s182, %s184
      %p191 = scmp.eq.s32.totalorder %s27, 3
      %p192 = por %p190, %p191
      %p193 = scmp.ne.s32.totalorder %s184, %s185
      %p194 = scmp.eq.s32.totalorder %s27, 0
      %p195 = por %p193, %p194
      %p196 = scmp.ne.s32.totalorder %s184, %s185
      %p197 = scmp.eq.s32.totalorder %s28, 3
      %p198 = por %p196, %p197
      %p200 = scmp.ne.s32.totalorder %s185, %s199
      %p201 = scmp.eq.s32.totalorder %s28, 0
      %p202 = por %p200, %p201
      %s204 = sadd.s32 %s203, 1
      %p207 = scmp.eq.s32.totalorder %s22, 3
      %p208 = scmp.ne.s32.totalorder %s203, %s205
      %p209 = scmp.eq.s32.totalorder %s22, 0
      %p210 = por %p208, %p209
      %p211 = scmp.ne.s32.totalorder %s203, %s205
      %p212 = scmp.eq.s32.totalorder %s27, 3
      %p213 = por %p211, %p212
      %p214 = scmp.ne.s32.totalorder %s205, %s206
      %p215 = scmp.eq.s32.totalorder %s27, 0
      %p216 = por %p214, %p215
      %p217 = scmp.ne.s32.totalorder %s205, %s206
      %p218 = scmp.eq.s32.totalorder %s28, 3
      %p219 = por %p217, %p218
      %p221 = scmp.ne.s32.totalorder %s206, %s220
      %p222 = scmp.eq.s32.totalorder %s28, 0
      %p223 = por %p221, %p222
      %s225 = sadd.s32 %s224, 1
      %p228 = scmp.eq.s32.totalorder %s22, 3
      %p229 = scmp.ne.s32.totalorder %s224, %s226
      %p230 = scmp.eq.s32.totalorder %s22, 0
      %p231 = por %p229, %p230
      %p232 = scmp.ne.s32.totalorder %s224, %s226
      %p233 = scmp.eq.s32.totalorder %s27, 3
      %p234 = por %p232, %p233
      %p235 = scmp.ne.s32.totalorder %s226, %s227
      %p236 = scmp.eq.s32.totalorder %s27, 0
      %p237 = por %p235, %p236
      %p238 = scmp.ne.s32.totalorder %s226, %s227
      %p239 = scmp.eq.s32.totalorder %s28, 3
      %p240 = por %p238, %p239
      %p242 = scmp.ne.s32.totalorder %s227, %s241
      %p243 = scmp.eq.s32.totalorder %s28, 0
      %p244 = por %p242, %p243
      %s246 = sadd.s32 %s245, 1
      %p249 = scmp.eq.s32.totalorder %s22, 3
      %p250 = scmp.ne.s32.totalorder %s245, %s247
      %p251 = scmp.eq.s32.totalorder %s22, 0
      %p252 = por %p250, %p251
      %p253 = scmp.ne.s32.totalorder %s245, %s247
      %p254 = scmp.eq.s32.totalorder %s27, 3
      %p255 = por %p253, %p254
      %p256 = scmp.ne.s32.totalorder %s247, %s248
      %p257 = scmp.eq.s32.totalorder %s27, 0
      %p258 = por %p256, %p257
      %p259 = scmp.ne.s32.totalorder %s247, %s248
      %p260 = scmp.eq.s32.totalorder %s28, 3
      %p261 = por %p259, %p260
      %p263 = scmp.ne.s32.totalorder %s248, %s262
      %p264 = scmp.eq.s32.totalorder %s28, 0
      %p265 = por %p263, %p264
      %s267 = sadd.s32 %s266, 1
      %p270 = scmp.eq.s32.totalorder %s22, 3
      %p271 = scmp.ne.s32.totalorder %s266, %s268
      %p272 = scmp.eq.s32.totalorder %s22, 0
      %p273 = por %p271, %p272
      %p274 = scmp.ne.s32.totalorder %s266, %s268
      %p275 = scmp.eq.s32.totalorder %s27, 3
      %p276 = por %p274, %p275
      %p277 = scmp.ne.s32.totalorder %s268, %s269
      %p278 = scmp.eq.s32.totalorder %s27, 0
      %p279 = por %p277, %p278
      %p280 = scmp.ne.s32.totalorder %s268, %s269
      %p281 = scmp.eq.s32.totalorder %s28, 3
      %p282 = por %p280, %p281
      %p284 = scmp.ne.s32.totalorder %s269, %s283
      %p285 = scmp.eq.s32.totalorder %s28, 0
      %p286 = por %p284, %p285
      %s288 = sadd.s32 %s287, 1
      %p291 = scmp.eq.s32.totalorder %s22, 3
      %p292 = scmp.ne.s32.totalorder %s287, %s289
      %p293 = scmp.eq.s32.totalorder %s22, 0
      %p294 = por %p292, %p293
      %p295 = scmp.ne.s32.totalorder %s287, %s289
      %p296 = scmp.eq.s32.totalorder %s27, 3
      %p297 = por %p295, %p296
      %p298 = scmp.ne.s32.totalorder %s289, %s290
      %p299 = scmp.eq.s32.totalorder %s27, 0
      %p300 = por %p298, %p299
      %p301 = scmp.ne.s32.totalorder %s289, %s290
      %p302 = scmp.eq.s32.totalorder %s28, 3
      %p303 = por %p301, %p302
      %p305 = scmp.ne.s32.totalorder %s290, %s304
      %p306 = scmp.eq.s32.totalorder %s28, 0
      %p307 = por %p305, %p306
      %s308 = ssub.s32 %s22, %s29
      %p309 = scmp.eq.s32.totalorder %s308, 0
      %s311 = sadd.s32 %s310, 1
      %s312 = scalar_select %p309, %s310, %s311
      %p315 = pneg %p309
      %p316 = scmp.eq.s32.totalorder %s22, 3
      %p317 = por %p315, %p316
      %p318 = scmp.ne.s32.totalorder %s310, %s313
      %p319 = scmp.eq.s32.totalorder %s22, 0
      %p320 = por %p318, %p319
      %p321 = scmp.ne.s32.totalorder %s310, %s313
      %p322 = scmp.eq.s32.totalorder %s27, 3
      %p323 = por %p321, %p322
      %p324 = scmp.ne.s32.totalorder %s313, %s314
      %p325 = scmp.eq.s32.totalorder %s27, 0
      %p326 = por %p324, %p325
      %p327 = scmp.ne.s32.totalorder %s313, %s314
      %p328 = scmp.eq.s32.totalorder %s28, 3
      %p329 = por %p327, %p328
      %p331 = scmp.ne.s32.totalorder %s314, %s330
      %p332 = scmp.eq.s32.totalorder %s28, 0
      %p333 = por %p331, %p332
      %p334 = scmp.le.s32.totalorder 1, %s22
      %p335 = scmp.lt.s32.totalorder %s22, 5
      %p336 = pnand %p334, %p335
      %p337 = pneg %p336
      // Predicated region
      $region9: #{tpu_custom_call.1} parent=5 // pred_check
        _
      $region10: #{tpu_custom_call.1} parent=5 // pred_check_branch
        %339 = sbr.rel (%p336) target = $region12
      $region11: #{tpu_custom_call.1} parent=5 // pred_region
        %s340 = ssub.s32 %s22, 1
        // Predicated region
        $region13: #{tpu_custom_call.1} parent=11 // pred_check
          %p341 = pneg %p69
        $region14: #{tpu_custom_call.1} parent=11 // pred_check_branch
          %343 = sbr.rel (%p341) target = $region16
        $region15: #{tpu_custom_call.1} parent=11 // pred_region
          _
        $region16: #{tpu_custom_call.1} parent=11 // pred_fallthru
          _
        // Predicated region
        $region17: #{tpu_custom_call.1} parent=11 // pred_check
          %p344 = pneg %p90
        $region18: #{tpu_custom_call.1} parent=11 // pred_check_branch
          %346 = sbr.rel (%p344) target = $region20
        $region19: #{tpu_custom_call.1} parent=11 // pred_region
          _
        $region20: #{tpu_custom_call.1} parent=11 // pred_fallthru
          _
        // Predicated region
        $region21: #{tpu_custom_call.1} parent=11 // pred_check
          %p347 = pneg %p111
        $region22: #{tpu_custom_call.1} parent=11 // pred_check_branch
          %349 = sbr.rel (%p347) target = $region24
        $region23: #{tpu_custom_call.1} parent=11 // pred_region
          _
        $region24: #{tpu_custom_call.1} parent=11 // pred_fallthru
          _
        // Predicated region
        $region25: #{tpu_custom_call.1} parent=11 // pred_check
          %p350 = pneg %p132
        $region26: #{tpu_custom_call.1} parent=11 // pred_check_branch
          %352 = sbr.rel (%p350) target = $region28
        $region27: #{tpu_custom_call.1} parent=11 // pred_region
          _
        $region28: #{tpu_custom_call.1} parent=11 // pred_fallthru
          _
        // Predicated region
        $region29: #{tpu_custom_call.1} parent=11 // pred_check
          %p353 = pneg %p153
        $region30: #{tpu_custom_call.1} parent=11 // pred_check_branch
          %355 = sbr.rel (%p353) target = $region32
        $region31: #{tpu_custom_call.1} parent=11 // pred_region
          _
        $region32: #{tpu_custom_call.1} parent=11 // pred_fallthru
          _
        // Predicated region
        $region33: #{tpu_custom_call.1} parent=11 // pred_check
          %p356 = pneg %p174
        $region34: #{tpu_custom_call.1} parent=11 // pred_check_branch
          %358 = sbr.rel (%p356) target = $region36
        $region35: #{tpu_custom_call.1} parent=11 // pred_region
          _
        $region36: #{tpu_custom_call.1} parent=11 // pred_fallthru
          _
        // Predicated region
        $region37: #{tpu_custom_call.1} parent=11 // pred_check
          %p359 = pneg %p195
        $region38: #{tpu_custom_call.1} parent=11 // pred_check_branch
          %361 = sbr.rel (%p359) target = $region40
        $region39: #{tpu_custom_call.1} parent=11 // pred_region
          _
        $region40: #{tpu_custom_call.1} parent=11 // pred_fallthru
          _
        // Predicated region
        $region41: #{tpu_custom_call.1} parent=11 // pred_check
          %p362 = pneg %p216
        $region42: #{tpu_custom_call.1} parent=11 // pred_check_branch
          %364 = sbr.rel (%p362) target = $region44
        $region43: #{tpu_custom_call.1} parent=11 // pred_region
          _
        $region44: #{tpu_custom_call.1} parent=11 // pred_fallthru
          _
        // Predicated region
        $region45: #{tpu_custom_call.1} parent=11 // pred_check
          %p365 = pneg %p237
        $region46: #{tpu_custom_call.1} parent=11 // pred_check_branch
          %367 = sbr.rel (%p365) target = $region48
        $region47: #{tpu_custom_call.1} parent=11 // pred_region
          _
        $region48: #{tpu_custom_call.1} parent=11 // pred_fallthru
          _
        // Predicated region
        $region49: #{tpu_custom_call.1} parent=11 // pred_check
          %p368 = pneg %p258
        $region50: #{tpu_custom_call.1} parent=11 // pred_check_branch
          %370 = sbr.rel (%p368) target = $region52
        $region51: #{tpu_custom_call.1} parent=11 // pred_region
          _
        $region52: #{tpu_custom_call.1} parent=11 // pred_fallthru
          _
        // Predicated region
        $region53: #{tpu_custom_call.1} parent=11 // pred_check
          %p371 = pneg %p279
        $region54: #{tpu_custom_call.1} parent=11 // pred_check_branch
          %373 = sbr.rel (%p371) target = $region56
        $region55: #{tpu_custom_call.1} parent=11 // pred_region
          _
        $region56: #{tpu_custom_call.1} parent=11 // pred_fallthru
          _
        // Predicated region
        $region57: #{tpu_custom_call.1} parent=11 // pred_check
          %p374 = pneg %p300
        $region58: #{tpu_custom_call.1} parent=11 // pred_check_branch
          %376 = sbr.rel (%p374) target = $region60
        $region59: #{tpu_custom_call.1} parent=11 // pred_region
          _
        $region60: #{tpu_custom_call.1} parent=11 // pred_fallthru
          _
      $region12: #{tpu_custom_call.1} parent=5 // pred_fallthru
        _
      %p377 = scmp.lt.s32.totalorder %s22, 4
      // Predicated region
      $region61: #{tpu_custom_call.1} parent=5 // pred_check
        %p378 = pneg %p377
      $region62: #{tpu_custom_call.1} parent=5 // pred_check_branch
        %380 = sbr.rel (%p378) target = $region64
      $region63: #{tpu_custom_call.1} parent=5 // pred_region
        // Predicated region
        $region65: #{tpu_custom_call.1} parent=63 // pred_check
          %p381 = pneg %p42
        $region66: #{tpu_custom_call.1} parent=63 // pred_check_branch
          %383 = sbr.rel (%p381) target = $region68
        $region67: #{tpu_custom_call.1} parent=63 // pred_region
          %p384 = scmp.lt.s32.totalorder %s22, 3
          %s385 = scalar_select %p384, %s22, 3
          %s386 = smul.addr %s385, 8
          %s387 = scalar_lea.vmem %s0, %s386
        $region68: #{tpu_custom_call.1} parent=63 // pred_fallthru
          _
      $region64: #{tpu_custom_call.1} parent=5 // pred_fallthru
        _
      %p388 = scmp.le.s32.totalorder 1, %s22
      %p389 = scmp.lt.s32.totalorder %s22, 5
      %p390 = pnand %p388, %p389
      %p391 = pneg %p390
      // Predicated region
      $region69: #{tpu_custom_call.1} parent=5 // pred_check
        _
      $region70: #{tpu_custom_call.1} parent=5 // pred_check_branch
        %393 = sbr.rel (%p390) target = $region72
      $region71: #{tpu_custom_call.1} parent=5 // pred_region
        %s394 = ssub.s32 %s22, 1
        %p395 = scmp.lt.s32.totalorder %s27, 3
        %s396 = scalar_select %p395, %s27, 3
        %s397 = smul.addr %s396, 8
        %s398 = scalar_lea.vmem %s0, %s397
        %p399 = pneg %p48
        %p400 = pneg %p45
        %p401 = pneg %p69
        %p402 = pneg %p66
        %p403 = pneg %p90
        %p404 = pneg %p87
        %p405 = pneg %p111
        %p406 = pneg %p108
        %p407 = pneg %p132
        %p408 = pneg %p129
        %p409 = pneg %p153
        %p410 = pneg %p150
        %p411 = pneg %p174
        %p412 = pneg %p171
        %p413 = pneg %p195
        %p414 = pneg %p192
        %p415 = pneg %p216
        %p416 = pneg %p213
        %p417 = pneg %p237
        %p418 = pneg %p234
        %p419 = pneg %p258
        %p420 = pneg %p255
        %p421 = pneg %p279
        %p422 = pneg %p276
        %p423 = pneg %p300
        %p424 = pneg %p297
        %p425 = pneg %p326
        %p426 = pneg %p323
        %s427 = sand.u32 %s313, 1
        %s428 = scalar_lea.sflag [#allocation5], %s427
        %s429 = sand.u32 %s313, 1
        %s430 = smul.addr %s429, 8
        %s431 = scalar_lea.vmem [#allocation4], %s430
        %p432 = scmp.lt.s32.totalorder %s27, 3
        %s433 = scalar_select %p432, %s27, 3
        %s434 = smul.addr %s433, 8
        %s435 = scalar_lea.vmem %s0, %s434
        %v437 = vld [vmem:[%s435] sm:$0xff]
        %v438 = vld [vmem:[%s1] sm:$0x1]
        %v439 = vld [vmem:[%s2] sm:$0x1]
        %vm440 = vcmask 261120
        %v441 = vsel %vm440, %v437, 0.0
        %442 = vadd.xlane.f32.xlu0 %v441
        %v443 = vpop.xlane.xlu0 %442
        %v444 = vrcp.pop 32.0
        %v445 = vmul.f32 %v443, %v444
        %v446 = vsub.f32 %v437, %v445
        %v447 = vmul.f32 %v446, %v446
        %v448 = vsel %vm440, %v447, 0.0
        %449 = vadd.xlane.f32.xlu0 %v448
        %v450 = vpop.xlane.xlu0 %449
        %v451 = vmul.f32 %v450, %v444
        %v452 = vadd.f32 %v451, 1e-05
        %v453 = vrsqrt.pop %v452
        %v454 = vmul.f32 %v446, %v453
        %v456 = vlaneseq
        %v457 = vshrl.u32 %v456, 7
        %v458 = vsub.s32 0, %v457
        %v459 = vrot.slane %v438, %v458
        %v461 = vmul.f32 %v454, %v459
        %v463 = vlaneseq
        %v464 = vshrl.u32 %v463, 7
        %v465 = vsub.s32 0, %v464
        %v466 = vrot.slane %v439, %v465
        %v468 = vadd.f32 %v461, %v466
        %v469 = vpack.c.bf16 %v468, %v468
        %v470 = vld [vmem:[%s3] sm:$0xf]
        %v471 = vld [vmem:[%s3 + $0x4] sm:$0xf]
        %v472 = vld [vmem:[%s3 + $0x8] sm:$0xf]
        %v473 = vld [vmem:[%s3 + $0xc] sm:$0xf]
        %v474 = vld [vmem:[%s4] sm:$0x1]
        %v476 = vlaneseq
        %v477 = vshrl.u32 %v476, 7
        %v478 = vsub.s32 0, %v477
        %v479 = vrot.slane %v474, %v478
        %v485 = vunpack.c.l.b16 %v470
        %v486 = vunpack.c.l.b16 %v471
        %v487 = vunpack.c.l.b16 %v472
        %v488 = vunpack.c.l.b16 %v473
        %v489 = vpack.c.b16 %v486, %v485
        %v490 = vpack.c.b16 %v488, %v487
        %v494 = vsel %vm440, %v469, 0
        %496 = vmatprep.subr.bf16.mxu0 0
        %497 = vmatpush1.bf16.msra.mxu0 %v489
        %498 = vmatprep.subr.bf16.mxu0 0
        %499 = vmatpush1.bf16.msra.mxu0 %v490
        %500 = vmatprep.subr.bf16.mxu0 0
        %501 = vmatpush1.bf16.msra.mxu0 0
        %502 = vmatprep.subr.bf16.mxu0 0
        %503 = vmatpush1.bf16.msra.mxu0 0
        %504 = vmatprep.subr.bf16.mxu0 0
        %505 = vmatpush1.bf16.msra.mxu0 0
        %506 = vmatprep.subr.bf16.mxu0 0
        %507 = vmatpush1.bf16.msra.mxu0 0
        %508 = vmatprep.subr.bf16.mxu0 0
        %509 = vmatpush1.bf16.msra.mxu0 0
        %510 = vmatprep.subr.bf16.mxu0 0
        %511 = vmatpush1.bf16.msra.mxu0 0
        %512 = vmatprep.subr.bf16.mxu0 0
        %513 = vmatpush1.bf16.msra.mxu0 0
        %514 = vmatprep.subr.bf16.mxu0 0
        %515 = vmatpush1.bf16.msra.mxu0 0
        %516 = vmatprep.subr.bf16.mxu0 0
        %517 = vmatpush1.bf16.msra.mxu0 0
        %518 = vmatprep.subr.bf16.mxu0 0
        %519 = vmatpush1.bf16.msra.mxu0 0
        %520 = vmatprep.subr.bf16.mxu0 0
        %521 = vmatpush1.bf16.msra.mxu0 0
        %522 = vmatprep.subr.bf16.mxu0 0
        %523 = vmatpush1.bf16.msra.mxu0 0
        %524 = vmatprep.subr.bf16.mxu0 0
        %525 = vmatpush1.bf16.msra.mxu0 0
        %526 = vmatprep.subr.bf16.mxu0 0
        %527 = vmatpush1.bf16.msra.mxu0 0
        %528 = vmatprep.mubr.bf16.mxu0 0
        %529 = vmatmul.mubr.bf16.gmra.mrb[0].mxu0 %v494
        %v530 = vpop.f32.mrb[0].mxu0
        %v531 = vadd.f32 %v479, %v530
        %v532 = vpop.f32.mrb[0].mxu0
        %v533 = vpop.f32.mrb[0].mxu0
        %v534 = vpop.f32.mrb[0].mxu0
        %535 = vdwg.mxu0
        %v536 = vpack.c.bf16 %v531, %v531
        %vm537 = vcmask 781312
        %538 = vst.msk [vmem:[#allocation2] sm:$0xf] %vm537, %v536
        %v539 = vlaneseq
        %v540 = vshrl.u32 %v539, 7
        %v541 = vlaneseq
        %v542 = vand.u32 %v541, 127
        %vm543 = vcmp.gt.s32.totalorder %v542, %v540
        %v544 = vsel %vm543, -1e+30, 0.0
        %v545 = vld [vmem:[#allocation2] sm:$0xf]
        %v547 = vunpack.c.l.b16 %v545
        %v548 = vpack.c.b16 %v547, %v547
        %549 = vrot.lane.b32.xlu0 %v548, 96
        %v550 = vpop.permute.xlu0 %549
        %vm551 = vcmask 64512
        %v553 = vsel %vm551, %v545, 0
        %v556 = vsel %vm551, %v550, 0
        %558 = vmatprep.subr.bf16.mxu0 0
        %559 = vmatpush1.bf16.xpose.msra.mxu0 %v556
        %560 = vmatprep.subr.bf16.mxu0 0
        %561 = vmatpush1.bf16.xpose.msra.mxu0 0
        %562 = vmatprep.subr.bf16.mxu0 0
        %563 = vmatpush1.bf16.xpose.msra.mxu0 0
        %564 = vmatprep.subr.bf16.mxu0 0
        %565 = vmatpush1.bf16.xpose.msra.mxu0 0
        %566 = vmatprep.subr.bf16.mxu0 0
        %567 = vmatpush1.bf16.xpose.msra.mxu0 0
        %568 = vmatprep.subr.bf16.mxu0 0
        %569 = vmatpush1.bf16.xpose.msra.mxu0 0
        %570 = vmatprep.subr.bf16.mxu0 0
        %571 = vmatpush1.bf16.xpose.msra.mxu0 0
        %572 = vmatprep.subr.bf16.mxu0 0
        %573 = vmatpush1.bf16.xpose.msra.mxu0 0
        %574 = vmatprep.subr.bf16.mxu0 0
        %575 = vmatpush1.bf16.xpose.msra.mxu0 0
        %576 = vmatprep.subr.bf16.mxu0 0
        %577 = vmatpush1.bf16.xpose.msra.mxu0 0
        %578 = vmatprep.subr.bf16.mxu0 0
        %579 = vmatpush1.bf16.xpose.msra.mxu0 0
        %580 = vmatprep.subr.bf16.mxu0 0
        %581 = vmatpush1.bf16.xpose.msra.mxu0 0
        %582 = vmatprep.subr.bf16.mxu0 0
        %583 = vmatpush1.bf16.xpose.msra.mxu0 0
        %584 = vmatprep.subr.bf16.mxu0 0
        %585 = vmatpush1.bf16.xpose.msra.mxu0 0
        %586 = vmatprep.subr.bf16.mxu0 0
        %587 = vmatpush1.bf16.xpose.msra.mxu0 0
        %588 = vmatprep.subr.bf16.mxu0 0
        %589 = vmatpush1.bf16.xpose.msra.mxu0 0
        %590 = vmatprep.mubr.bf16.mxu0 0
        %591 = vmatmul.mubr.bf16.gmra.mrb[0].mxu0 %v553
        %v592 = vpop.f32.mrb[0].mxu0
        %v593 = vadd.f32 %v544, %v592
        %v594 = vpop.f32.mrb[0].mxu0
        %v595 = vpop.f32.mrb[0].mxu0
        %v596 = vpop.f32.mrb[0].mxu0
        %597 = vdwg.mxu0
        %v598 = vsel %vm551, %v593, -inf
        %599 = vmax.xlane.f32.xlu0 %v598
        %v600 = vpop.xlane.xlu0 %599
        %v601 = vsub.f32 %v593, %v600
        %v602 = vmul.f32 %v601, 1.442695
        %v603 = vpow.pop %v602
        %v604 = vsel %vm551, %v603, 0.0
        %605 = vadd.xlane.f32.xlu0 %v604
        %v606 = vpop.xlane.xlu0 %605
        %v607 = vrcp.pop %v606
        %v608 = vmul.f32 %v603, %v607
        %v609 = vpack.c.bf16 %v608, %v608
        %610 = vrot.lane.b32.xlu0 %v548, 64
        %v611 = vpop.permute.xlu0 %610
        %v613 = vsel %vm551, %v609, 0
        %vm615 = vcmask 1043456
        %v617 = vsel %vm615, %v611, 0
        %619 = vmatprep.subr.bf16.mxu0 0
        %620 = vmatpush1.bf16.msra.mxu0 %v617
        %621 = vmatprep.subr.bf16.mxu0 0
        %622 = vmatpush1.bf16.msra.mxu0 0
        %623 = vmatprep.subr.bf16.mxu0 0
        %624 = vmatpush1.bf16.msra.mxu0 0
        %625 = vmatprep.subr.bf16.mxu0 0
        %626 = vmatpush1.bf16.msra.mxu0 0
        %627 = vmatprep.subr.bf16.mxu0 0
        %628 = vmatpush1.bf16.msra.mxu0 0
        %629 = vmatprep.subr.bf16.mxu0 0
        %630 = vmatpush1.bf16.msra.mxu0 0
        %631 = vmatprep.subr.bf16.mxu0 0
        %632 = vmatpush1.bf16.msra.mxu0 0
        %633 = vmatprep.subr.bf16.mxu0 0
        %634 = vmatpush1.bf16.msra.mxu0 0
        %635 = vmatprep.subr.bf16.mxu0 0
        %636 = vmatpush1.bf16.msra.mxu0 0
        %637 = vmatprep.subr.bf16.mxu0 0
        %638 = vmatpush1.bf16.msra.mxu0 0
        %639 = vmatprep.subr.bf16.mxu0 0
        %640 = vmatpush1.bf16.msra.mxu0 0
        %641 = vmatprep.subr.bf16.mxu0 0
        %642 = vmatpush1.bf16.msra.mxu0 0
        %643 = vmatprep.subr.bf16.mxu0 0
        %644 = vmatpush1.bf16.msra.mxu0 0
        %645 = vmatprep.subr.bf16.mxu0 0
        %646 = vmatpush1.bf16.msra.mxu0 0
        %647 = vmatprep.subr.bf16.mxu0 0
        %648 = vmatpush1.bf16.msra.mxu0 0
        %649 = vmatprep.subr.bf16.mxu0 0
        %650 = vmatpush1.bf16.msra.mxu0 0
        %651 = vmatprep.mubr.bf16.mxu0 0
        %652 = vmatmul.mubr.bf16.gmra.mrb[0].mxu0 %v613
        %v653 = vpop.f32.mrb[0].mxu0
        %v654 = vadd.f32 0.0, %v653
        %v655 = vpop.f32.mrb[0].mxu0
        %v656 = vpop.f32.mrb[0].mxu0
        %v657 = vpop.f32.mrb[0].mxu0
        %658 = vdwg.mxu0
        %v659 = vpack.c.bf16 %v654, %v654
        %vm660 = vcmask 60416
        %661 = vst.msk [vmem:[#allocation3] sm:$0xf] %vm660, %v659
        %v662 = vld [vmem:[#allocation2] sm:$0xf]
        %v664 = vunpack.c.l.b16 %v662
        %v665 = vpack.c.b16 %v664, %v664
        %666 = vrot.lane.b32.xlu0 %v665, 120
        %v667 = vpop.permute.xlu0 %666
        %668 = vrot.lane.b32.xlu0 %v665, 88
        %v669 = vpop.permute.xlu0 %668
        %v671 = vsel %vm551, %v667, 0
        %v674 = vsel %vm551, %v669, 0
        %676 = vmatprep.subr.bf16.mxu0 0
        %677 = vmatpush1.bf16.xpose.msra.mxu0 %v674
        %678 = vmatprep.subr.bf16.mxu0 0
        %679 = vmatpush1.bf16.xpose.msra.mxu0 0
        %680 = vmatprep.subr.bf16.mxu0 0
        %681 = vmatpush1.bf16.xpose.msra.mxu0 0
        %682 = vmatprep.subr.bf16.mxu0 0
        %683 = vmatpush1.bf16.xpose.msra.mxu0 0
        %684 = vmatprep.subr.bf16.mxu0 0
        %685 = vmatpush1.bf16.xpose.msra.mxu0 0
        %686 = vmatprep.subr.bf16.mxu0 0
        %687 = vmatpush1.bf16.xpose.msra.mxu0 0
        %688 = vmatprep.subr.bf16.mxu0 0
        %689 = vmatpush1.bf16.xpose.msra.mxu0 0
        %690 = vmatprep.subr.bf16.mxu0 0
        %691 = vmatpush1.bf16.xpose.msra.mxu0 0
        %692 = vmatprep.subr.bf16.mxu0 0
        %693 = vmatpush1.bf16.xpose.msra.mxu0 0
        %694 = vmatprep.subr.bf16.mxu0 0
        %695 = vmatpush1.bf16.xpose.msra.mxu0 0
        %696 = vmatprep.subr.bf16.mxu0 0
        %697 = vmatpush1.bf16.xpose.msra.mxu0 0
        %698 = vmatprep.subr.bf16.mxu0 0
        %699 = vmatpush1.bf16.xpose.msra.mxu0 0
        %700 = vmatprep.subr.bf16.mxu0 0
        %701 = vmatpush1.bf16.xpose.msra.mxu0 0
        %702 = vmatprep.subr.bf16.mxu0 0
        %703 = vmatpush1.bf16.xpose.msra.mxu0 0
        %704 = vmatprep.subr.bf16.mxu0 0
        %705 = vmatpush1.bf16.xpose.msra.mxu0 0
        %706 = vmatprep.subr.bf16.mxu0 0
        %707 = vmatpush1.bf16.xpose.msra.mxu0 0
        %708 = vmatprep.mubr.bf16.mxu0 0
        %709 = vmatmul.mubr.bf16.gmra.mrb[0].mxu0 %v671
        %v710 = vpop.f32.mrb[0].mxu0
        %v711 = vadd.f32 %v544, %v710
        %v712 = vpop.f32.mrb[0].mxu0
        %v713 = vpop.f32.mrb[0].mxu0
        %v714 = vpop.f32.mrb[0].mxu0
        %715 = vdwg.mxu0
        %v716 = vsel %vm551, %v711, -inf
        %717 = vmax.xlane.f32.xlu0 %v716
        %v718 = vpop.xlane.xlu0 %717
        %v719 = vsub.f32 %v711, %v718
        %v720 = vmul.f32 %v719, 1.442695
        %v721 = vpow.pop %v720
        %v722 = vsel %vm551, %v721, 0.0
        %723 = vadd.xlane.f32.xlu0 %v722
        %v724 = vpop.xlane.xlu0 %723
        %v725 = vrcp.pop %v724
        %v726 = vmul.f32 %v721, %v725
        %v727 = vpack.c.bf16 %v726, %v726
        %728 = vrot.lane.b32.xlu0 %v665, 56
        %v729 = vpop.permute.xlu0 %728
        %v731 = vsel %vm551, %v727, 0
        %v734 = vsel %vm615, %v729, 0
        %736 = vmatprep.subr.bf16.mxu0 0
        %737 = vmatpush1.bf16.msra.mxu0 %v734
        %738 = vmatprep.subr.bf16.mxu0 0
        %739 = vmatpush1.bf16.msra.mxu0 0
        %740 = vmatprep.subr.bf16.mxu0 0
        %741 = vmatpush1.bf16.msra.mxu0 0
        %742 = vmatprep.subr.bf16.mxu0 0
        %743 = vmatpush1.bf16.msra.mxu0 0
        %744 = vmatprep.subr.bf16.mxu0 0
        %745 = vmatpush1.bf16.msra.mxu0 0
        %746 = vmatprep.subr.bf16.mxu0 0
        %747 = vmatpush1.bf16.msra.mxu0 0
        %748 = vmatprep.subr.bf16.mxu0 0
        %749 = vmatpush1.bf16.msra.mxu0 0
        %750 = vmatprep.subr.bf16.mxu0 0
        %751 = vmatpush1.bf16.msra.mxu0 0
        %752 = vmatprep.subr.bf16.mxu0 0
        %753 = vmatpush1.bf16.msra.mxu0 0
        %754 = vmatprep.subr.bf16.mxu0 0
        %755 = vmatpush1.bf16.msra.mxu0 0
        %756 = vmatprep.subr.bf16.mxu0 0
        %757 = vmatpush1.bf16.msra.mxu0 0
        %758 = vmatprep.subr.bf16.mxu0 0
        %759 = vmatpush1.bf16.msra.mxu0 0
        %760 = vmatprep.subr.bf16.mxu0 0
        %761 = vmatpush1.bf16.msra.mxu0 0
        %762 = vmatprep.subr.bf16.mxu0 0
        %763 = vmatpush1.bf16.msra.mxu0 0
        %764 = vmatprep.subr.bf16.mxu0 0
        %765 = vmatpush1.bf16.msra.mxu0 0
        %766 = vmatprep.subr.bf16.mxu0 0
        %767 = vmatpush1.bf16.msra.mxu0 0
        %768 = vmatprep.mubr.bf16.mxu0 0
        %769 = vmatmul.mubr.bf16.gmra.mrb[0].mxu0 %v731
        %v770 = vpop.f32.mrb[0].mxu0
        %v771 = vadd.f32 0.0, %v770
        %v772 = vpop.f32.mrb[0].mxu0
        %v773 = vpop.f32.mrb[0].mxu0
        %v774 = vpop.f32.mrb[0].mxu0
        %775 = vdwg.mxu0
        %v776 = vpack.c.bf16 %v771, %v771
        %v778 = vunpack.c.l.b16 %v776
        %v779 = vpack.c.b16 %v778, %v778
        %780 = vrot.lane.b32.xlu0 %v779, 8
        %v781 = vpop.permute.xlu0 %780
        %vm783 = vcmask 126016
        %784 = vst.msk [vmem:[#allocation3] sm:$0xf] %vm783, %v781
        %v785 = vld [vmem:[#allocation2] sm:$0xf]
        %v787 = vunpack.c.l.b16 %v785
        %v788 = vpack.c.b16 %v787, %v787
        %789 = vrot.lane.b32.xlu0 %v788, 112
        %v790 = vpop.permute.xlu0 %789
        %791 = vrot.lane.b32.xlu0 %v788, 80
        %v792 = vpop.permute.xlu0 %791
        %v794 = vsel %vm551, %v790, 0
        %v797 = vsel %vm551, %v792, 0
        %799 = vmatprep.subr.bf16.mxu0 0
        %800 = vmatpush1.bf16.xpose.msra.mxu0 %v797
        %801 = vmatprep.subr.bf16.mxu0 0
        %802 = vmatpush1.bf16.xpose.msra.mxu0 0
        %803 = vmatprep.subr.bf16.mxu0 0
        %804 = vmatpush1.bf16.xpose.msra.mxu0 0
        %805 = vmatprep.subr.bf16.mxu0 0
        %806 = vmatpush1.bf16.xpose.msra.mxu0 0
        %807 = vmatprep.subr.bf16.mxu0 0
        %808 = vmatpush1.bf16.xpose.msra.mxu0 0
        %809 = vmatprep.subr.bf16.mxu0 0
        %810 = vmatpush1.bf16.xpose.msra.mxu0 0
        %811 = vmatprep.subr.bf16.mxu0 0
        %812 = vmatpush1.bf16.xpose.msra.mxu0 0
        %813 = vmatprep.subr.bf16.mxu0 0
        %814 = vmatpush1.bf16.xpose.msra.mxu0 0
        %815 = vmatprep.subr.bf16.mxu0 0
        %816 = vmatpush1.bf16.xpose.msra.mxu0 0
        %817 = vmatprep.subr.bf16.mxu0 0
        %818 = vmatpush1.bf16.xpose.msra.mxu0 0
        %819 = vmatprep.subr.bf16.mxu0 0
        %820 = vmatpush1.bf16.xpose.msra.mxu0 0
        %821 = vmatprep.subr.bf16.mxu0 0
        %822 = vmatpush1.bf16.xpose.msra.mxu0 0
        %823 = vmatprep.subr.bf16.mxu0 0
        %824 = vmatpush1.bf16.xpose.msra.mxu0 0
        %825 = vmatprep.subr.bf16.mxu0 0
        %826 = vmatpush1.bf16.xpose.msra.mxu0 0
        %827 = vmatprep.subr.bf16.mxu0 0
        %828 = vmatpush1.bf16.xpose.msra.mxu0 0
        %829 = vmatprep.subr.bf16.mxu0 0
        %830 = vmatpush1.bf16.xpose.msra.mxu0 0
        %831 = vmatprep.mubr.bf16.mxu0 0
        %832 = vmatmul.mubr.bf16.gmra.mrb[0].mxu0 %v794
        %v833 = vpop.f32.mrb[0].mxu0
        %v834 = vadd.f32 %v544, %v833
        %v835 = vpop.f32.mrb[0].mxu0
        %v836 = vpop.f32.mrb[0].mxu0
        %v837 = vpop.f32.mrb[0].mxu0
        %838 = vdwg.mxu0
        %v839 = vsel %vm551, %v834, -inf
        %840 = vmax.xlane.f32.xlu0 %v839
        %v841 = vpop.xlane.xlu0 %840
        %v842 = vsub.f32 %v834, %v841
        %v843 = vmul.f32 %v842, 1.442695
        %v844 = vpow.pop %v843
        %v845 = vsel %vm551, %v844, 0.0
        %846 = vadd.xlane.f32.xlu0 %v845
        %v847 = vpop.xlane.xlu0 %846
        %v848 = vrcp.pop %v847
        %v849 = vmul.f32 %v844, %v848
        %v850 = vpack.c.bf16 %v849, %v849
        %851 = vrot.lane.b32.xlu0 %v788, 48
        %v852 = vpop.permute.xlu0 %851
        %v854 = vsel %vm551, %v850, 0
        %v857 = vsel %vm615, %v852, 0
        %859 = vmatprep.subr.bf16.mxu0 0
        %860 = vmatpush1.bf16.msra.mxu0 %v857
        %861 = vmatprep.subr.bf16.mxu0 0
        %862 = vmatpush1.bf16.msra.mxu0 0
        %863 = vmatprep.subr.bf16.mxu0 0
        %864 = vmatpush1.bf16.msra.mxu0 0
        %865 = vmatprep.subr.bf16.mxu0 0
        %866 = vmatpush1.bf16.msra.mxu0 0
        %867 = vmatprep.subr.bf16.mxu0 0
        %868 = vmatpush1.bf16.msra.mxu0 0
        %869 = vmatprep.subr.bf16.mxu0 0
        %870 = vmatpush1.bf16.msra.mxu0 0
        %871 = vmatprep.subr.bf16.mxu0 0
        %872 = vmatpush1.bf16.msra.mxu0 0
        %873 = vmatprep.subr.bf16.mxu0 0
        %874 = vmatpush1.bf16.msra.mxu0 0
        %875 = vmatprep.subr.bf16.mxu0 0
        %876 = vmatpush1.bf16.msra.mxu0 0
        %877 = vmatprep.subr.bf16.mxu0 0
        %878 = vmatpush1.bf16.msra.mxu0 0
        %879 = vmatprep.subr.bf16.mxu0 0
        %880 = vmatpush1.bf16.msra.mxu0 0
        %881 = vmatprep.subr.bf16.mxu0 0
        %882 = vmatpush1.bf16.msra.mxu0 0
        %883 = vmatprep.subr.bf16.mxu0 0
        %884 = vmatpush1.bf16.msra.mxu0 0
        %885 = vmatprep.subr.bf16.mxu0 0
        %886 = vmatpush1.bf16.msra.mxu0 0
        %887 = vmatprep.subr.bf16.mxu0 0
        %888 = vmatpush1.bf16.msra.mxu0 0
        %889 = vmatprep.subr.bf16.mxu0 0
        %890 = vmatpush1.bf16.msra.mxu0 0
        %891 = vmatprep.mubr.bf16.mxu0 0
        %892 = vmatmul.mubr.bf16.gmra.mrb[0].mxu0 %v854
        %v893 = vpop.f32.mrb[0].mxu0
        %v894 = vadd.f32 0.0, %v893
        %v895 = vpop.f32.mrb[0].mxu0
        %v896 = vpop.f32.mrb[0].mxu0
        %v897 = vpop.f32.mrb[0].mxu0
        %898 = vdwg.mxu0
        %v899 = vpack.c.bf16 %v894, %v894
        %v901 = vunpack.c.l.b16 %v899
        %v902 = vpack.c.b16 %v901, %v901
        %903 = vrot.lane.b32.xlu0 %v902, 16
        %v904 = vpop.permute.xlu0 %903
        %vm906 = vcmask 191616
        %907 = vst.msk [vmem:[#allocation3] sm:$0xf] %vm906, %v904
        %v908 = vld [vmem:[#allocation2] sm:$0xf]
        %v910 = vunpack.c.l.b16 %v908
        %v911 = vpack.c.b16 %v910, %v910
        %912 = vrot.lane.b32.xlu0 %v911, 104
        %v913 = vpop.permute.xlu0 %912
        %914 = vrot.lane.b32.xlu0 %v911, 72
        %v915 = vpop.permute.xlu0 %914
        %v917 = vsel %vm551, %v913, 0
        %v920 = vsel %vm551, %v915, 0
        %922 = vmatprep.subr.bf16.mxu0 0
        %923 = vmatpush1.bf16.xpose.msra.mxu0 %v920
        %924 = vmatprep.subr.bf16.mxu0 0
        %925 = vmatpush1.bf16.xpose.msra.mxu0 0
        %926 = vmatprep.subr.bf16.mxu0 0
        %927 = vmatpush1.bf16.xpose.msra.mxu0 0
        %928 = vmatprep.subr.bf16.mxu0 0
        %929 = vmatpush1.bf16.xpose.msra.mxu0 0
        %930 = vmatprep.subr.bf16.mxu0 0
        %931 = vmatpush1.bf16.xpose.msra.mxu0 0
        %932 = vmatprep.subr.bf16.mxu0 0
        %933 = vmatpush1.bf16.xpose.msra.mxu0 0
        %934 = vmatprep.subr.bf16.mxu0 0
        %935 = vmatpush1.bf16.xpose.msra.mxu0 0
        %936 = vmatprep.subr.bf16.mxu0 0
        %937 = vmatpush1.bf16.xpose.msra.mxu0 0
        %938 = vmatprep.subr.bf16.mxu0 0
        %939 = vmatpush1.bf16.xpose.msra.mxu0 0
        %940 = vmatprep.subr.bf16.mxu0 0
        %941 = vmatpush1.bf16.xpose.msra.mxu0 0
        %942 = vmatprep.subr.bf16.mxu0 0
        %943 = vmatpush1.bf16.xpose.msra.mxu0 0
        %944 = vmatprep.subr.bf16.mxu0 0
        %945 = vmatpush1.bf16.xpose.msra.mxu0 0
        %946 = vmatprep.subr.bf16.mxu0 0
        %947 = vmatpush1.bf16.xpose.msra.mxu0 0
        %948 = vmatprep.subr.bf16.mxu0 0
        %949 = vmatpush1.bf16.xpose.msra.mxu0 0
        %950 = vmatprep.subr.bf16.mxu0 0
        %951 = vmatpush1.bf16.xpose.msra.mxu0 0
        %952 = vmatprep.subr.bf16.mxu0 0
        %953 = vmatpush1.bf16.xpose.msra.mxu0 0
        %954 = vmatprep.mubr.bf16.mxu0 0
        %955 = vmatmul.mubr.bf16.gmra.mrb[0].mxu0 %v917
        %v956 = vpop.f32.mrb[0].mxu0
        %v957 = vadd.f32 %v544, %v956
        %v958 = vpop.f32.mrb[0].mxu0
        %v959 = vpop.f32.mrb[0].mxu0
        %v960 = vpop.f32.mrb[0].mxu0
        %961 = vdwg.mxu0
        %v962 = vsel %vm551, %v957, -inf
        %963 = vmax.xlane.f32.xlu0 %v962
        %v964 = vpop.xlane.xlu0 %963
        %v965 = vsub.f32 %v957, %v964
        %v966 = vmul.f32 %v965, 1.442695
        %v967 = vpow.pop %v966
        %v968 = vsel %vm551, %v967, 0.0
        %969 = vadd.xlane.f32.xlu0 %v968
        %v970 = vpop.xlane.xlu0 %969
        %v971 = vrcp.pop %v970
        %v972 = vmul.f32 %v967, %v971
        %v973 = vpack.c.bf16 %v972, %v972
        %974 = vrot.lane.b32.xlu0 %v911, 40
        %v975 = vpop.permute.xlu0 %974
        %v977 = vsel %vm551, %v973, 0
        %v980 = vsel %vm615, %v975, 0
        %982 = vmatprep.subr.bf16.mxu0 0
        %983 = vmatpush1.bf16.msra.mxu0 %v980
        %984 = vmatprep.subr.bf16.mxu0 0
        %985 = vmatpush1.bf16.msra.mxu0 0
        %986 = vmatprep.subr.bf16.mxu0 0
        %987 = vmatpush1.bf16.msra.mxu0 0
        %988 = vmatprep.subr.bf16.mxu0 0
        %989 = vmatpush1.bf16.msra.mxu0 0
        %990 = vmatprep.subr.bf16.mxu0 0
        %991 = vmatpush1.bf16.msra.mxu0 0
        %992 = vmatprep.subr.bf16.mxu0 0
        %993 = vmatpush1.bf16.msra.mxu0 0
        %994 = vmatprep.subr.bf16.mxu0 0
        %995 = vmatpush1.bf16.msra.mxu0 0
        %996 = vmatprep.subr.bf16.mxu0 0
        %997 = vmatpush1.bf16.msra.mxu0 0
        %998 = vmatprep.subr.bf16.mxu0 0
        %999 = vmatpush1.bf16.msra.mxu0 0
        %1000 = vmatprep.subr.bf16.mxu0 0
        %1001 = vmatpush1.bf16.msra.mxu0 0
        %1002 = vmatprep.subr.bf16.mxu0 0
        %1003 = vmatpush1.bf16.msra.mxu0 0
        %1004 = vmatprep.subr.bf16.mxu0 0
        %1005 = vmatpush1.bf16.msra.mxu0 0
        %1006 = vmatprep.subr.bf16.mxu0 0
        %1007 = vmatpush1.bf16.msra.mxu0 0
        %1008 = vmatprep.subr.bf16.mxu0 0
        %1009 = vmatpush1.bf16.msra.mxu0 0
        %1010 = vmatprep.subr.bf16.mxu0 0
        %1011 = vmatpush1.bf16.msra.mxu0 0
        %1012 = vmatprep.subr.bf16.mxu0 0
        %1013 = vmatpush1.bf16.msra.mxu0 0
        %1014 = vmatprep.mubr.bf16.mxu0 0
        %1015 = vmatmul.mubr.bf16.gmra.mrb[0].mxu0 %v977
        %v1016 = vpop.f32.mrb[0].mxu0
        %v1017 = vadd.f32 0.0, %v1016
        %v1018 = vpop.f32.mrb[0].mxu0
        %v1019 = vpop.f32.mrb[0].mxu0
        %v1020 = vpop.f32.mrb[0].mxu0
        %1021 = vdwg.mxu0
        %v1022 = vpack.c.bf16 %v1017, %v1017
        %v1024 = vunpack.c.l.b16 %v1022
        %v1025 = vpack.c.b16 %v1024, %v1024
        %1026 = vrot.lane.b32.xlu0 %v1025, 24
        %v1027 = vpop.permute.xlu0 %1026
        %vm1029 = vcmask 257216
        %1030 = vst.msk [vmem:[#allocation3] sm:$0xf] %vm1029, %v1027
        %v1031 = vld [vmem:[#allocation3] sm:$0xf]
        %v1032 = vld [vmem:[%s5] sm:$0xf]
        %v1033 = vld [vmem:[%s5 + $0x4] sm:$0xf]
        %v1034 = vld [vmem:[%s5 + $0x8] sm:$0xf]
        %v1035 = vld [vmem:[%s5 + $0xc] sm:$0xf]
        %v1036 = vld [vmem:[%s6] sm:$0x1]
        %v1038 = vlaneseq
        %v1039 = vshrl.u32 %v1038, 7
        %v1040 = vsub.s32 0, %v1039
        %v1041 = vrot.slane %v1036, %v1040
        %v1047 = vunpack.c.l.b16 %v1032
        %v1048 = vunpack.c.l.b16 %v1033
        %v1049 = vunpack.c.l.b16 %v1034
        %v1050 = vunpack.c.l.b16 %v1035
        %v1051 = vpack.c.b16 %v1048, %v1047
        %v1052 = vpack.c.b16 %v1050, %v1049
        %v1056 = vsel %vm440, %v1031, 0
        %1058 = vmatprep.subr.bf16.mxu0 0
        %1059 = vmatpush1.bf16.msra.mxu0 %v1051
        %1060 = vmatprep.subr.bf16.mxu0 0
        %1061 = vmatpush1.bf16.msra.mxu0 %v1052
        %1062 = vmatprep.subr.bf16.mxu0 0
        %1063 = vmatpush1.bf16.msra.mxu0 0
        %1064 = vmatprep.subr.bf16.mxu0 0
        %1065 = vmatpush1.bf16.msra.mxu0 0
        %1066 = vmatprep.subr.bf16.mxu0 0
        %1067 = vmatpush1.bf16.msra.mxu0 0
        %1068 = vmatprep.subr.bf16.mxu0 0
        %1069 = vmatpush1.bf16.msra.mxu0 0
        %1070 = vmatprep.subr.bf16.mxu0 0
        %1071 = vmatpush1.bf16.msra.mxu0 0
        %1072 = vmatprep.subr.bf16.mxu0 0
        %1073 = vmatpush1.bf16.msra.mxu0 0
        %1074 = vmatprep.subr.bf16.mxu0 0
        %1075 = vmatpush1.bf16.msra.mxu0 0
        %1076 = vmatprep.subr.bf16.mxu0 0
        %1077 = vmatpush1.bf16.msra.mxu0 0
        %1078 = vmatprep.subr.bf16.mxu0 0
        %1079 = vmatpush1.bf16.msra.mxu0 0
        %1080 = vmatprep.subr.bf16.mxu0 0
        %1081 = vmatpush1.bf16.msra.mxu0 0
        %1082 = vmatprep.subr.bf16.mxu0 0
        %1083 = vmatpush1.bf16.msra.mxu0 0
        %1084 = vmatprep.subr.bf16.mxu0 0
        %1085 = vmatpush1.bf16.msra.mxu0 0
        %1086 = vmatprep.subr.bf16.mxu0 0
        %1087 = vmatpush1.bf16.msra.mxu0 0
        %1088 = vmatprep.subr.bf16.mxu0 0
        %1089 = vmatpush1.bf16.msra.mxu0 0
        %1090 = vmatprep.mubr.bf16.mxu0 0
        %1091 = vmatmul.mubr.bf16.gmra.mrb[0].mxu0 %v1056
        %v1092 = vpop.f32.mrb[0].mxu0
        %v1093 = vadd.f32 %v1041, %v1092
        %v1094 = vpop.f32.mrb[0].mxu0
        %v1095 = vpop.f32.mrb[0].mxu0
        %v1096 = vpop.f32.mrb[0].mxu0
        %1097 = vdwg.mxu0
        %v1098 = vld [vmem:[%s435] sm:$0xff]
        %v1099 = vadd.f32 %v1093, %v1098
        %v1100 = vld [vmem:[%s7] sm:$0x1]
        %v1101 = vld [vmem:[%s8] sm:$0x1]
        %v1102 = vsel %vm440, %v1099, 0.0
        %1103 = vadd.xlane.f32.xlu0 %v1102
        %v1104 = vpop.xlane.xlu0 %1103
        %v1105 = vmul.f32 %v1104, %v444
        %v1106 = vsub.f32 %v1099, %v1105
        %v1107 = vmul.f32 %v1106, %v1106
        %v1108 = vsel %vm440, %v1107, 0.0
        %1109 = vadd.xlane.f32.xlu0 %v1108
        %v1110 = vpop.xlane.xlu0 %1109
        %v1111 = vmul.f32 %v1110, %v444
        %v1112 = vadd.f32 %v1111, 1e-05
        %v1113 = vrsqrt.pop %v1112
        %v1114 = vmul.f32 %v1106, %v1113
        %v1116 = vlaneseq
        %v1117 = vshrl.u32 %v1116, 7
        %v1118 = vsub.s32 0, %v1117
        %v1119 = vrot.slane %v1100, %v1118
        %v1121 = vmul.f32 %v1114, %v1119
        %v1123 = vlaneseq
        %v1124 = vshrl.u32 %v1123, 7
        %v1125 = vsub.s32 0, %v1124
        %v1126 = vrot.slane %v1101, %v1125
        %v1128 = vadd.f32 %v1121, %v1126
        %v1129 = vpack.c.bf16 %v1128, %v1128
        %v1130 = vld [vmem:[%s9] sm:$0xf]
        %v1131 = vld [vmem:[%s9 + $0x4] sm:$0xf]
        %v1132 = vld [vmem:[%s9 + $0x8] sm:$0xf]
        %v1133 = vld [vmem:[%s9 + $0xc] sm:$0xf]
        %v1134 = vld [vmem:[%s10] sm:$0x1]
        %v1136 = vlaneseq
        %v1137 = vshrl.u32 %v1136, 7
        %v1138 = vsub.s32 0, %v1137
        %v1139 = vrot.slane %v1134, %v1138
        %v1145 = vunpack.c.l.b16 %v1130
        %v1146 = vunpack.c.l.b16 %v1131
        %v1147 = vunpack.c.l.b16 %v1132
        %v1148 = vunpack.c.l.b16 %v1133
        %v1149 = vpack.c.b16 %v1146, %v1145
        %v1150 = vpack.c.b16 %v1148, %v1147
        %v1154 = vsel %vm440, %v1129, 0
        %1156 = vmatprep.subr.bf16.mxu0 0
        %1157 = vmatpush1.bf16.msra.mxu0 %v1149
        %1158 = vmatprep.subr.bf16.mxu0 0
        %1159 = vmatpush1.bf16.msra.mxu0 %v1150
        %1160 = vmatprep.subr.bf16.mxu0 0
        %1161 = vmatpush1.bf16.msra.mxu0 0
        %1162 = vmatprep.subr.bf16.mxu0 0
        %1163 = vmatpush1.bf16.msra.mxu0 0
        %1164 = vmatprep.subr.bf16.mxu0 0
        %1165 = vmatpush1.bf16.msra.mxu0 0
        %1166 = vmatprep.subr.bf16.mxu0 0
        %1167 = vmatpush1.bf16.msra.mxu0 0
        %1168 = vmatprep.subr.bf16.mxu0 0
        %1169 = vmatpush1.bf16.msra.mxu0 0
        %1170 = vmatprep.subr.bf16.mxu0 0
        %1171 = vmatpush1.bf16.msra.mxu0 0
        %1172 = vmatprep.subr.bf16.mxu0 0
        %1173 = vmatpush1.bf16.msra.mxu0 0
        %1174 = vmatprep.subr.bf16.mxu0 0
        %1175 = vmatpush1.bf16.msra.mxu0 0
        %1176 = vmatprep.subr.bf16.mxu0 0
        %1177 = vmatpush1.bf16.msra.mxu0 0
        %1178 = vmatprep.subr.bf16.mxu0 0
        %1179 = vmatpush1.bf16.msra.mxu0 0
        %1180 = vmatprep.subr.bf16.mxu0 0
        %1181 = vmatpush1.bf16.msra.mxu0 0
        %1182 = vmatprep.subr.bf16.mxu0 0
        %1183 = vmatpush1.bf16.msra.mxu0 0
        %1184 = vmatprep.subr.bf16.mxu0 0
        %1185 = vmatpush1.bf16.msra.mxu0 0
        %1186 = vmatprep.subr.bf16.mxu0 0
        %1187 = vmatpush1.bf16.msra.mxu0 0
        %1188 = vmatprep.mubr.bf16.mxu0 0
        %1189 = vmatmul.mubr.bf16.gmra.mrb[0].mxu0 %v1154
        %v1190 = vpop.f32.mrb[0].mxu0
        %v1191 = vadd.f32 %v1139, %v1190
        %v1192 = vpop.f32.mrb[0].mxu0
        %v1193 = vpop.f32.mrb[0].mxu0
        %v1194 = vpop.f32.mrb[0].mxu0
        %1195 = vdwg.mxu0
        %v1196 = vmul.f32 %v1191, 1.702
        %v1197 = vxor.u32 %v1196, 2147483648
        %v1198 = vmul.f32 %v1197, 1.442695
        %v1199 = vpow.pop %v1198
        %v1200 = vadd.f32 %v1199, 1.0
        %v1201 = vrcp.pop %v1200
        %v1202 = vmul.f32 1.0, %v1201
        %v1203 = vmul.f32 %v1191, %v1202
        %v1204 = vpack.c.bf16 %v1203, %v1203
        %v1205 = vld [vmem:[%s11] sm:$0xf]
        %v1206 = vld [vmem:[%s11 + $0x4] sm:$0xf]
        %v1207 = vld [vmem:[%s11 + $0x8] sm:$0xf]
        %v1208 = vld [vmem:[%s11 + $0xc] sm:$0xf]
        %v1209 = vld [vmem:[%s11 + $0x10] sm:$0xf]
        %v1210 = vld [vmem:[%s11 + $0x14] sm:$0xf]
        %v1211 = vld [vmem:[%s11 + $0x18] sm:$0xf]
        %v1212 = vld [vmem:[%s11 + $0x1c] sm:$0xf]
        %v1213 = vld [vmem:[%s11 + $0x20] sm:$0xf]
        %v1214 = vld [vmem:[%s11 + $0x24] sm:$0xf]
        %v1215 = vld [vmem:[%s11 + $0x28] sm:$0xf]
        %v1216 = vld [vmem:[%s11 + $0x2c] sm:$0xf]
        %v1217 = vld [vmem:[%s11 + $0x30] sm:$0xf]
        %v1218 = vld [vmem:[%s11 + $0x34] sm:$0xf]
        %v1219 = vld [vmem:[%s11 + $0x38] sm:$0xf]
        %v1220 = vld [vmem:[%s11 + $0x3c] sm:$0xf]
        %v1221 = vld [vmem:[%s12] sm:$0x1]
        %v1223 = vlaneseq
        %v1224 = vshrl.u32 %v1223, 7
        %v1225 = vsub.s32 0, %v1224
        %v1226 = vrot.slane %v1221, %v1225
        %v1244 = vunpack.c.l.b16 %v1205
        %v1245 = vunpack.c.l.b16 %v1206
        %v1246 = vunpack.c.l.b16 %v1207
        %v1247 = vunpack.c.l.b16 %v1208
        %v1248 = vunpack.c.l.b16 %v1209
        %v1249 = vunpack.c.l.b16 %v1210
        %v1250 = vunpack.c.l.b16 %v1211
        %v1251 = vunpack.c.l.b16 %v1212
        %v1252 = vunpack.c.l.b16 %v1213
        %v1253 = vunpack.c.l.b16 %v1214
        %v1254 = vunpack.c.l.b16 %v1215
        %v1255 = vunpack.c.l.b16 %v1216
        %v1256 = vunpack.c.l.b16 %v1217
        %v1257 = vunpack.c.l.b16 %v1218
        %v1258 = vunpack.c.l.b16 %v1219
        %v1259 = vunpack.c.l.b16 %v1220
        %v1260 = vpack.c.b16 %v1245, %v1244
        %v1261 = vpack.c.b16 %v1247, %v1246
        %v1262 = vpack.c.b16 %v1249, %v1248
        %v1263 = vpack.c.b16 %v1251, %v1250
        %v1264 = vpack.c.b16 %v1253, %v1252
        %v1265 = vpack.c.b16 %v1255, %v1254
        %v1266 = vpack.c.b16 %v1257, %v1256
        %v1267 = vpack.c.b16 %v1259, %v1258
        %1276 = vmatprep.subr.bf16.mxu0 0
        %1277 = vmatpush1.bf16.msra.mxu0 %v1260
        %1278 = vmatprep.subr.bf16.mxu0 0
        %1279 = vmatpush1.bf16.msra.mxu0 %v1261
        %1280 = vmatprep.subr.bf16.mxu0 0
        %1281 = vmatpush1.bf16.msra.mxu0 %v1262
        %1282 = vmatprep.subr.bf16.mxu0 0
        %1283 = vmatpush1.bf16.msra.mxu0 %v1263
        %1284 = vmatprep.subr.bf16.mxu0 0
        %1285 = vmatpush1.bf16.msra.mxu0 %v1264
        %1286 = vmatprep.subr.bf16.mxu0 0
        %1287 = vmatpush1.bf16.msra.mxu0 %v1265
        %1288 = vmatprep.subr.bf16.mxu0 0
        %1289 = vmatpush1.bf16.msra.mxu0 %v1266
        %1290 = vmatprep.subr.bf16.mxu0 0
        %1291 = vmatpush1.bf16.msra.mxu0 %v1267
        %1292 = vmatprep.subr.bf16.mxu0 0
        %1293 = vmatpush1.bf16.msra.mxu0 0
        %1294 = vmatprep.subr.bf16.mxu0 0
        %1295 = vmatpush1.bf16.msra.mxu0 0
        %1296 = vmatprep.subr.bf16.mxu0 0
        %1297 = vmatpush1.bf16.msra.mxu0 0
        %1298 = vmatprep.subr.bf16.mxu0 0
        %1299 = vmatpush1.bf16.msra.mxu0 0
        %1300 = vmatprep.subr.bf16.mxu0 0
        %1301 = vmatpush1.bf16.msra.mxu0 0
        %1302 = vmatprep.subr.bf16.mxu0 0
        %1303 = vmatpush1.bf16.msra.mxu0 0
        %1304 = vmatprep.subr.bf16.mxu0 0
        %1305 = vmatpush1.bf16.msra.mxu0 0
        %1306 = vmatprep.subr.bf16.mxu0 0
        %1307 = vmatpush1.bf16.msra.mxu0 0
        %1308 = vmatprep.mubr.bf16.mxu0 0
        %1309 = vmatmul.mubr.bf16.gmra.mrb[0].mxu0 %v1204
        %v1310 = vpop.f32.mrb[0].mxu0
        %v1311 = vadd.f32 %v1226, %v1310
        %v1312 = vpop.f32.mrb[0].mxu0
        %v1313 = vpop.f32.mrb[0].mxu0
        %v1314 = vpop.f32.mrb[0].mxu0
        %1315 = vdwg.mxu0
        %v1316 = vadd.f32 %v1311, %v1099
        %1317 = vst.msk [vmem:[%s431] sm:$0xff] %vm440, %v1316
        %s1318 = sand.u32 %s313, 1
        %s1319 = scalar_lea.sflag [#allocation5], %s1318
        %s1320 = sand.u32 %s313, 1
        %s1321 = smul.addr %s1320, 8
        %s1322 = scalar_lea.vmem [#allocation4], %s1321
        // Predicated region
        $region73: #{tpu_custom_call.1} parent=71 // pred_check
          %p1323 = pneg %p323
        $region74: #{tpu_custom_call.1} parent=71 // pred_check_branch
          %1325 = sbr.rel (%p1323) target = $region76
        $region75: #{tpu_custom_call.1} parent=71 // pred_region
          %s1327 = ssub.s32 128, 128
          %1328 = vsyncadd %s1319, %s1327
          %s1329 = smul.addr %s27, 128
          %s1330 = scalar_lea.hbm %s13, %s1329
          %s1332 = sshll.u32 %s1322, 4
          %s1333 = int_to_ptr.vmem [resolvable:$true] %s1332
          %1335 = dma.vmem_to_hbm [thread:$0]  %s1333, 128, %s1330, %s1319
        $region76: #{tpu_custom_call.1} parent=71 // pred_fallthru
          _
      $region72: #{tpu_custom_call.1} parent=5 // pred_fallthru
        _
      %p1336 = scmp.le.s32.totalorder 2, %s22
      // Predicated region
      $region77: #{tpu_custom_call.1} parent=5 // pred_check
        %p1337 = pneg %p1336
      $region78: #{tpu_custom_call.1} parent=5 // pred_check_branch
        %1339 = sbr.rel (%p1337) target = $region80
      $region79: #{tpu_custom_call.1} parent=5 // pred_region
        %s1340 = ssub.s32 %s22, 2
        // Predicated region
        $region81: #{tpu_custom_call.1} parent=79 // pred_check
          %p1341 = pneg %p329
        $region82: #{tpu_custom_call.1} parent=79 // pred_check_branch
          %1343 = sbr.rel (%p1341) target = $region84
        $region83: #{tpu_custom_call.1} parent=79 // pred_region
          %s1344 = sand.u32 %s314, 1
          %s1345 = scalar_lea.sflag [#allocation5], %s1344
          %s1346 = sand.u32 %s314, 1
          %s1347 = smul.addr %s1346, 8
          %s1348 = scalar_lea.vmem [#allocation4], %s1347
          %1349 = dma.done %s1345, 128
        $region84: #{tpu_custom_call.1} parent=79 // pred_fallthru
          _
      $region80: #{tpu_custom_call.1} parent=5 // pred_fallthru
        _
    $region6: #{tpu_custom_call.1} parent=1 // loop_footer
      %s26 = sadd.s32 1, %s22
    $region7: #{tpu_custom_call.1} parent=1 // loop_footer_branch
      %21 = sbr.rel target = $region3
    $region8: #{tpu_custom_call.1} parent=1 // loop_exit
      _
    %1350 = vsyncpa [#allocation5], 1
    %s1351 = scalar_lea.sflag [#allocation5], 1
    %1352 = vsyncpa %s1351, 1

// kernel: tpu_custom_call.1
$region0: #{tpu_custom_call.1}
  #allocation0 [shape = 'u32[]', space=smem, size = 0x4, offset = 0x4, fixed_abs, tag = 'smem constant byte address 0x4 - core index']
  #allocation1 [shape = 'u32[144,128]{1,0:T(1,128)}', space=vmem, size = 0x12000, scoped, tag = 'internal scratch']
  #allocation2 [shape = 'bf16[1,8,96]{2,1,0:T(8,128)(2,1)}', space=vmem, size = 0x800, scoped, tag = 'scratch operand']
  #allocation3 [shape = 'bf16[8,32]{1,0:T(8,128)(2,1)}', space=vmem, size = 0x800, scoped, tag = 'scratch operand']
  %s0 = inlined_call_operand.vmem [shape: f32[4,8,32], index: 0, kind: input, shape index: {}]
  %s1 = inlined_call_operand.vmem [shape: f32[1,32], index: 1, kind: input, shape index: {}]
  %s2 = inlined_call_operand.vmem [shape: f32[1,32], index: 2, kind: input, shape index: {}]
  %s3 = inlined_call_operand.vmem [shape: bf16[32,96], index: 3, kind: input, shape index: {}]
  %s4 = inlined_call_operand.vmem [shape: f32[1,96], index: 4, kind: input, shape index: {}]
  %s5 = inlined_call_operand.vmem [shape: bf16[32,32], index: 5, kind: input, shape index: {}]
  %s6 = inlined_call_operand.vmem [shape: f32[1,32], index: 6, kind: input, shape index: {}]
  %s7 = inlined_call_operand.vmem [shape: f32[1,32], index: 7, kind: input, shape index: {}]
  %s8 = inlined_call_operand.vmem [shape: f32[1,32], index: 8, kind: input, shape index: {}]
  %s9 = inlined_call_operand.vmem [shape: bf16[32,128], index: 9, kind: input, shape index: {}]
  %s10 = inlined_call_operand.vmem [shape: f32[1,128], index: 10, kind: input, shape index: {}]
  %s11 = inlined_call_operand.vmem [shape: bf16[128,32], index: 11, kind: input, shape index: {}]
  %s12 = inlined_call_operand.vmem [shape: f32[1,32], index: 12, kind: input, shape index: {}]
  %s13 = inlined_call_operand.hbm [shape: f32[4,8,32], index: 13, kind: output, shape index: {}]
  %s14 = sld [smem:[#allocation0]]
  $region85: #{tpu_custom_call.1} parent=0
    _
  %s16 = ssub.s32 1, %s14
  %s17 = scalar_select 0, %s16, %s14
  $region1: #{tpu_custom_call.1} parent=0
    #allocation4 [shape = 'u8[8192]{0}', space=vmem, size = 0x2000, scoped, tag = 'output window, operand 0']
    #allocation5 [shape = 's32[2]{0}', space=sflag, size = 0x8, scoped, tag = 'scoped memory for tpu_custom_call.1']
    %18 = vsyncpa [#allocation5], 0
    %s19 = scalar_lea.sflag [#allocation5], 1
    %20 = vsyncpa %s19, 0
    loop: start=0, step=1, limit=6
    $region2: #{tpu_custom_call.1} parent=1 // loop_pre_header
      _
    $region3: #{tpu_custom_call.1} parent=1 // loop_header
      %s22 = sphi 0, %s26
      %p23 = scmp.ge.s32.totalorder %s22, 6
      %s32 = sphi 0, %s34
      %s35 = sphi 0, %s32
      %s36 = sphi 0, %s35
      %s52 = sphi 0, %s36
      %s56 = sphi 0, %s56
      %s58 = sphi 0, %s56
      %s59 = sphi 0, %s58
      %s73 = sphi 0, %s59
      %s77 = sphi 0, %s77
      %s79 = sphi 0, %s77
      %s80 = sphi 0, %s79
      %s94 = sphi 0, %s80
      %s98 = sphi 0, %s98
      %s100 = sphi 0, %s98
      %s101 = sphi 0, %s100
      %s115 = sphi 0, %s101
      %s119 = sphi 0, %s119
      %s121 = sphi 0, %s119
      %s122 = sphi 0, %s121
      %s136 = sphi 0, %s122
      %s140 = sphi 0, %s140
      %s142 = sphi 0, %s140
      %s143 = sphi 0, %s142
      %s157 = sphi 0, %s143
      %s161 = sphi 0, %s161
      %s163 = sphi 0, %s161
      %s164 = sphi 0, %s163
      %s178 = sphi 0, %s164
      %s182 = sphi 0, %s182
      %s184 = sphi 0, %s182
      %s185 = sphi 0, %s184
      %s199 = sphi 0, %s185
      %s203 = sphi 0, %s203
      %s205 = sphi 0, %s203
      %s206 = sphi 0, %s205
      %s220 = sphi 0, %s206
      %s224 = sphi 0, %s224
      %s226 = sphi 0, %s224
      %s227 = sphi 0, %s226
      %s241 = sphi 0, %s227
      %s245 = sphi 0, %s245
      %s247 = sphi 0, %s245
      %s248 = sphi 0, %s247
      %s262 = sphi 0, %s248
      %s266 = sphi 0, %s266
      %s268 = sphi 0, %s266
      %s269 = sphi 0, %s268
      %s283 = sphi 0, %s269
      %s287 = sphi 0, %s287
      %s289 = sphi 0, %s287
      %s290 = sphi 0, %s289
      %s304 = sphi 0, %s290
      %s310 = sphi 0, %s312
      %s313 = sphi 0, %s310
      %s314 = sphi 0, %s313
      %s330 = sphi 0, %s314
    $region4: #{tpu_custom_call.1} parent=1 // loop_header_branch
      %25 = sbr.rel (%p23) target = $region8
    $region5: #{tpu_custom_call.1} parent=1 // loop_body
      %s27 = ssub.s32 %s22, 1
      %s28 = ssub.s32 %s22, 2
      %s29 = sadd.s32 %s22, 1
      %s30 = ssub.s32 %s22, %s29
      %p31 = scmp.eq.s32.totalorder %s30, 0
      %s33 = sadd.s32 %s32, 1
      %s34 = scalar_select %p31, %s32, %s33
      %p37 = pneg %p31
      %p38 = scmp.eq.s32.totalorder %s22, 3
      %p39 = por %p37, %p38
      %p40 = scmp.ne.s32.totalorder %s32, %s35
      %p41 = scmp.eq.s32.totalorder %s22, 0
      %p42 = por %p40, %p41
      %p43 = scmp.ne.s32.totalorder %s32, %s35
      %p44 = scmp.eq.s32.totalorder %s27, 3
      %p45 = por %p43, %p44
      %p46 = scmp.ne.s32.totalorder %s35, %s36
      %p47 = scmp.eq.s32.totalorder %s27, 0
      %p48 = por %p46, %p47
      %p49 = scmp.ne.s32.totalorder %s35, %s36
      %p50 = scmp.eq.s32.totalorder %s28, 3
      %p51 = por %p49, %p50
      %p53 = scmp.ne.s32.totalorder %s36, %s52
      %p54 = scmp.eq.s32.totalorder %s28, 0
      %p55 = por %p53, %p54
      %s57 = sadd.s32 %s56, 1
      %p60 = scmp.eq.s32.totalorder %s22, 3
      %p61 = scmp.ne.s32.totalorder %s56, %s58
      %p62 = scmp.eq.s32.totalorder %s22, 0
      %p63 = por %p61, %p62
      %p64 = scmp.ne.s32.totalorder %s56, %s58
      %p65 = scmp.eq.s32.totalorder %s27, 3
      %p66 = por %p64, %p65
      %p67 = scmp.ne.s32.totalorder %s58, %s59
      %p68 = scmp.eq.s32.totalorder %s27, 0
      %p69 = por %p67, %p68
      %p70 = scmp.ne.s32.totalorder %s58, %s59
      %p71 = scmp.eq.s32.totalorder %s28, 3
      %p72 = por %p70, %p71
      %p74 = scmp.ne.s32.totalorder %s59, %s73
      %p75 = scmp.eq.s32.totalorder %s28, 0
      %p76 = por %p74, %p75
      %s78 = sadd.s32 %s77, 1
      %p81 = scmp.eq.s32.totalorder %s22, 3
      %p82 = scmp.ne.s32.totalorder %s77, %s79
      %p83 = scmp.eq.s32.totalorder %s22, 0
      %p84 = por %p82, %p83
      %p85 = scmp.ne.s32.totalorder %s77, %s79
      %p86 = scmp.eq.s32.totalorder %s27, 3
      %p87 = por %p85, %p86
      %p88 = scmp.ne.s32.totalorder %s79, %s80
      %p89 = scmp.eq.s32.totalorder %s27, 0
      %p90 = por %p88, %p89
      %p91 = scmp.ne.s32.totalorder %s79, %s80
      %p92 = scmp.eq.s32.totalorder %s28, 3
      %p93 = por %p91, %p92
      %p95 = scmp.ne.s32.totalorder %s80, %s94
      %p96 = scmp.eq.s32.totalorder %s28, 0
      %p97 = por %p95, %p96
      %s99 = sadd.s32 %s98, 1
      %p102 = scmp.eq.s32.totalorder %s22, 3
      %p103 = scmp.ne.s32.totalorder %s98, %s100
      %p104 = scmp.eq.s32.totalorder %s22, 0
      %p105 = por %p103, %p104
      %p106 = scmp.ne.s32.totalorder %s98, %s100
      %p107 = scmp.eq.s32.totalorder %s27, 3
      %p108 = por %p106, %p107
      %p109 = scmp.ne.s32.totalorder %s100, %s101
      %p110 = scmp.eq.s32.totalorder %s27, 0
      %p111 = por %p109, %p110
      %p112 = scmp.ne.s32.totalorder %s100, %s101
      %p113 = scmp.eq.s32.totalorder %s28, 3
      %p114 = por %p112, %p113
      %p116 = scmp.ne.s32.totalorder %s101, %s115
      %p117 = scmp.eq.s32.totalorder %s28, 0
      %p118 = por %p116, %p117
      %s120 = sadd.s32 %s119, 1
      %p123 = scmp.eq.s32.totalorder %s22, 3
      %p124 = scmp.ne.s32.totalorder %s119, %s121
      %p125 = scmp.eq.s32.totalorder %s22, 0
      %p126 = por %p124, %p125
      %p127 = scmp.ne.s32.totalorder %s119, %s121
      %p128 = scmp.eq.s32.totalorder %s27, 3
      %p129 = por %p127, %p128
      %p130 = scmp.ne.s32.totalorder %s121, %s122
      %p131 = scmp.eq.s32.totalorder %s27, 0
      %p132 = por %p130, %p131
      %p133 = scmp.ne.s32.totalorder %s121, %s122
      %p134 = scmp.eq.s32.totalorder %s28, 3
      %p135 = por %p133, %p134
      %p137 = scmp.ne.s32.totalorder %s122, %s136
      %p138 = scmp.eq.s32.totalorder %s28, 0
      %p139 = por %p137, %p138
      %s141 = sadd.s32 %s140, 1
      %p144 = scmp.eq.s32.totalorder %s22, 3
      %p145 = scmp.ne.s32.totalorder %s140, %s142
      %p146 = scmp.eq.s32.totalorder %s22, 0
      %p147 = por %p145, %p146
      %p148 = scmp.ne.s32.totalorder %s140, %s142
      %p149 = scmp.eq.s32.totalorder %s27, 3
      %p150 = por %p148, %p149
      %p151 = scmp.ne.s32.totalorder %s142, %s143
      %p152 = scmp.eq.s32.totalorder %s27, 0
      %p153 = por %p151, %p152
      %p154 = scmp.ne.s32.totalorder %s142, %s143
      %p155 = scmp.eq.s32.totalorder %s28, 3
      %p156 = por %p154, %p155
      %p158 = scmp.ne.s32.totalorder %s143, %s157
      %p159 = scmp.eq.s32.totalorder %s28, 0
      %p160 = por %p158, %p159
      %s162 = sadd.s32 %s161, 1
      %p165 = scmp.eq.s32.totalorder %s22, 3
      %p166 = scmp.ne.s32.totalorder %s161, %s163
      %p167 = scmp.eq.s32.totalorder %s22, 0
      %p168 = por %p166, %p167
      %p169 = scmp.ne.s32.totalorder %s161, %s163
      %p170 = scmp.eq.s32.totalorder %s27, 3
      %p171 = por %p169, %p170
      %p172 = scmp.ne.s32.totalorder %s163, %s164
      %p173 = scmp.eq.s32.totalorder %s27, 0
      %p174 = por %p172, %p173
      %p175 = scmp.ne.s32.totalorder %s163, %s164
      %p176 = scmp.eq.s32.totalorder %s28, 3
      %p177 = por %p175, %p176
      %p179 = scmp.ne.s32.totalorder %s164, %s178
      %p180 = scmp.eq.s32.totalorder %s28, 0
      %p181 = por %p179, %p180
      %s183 = sadd.s32 %s182, 1
      %p186 = scmp.eq.s32.totalorder %s22, 3
      %p187 = scmp.ne.s32.totalorder %s182, %s184
      %p188 = scmp.eq.s32.totalorder %s22, 0
      %p189 = por %p187, %p188
      %p190 = scmp.ne.s32.totalorder %s182, %s184
      %p191 = scmp.eq.s32.totalorder %s27, 3
      %p192 = por %p190, %p191
      %p193 = scmp.ne.s32.totalorder %s184, %s185
      %p194 = scmp.eq.s32.totalorder %s27, 0
      %p195 = por %p193, %p194
      %p196 = scmp.ne.s32.totalorder %s184, %s185
      %p197 = scmp.eq.s32.totalorder %s28, 3
      %p198 = por %p196, %p197
      %p200 = scmp.ne.s32.totalorder %s185, %s199
      %p201 = scmp.eq.s32.totalorder %s28, 0
      %p202 = por %p200, %p201
      %s204 = sadd.s32 %s203, 1
      %p207 = scmp.eq.s32.totalorder %s22, 3
      %p208 = scmp.ne.s32.totalorder %s203, %s205
      %p209 = scmp.eq.s32.totalorder %s22, 0
      %p210 = por %p208, %p209
      %p211 = scmp.ne.s32.totalorder %s203, %s205
      %p212 = scmp.eq.s32.totalorder %s27, 3
      %p213 = por %p211, %p212
      %p214 = scmp.ne.s32.totalorder %s205, %s206
      %p215 = scmp.eq.s32.totalorder %s27, 0
      %p216 = por %p214, %p215
      %p217 = scmp.ne.s32.totalorder %s205, %s206
      %p218 = scmp.eq.s32.totalorder %s28, 3
      %p219 = por %p217, %p218
      %p221 = scmp.ne.s32.totalorder %s206, %s220
      %p222 = scmp.eq.s32.totalorder %s28, 0
      %p223 = por %p221, %p222
      %s225 = sadd.s32 %s224, 1
      %p228 = scmp.eq.s32.totalorder %s22, 3
      %p229 = scmp.ne.s32.totalorder %s224, %s226
      %p230 = scmp.eq.s32.totalorder %s22, 0
      %p231 = por %p229, %p230
      %p232 = scmp.ne.s32.totalorder %s224, %s226
      %p233 = scmp.eq.s32.totalorder %s27, 3
      %p234 = por %p232, %p233
      %p235 = scmp.ne.s32.totalorder %s226, %s227
      %p236 = scmp.eq.s32.totalorder %s27, 0
      %p237 = por %p235, %p236
      %p238 = scmp.ne.s32.totalorder %s226, %s227
      %p239 = scmp.eq.s32.totalorder %s28, 3
      %p240 = por %p238, %p239
      %p242 = scmp.ne.s32.totalorder %s227, %s241
      %p243 = scmp.eq.s32.totalorder %s28, 0
      %p244 = por %p242, %p243
      %s246 = sadd.s32 %s245, 1
      %p249 = scmp.eq.s32.totalorder %s22, 3
      %p250 = scmp.ne.s32.totalorder %s245, %s247
      %p251 = scmp.eq.s32.totalorder %s22, 0
      %p252 = por %p250, %p251
      %p253 = scmp.ne.s32.totalorder %s245, %s247
      %p254 = scmp.eq.s32.totalorder %s27, 3
      %p255 = por %p253, %p254
      %p256 = scmp.ne.s32.totalorder %s247, %s248
      %p257 = scmp.eq.s32.totalorder %s27, 0
      %p258 = por %p256, %p257
      %p259 = scmp.ne.s32.totalorder %s247, %s248
      %p260 = scmp.eq.s32.totalorder %s28, 3
      %p261 = por %p259, %p260
      %p263 = scmp.ne.s32.totalorder %s248, %s262
      %p264 = scmp.eq.s32.totalorder %s28, 0
      %p265 = por %p263, %p264
      %s267 = sadd.s32 %s266, 1
      %p270 = scmp.eq.s32.totalorder %s22, 3
      %p271 = scmp.ne.s32.totalorder %s266, %s268
      %p272 = scmp.eq.s32.totalorder %s22, 0
      %p273 = por %p271, %p272
      %p274 = scmp.ne.s32.totalorder %s266, %s268
      %p275 = scmp.eq.s32.totalorder %s27, 3
      %p276 = por %p274, %p275
      %p277 = scmp.ne.s32.totalorder %s268, %s269
      %p278 = scmp.eq.s32.totalorder %s27, 0
      %p279 = por %p277, %p278
      %p280 = scmp.ne.s32.totalorder %s268, %s269
      %p281 = scmp.eq.s32.totalorder %s28, 3
      %p282 = por %p280, %p281
      %p284 = scmp.ne.s32.totalorder %s269, %s283
      %p285 = scmp.eq.s32.totalorder %s28, 0
      %p286 = por %p284, %p285
      %s288 = sadd.s32 %s287, 1
      %p291 = scmp.eq.s32.totalorder %s22, 3
      %p292 = scmp.ne.s32.totalorder %s287, %s289
      %p293 = scmp.eq.s32.totalorder %s22, 0
      %p294 = por %p292, %p293
      %p295 = scmp.ne.s32.totalorder %s287, %s289
      %p296 = scmp.eq.s32.totalorder %s27, 3
      %p297 = por %p295, %p296
      %p298 = scmp.ne.s32.totalorder %s289, %s290
      %p299 = scmp.eq.s32.totalorder %s27, 0
      %p300 = por %p298, %p299
      %p301 = scmp.ne.s32.totalorder %s289, %s290
      %p302 = scmp.eq.s32.totalorder %s28, 3
      %p303 = por %p301, %p302
      %p305 = scmp.ne.s32.totalorder %s290, %s304
      %p306 = scmp.eq.s32.totalorder %s28, 0
      %p307 = por %p305, %p306
      %s308 = ssub.s32 %s22, %s29
      %p309 = scmp.eq.s32.totalorder %s308, 0
      %s311 = sadd.s32 %s310, 1
      %s312 = scalar_select %p309, %s310, %s311
      %p315 = pneg %p309
      %p316 = scmp.eq.s32.totalorder %s22, 3
      %p317 = por %p315, %p316
      %p318 = scmp.ne.s32.totalorder %s310, %s313
      %p319 = scmp.eq.s32.totalorder %s22, 0
      %p320 = por %p318, %p319
      %p321 = scmp.ne.s32.totalorder %s310, %s313
      %p322 = scmp.eq.s32.totalorder %s27, 3
      %p323 = por %p321, %p322
      %p324 = scmp.ne.s32.totalorder %s313, %s314
      %p325 = scmp.eq.s32.totalorder %s27, 0
      %p326 = por %p324, %p325
      %p327 = scmp.ne.s32.totalorder %s313, %s314
      %p328 = scmp.eq.s32.totalorder %s28, 3
      %p329 = por %p327, %p328
      %p331 = scmp.ne.s32.totalorder %s314, %s330
      %p332 = scmp.eq.s32.totalorder %s28, 0
      %p333 = por %p331, %p332
      %p334 = scmp.le.s32.totalorder 1, %s22
      %p335 = scmp.lt.s32.totalorder %s22, 5
      %p336 = pnand %p334, %p335
      %p337 = pneg %p336
      // Predicated region
      $region9: #{tpu_custom_call.1} parent=5 // pred_check
        _
      $region10: #{tpu_custom_call.1} parent=5 // pred_check_branch
        %339 = sbr.rel (%p336) target = $region12
      $region11: #{tpu_custom_call.1} parent=5 // pred_region
        %s340 = ssub.s32 %s22, 1
        // Predicated region
        $region13: #{tpu_custom_call.1} parent=11 // pred_check
          %p341 = pneg %p69
        $region14: #{tpu_custom_call.1} parent=11 // pred_check_branch
          %343 = sbr.rel (%p341) target = $region16
        $region15: #{tpu_custom_call.1} parent=11 // pred_region
          _
        $region16: #{tpu_custom_call.1} parent=11 // pred_fallthru
          _
        // Predicated region
        $region17: #{tpu_custom_call.1} parent=11 // pred_check
          %p344 = pneg %p90
        $region18: #{tpu_custom_call.1} parent=11 // pred_check_branch
          %346 = sbr.rel (%p344) target = $region20
        $region19: #{tpu_custom_call.1} parent=11 // pred_region
          _
        $region20: #{tpu_custom_call.1} parent=11 // pred_fallthru
          _
        // Predicated region
        $region21: #{tpu_custom_call.1} parent=11 // pred_check
          %p347 = pneg %p111
        $region22: #{tpu_custom_call.1} parent=11 // pred_check_branch
          %349 = sbr.rel (%p347) target = $region24
        $region23: #{tpu_custom_call.1} parent=11 // pred_region
          _
        $region24: #{tpu_custom_call.1} parent=11 // pred_fallthru
          _
        // Predicated region
        $region25: #{tpu_custom_call.1} parent=11 // pred_check
          %p350 = pneg %p132
        $region26: #{tpu_custom_call.1} parent=11 // pred_check_branch
          %352 = sbr.rel (%p350) target = $region28
        $region27: #{tpu_custom_call.1} parent=11 // pred_region
          _
        $region28: #{tpu_custom_call.1} parent=11 // pred_fallthru
          _
        // Predicated region
        $region29: #{tpu_custom_call.1} parent=11 // pred_check
          %p353 = pneg %p153
        $region30: #{tpu_custom_call.1} parent=11 // pred_check_branch
          %355 = sbr.rel (%p353) target = $region32
        $region31: #{tpu_custom_call.1} parent=11 // pred_region
          _
        $region32: #{tpu_custom_call.1} parent=11 // pred_fallthru
          _
        // Predicated region
        $region33: #{tpu_custom_call.1} parent=11 // pred_check
          %p356 = pneg %p174
        $region34: #{tpu_custom_call.1} parent=11 // pred_check_branch
          %358 = sbr.rel (%p356) target = $region36
        $region35: #{tpu_custom_call.1} parent=11 // pred_region
          _
        $region36: #{tpu_custom_call.1} parent=11 // pred_fallthru
          _
        // Predicated region
        $region37: #{tpu_custom_call.1} parent=11 // pred_check
          %p359 = pneg %p195
        $region38: #{tpu_custom_call.1} parent=11 // pred_check_branch
          %361 = sbr.rel (%p359) target = $region40
        $region39: #{tpu_custom_call.1} parent=11 // pred_region
          _
        $region40: #{tpu_custom_call.1} parent=11 // pred_fallthru
          _
        // Predicated region
        $region41: #{tpu_custom_call.1} parent=11 // pred_check
          %p362 = pneg %p216
        $region42: #{tpu_custom_call.1} parent=11 // pred_check_branch
          %364 = sbr.rel (%p362) target = $region44
        $region43: #{tpu_custom_call.1} parent=11 // pred_region
          _
        $region44: #{tpu_custom_call.1} parent=11 // pred_fallthru
          _
        // Predicated region
        $region45: #{tpu_custom_call.1} parent=11 // pred_check
          %p365 = pneg %p237
        $region46: #{tpu_custom_call.1} parent=11 // pred_check_branch
          %367 = sbr.rel (%p365) target = $region48
        $region47: #{tpu_custom_call.1} parent=11 // pred_region
          _
        $region48: #{tpu_custom_call.1} parent=11 // pred_fallthru
          _
        // Predicated region
        $region49: #{tpu_custom_call.1} parent=11 // pred_check
          %p368 = pneg %p258
        $region50: #{tpu_custom_call.1} parent=11 // pred_check_branch
          %370 = sbr.rel (%p368) target = $region52
        $region51: #{tpu_custom_call.1} parent=11 // pred_region
          _
        $region52: #{tpu_custom_call.1} parent=11 // pred_fallthru
          _
        // Predicated region
        $region53: #{tpu_custom_call.1} parent=11 // pred_check
          %p371 = pneg %p279
        $region54: #{tpu_custom_call.1} parent=11 // pred_check_branch
          %373 = sbr.rel (%p371) target = $region56
        $region55: #{tpu_custom_call.1} parent=11 // pred_region
          _
        $region56: #{tpu_custom_call.1} parent=11 // pred_fallthru
          _
        // Predicated region
        $region57: #{tpu_custom_call.1} parent=11 // pred_check
          %p374 = pneg %p300
        $region58: #{tpu_custom_call.1} parent=11 // pred_check_branch
          %376 = sbr.rel (%p374) target = $region60
        $region59: #{tpu_custom_call.1} parent=11 // pred_region
          _
        $region60: #{tpu_custom_call.1} parent=11 // pred_fallthru
          _
      $region12: #{tpu_custom_call.1} parent=5 // pred_fallthru
        _
      %p377 = scmp.lt.s32.totalorder %s22, 4
      // Predicated region
      $region61: #{tpu_custom_call.1} parent=5 // pred_check
        %p378 = pneg %p377
      $region62: #{tpu_custom_call.1} parent=5 // pred_check_branch
        %380 = sbr.rel (%p378) target = $region64
      $region63: #{tpu_custom_call.1} parent=5 // pred_region
        // Predicated region
        $region65: #{tpu_custom_call.1} parent=63 // pred_check
          %p381 = pneg %p42
        $region66: #{tpu_custom_call.1} parent=63 // pred_check_branch
          %383 = sbr.rel (%p381) target = $region68
        $region67: #{tpu_custom_call.1} parent=63 // pred_region
          %p384 = scmp.lt.s32.totalorder %s22, 3
          %s385 = scalar_select %p384, %s22, 3
          %s386 = smul.addr %s385, 8
          %s387 = scalar_lea.vmem %s0, %s386
        $region68: #{tpu_custom_call.1} parent=63 // pred_fallthru
          _
      $region64: #{tpu_custom_call.1} parent=5 // pred_fallthru
        _
      %p388 = scmp.le.s32.totalorder 1, %s22
      %p389 = scmp.lt.s32.totalorder %s22, 5
      %p390 = pnand %p388, %p389
      %p391 = pneg %p390
      // Predicated region
      $region69: #{tpu_custom_call.1} parent=5 // pred_check
        _
      $region70: #{tpu_custom_call.1} parent=5 // pred_check_branch
        %393 = sbr.rel (%p390) target = $region72
      $region71: #{tpu_custom_call.1} parent=5 // pred_region
        %s394 = ssub.s32 %s22, 1
        %p395 = scmp.lt.s32.totalorder %s27, 3
        %s396 = scalar_select %p395, %s27, 3
        %s397 = smul.addr %s396, 8
        %s398 = scalar_lea.vmem %s0, %s397
        %p399 = pneg %p48
        %p400 = pneg %p45
        %p401 = pneg %p69
        %p402 = pneg %p66
        %p403 = pneg %p90
        %p404 = pneg %p87
        %p405 = pneg %p111
        %p406 = pneg %p108
        %p407 = pneg %p132
        %p408 = pneg %p129
        %p409 = pneg %p153
        %p410 = pneg %p150
        %p411 = pneg %p174
        %p412 = pneg %p171
        %p413 = pneg %p195
        %p414 = pneg %p192
        %p415 = pneg %p216
        %p416 = pneg %p213
        %p417 = pneg %p237
        %p418 = pneg %p234
        %p419 = pneg %p258
        %p420 = pneg %p255
        %p421 = pneg %p279
        %p422 = pneg %p276
        %p423 = pneg %p300
        %p424 = pneg %p297
        %p425 = pneg %p326
        %p426 = pneg %p323
        %s427 = sand.u32 %s313, 1
        %s428 = scalar_lea.sflag [#allocation5], %s427
        %s429 = sand.u32 %s313, 1
        %s430 = smul.addr %s429, 8
        %s431 = scalar_lea.vmem [#allocation4], %s430
        %p432 = scmp.lt.s32.totalorder %s27, 3
        %s433 = scalar_select %p432, %s27, 3
        %s434 = smul.addr %s433, 8
        %s435 = scalar_lea.vmem %s0, %s434
        %v437 = vld [vmem:[%s435] sm:$0xff]
        %v438 = vld [vmem:[%s1] sm:$0x1]
        %v439 = vld [vmem:[%s2] sm:$0x1]
        %vm440 = vcmask 261120
        %v441 = vsel %vm440, %v437, 0.0
        %442 = vadd.xlane.f32.xlu0 %v441
        %v443 = vpop.xlane.xlu0 %442
        %v444 = vrcp.pop 32.0
        %v445 = vmul.f32 %v443, %v444
        %v446 = vsub.f32 %v437, %v445
        %v447 = vmul.f32 %v446, %v446
        %v448 = vsel %vm440, %v447, 0.0
        %449 = vadd.xlane.f32.xlu0 %v448
        %v450 = vpop.xlane.xlu0 %449
        %v451 = vmul.f32 %v450, %v444
        %v452 = vadd.f32 %v451, 1e-05
        %v453 = vrsqrt.pop %v452
        %v454 = vmul.f32 %v446, %v453
        %v456 = vlaneseq
        %v457 = vshrl.u32 %v456, 7
        %v458 = vsub.s32 0, %v457
        %v459 = vrot.slane %v438, %v458
        %v461 = vmul.f32 %v454, %v459
        %v463 = vlaneseq
        %v464 = vshrl.u32 %v463, 7
        %v465 = vsub.s32 0, %v464
        %v466 = vrot.slane %v439, %v465
        %v468 = vadd.f32 %v461, %v466
        %v469 = vpack.c.bf16 %v468, %v468
        %v470 = vld [vmem:[%s3] sm:$0xf]
        %v471 = vld [vmem:[%s3 + $0x4] sm:$0xf]
        %v472 = vld [vmem:[%s3 + $0x8] sm:$0xf]
        %v473 = vld [vmem:[%s3 + $0xc] sm:$0xf]
        %v474 = vld [vmem:[%s4] sm:$0x1]
        %v476 = vlaneseq
        %v477 = vshrl.u32 %v476, 7
        %v478 = vsub.s32 0, %v477
        %v479 = vrot.slane %v474, %v478
        %v485 = vunpack.c.l.b16 %v470
        %v486 = vunpack.c.l.b16 %v471
        %v487 = vunpack.c.l.b16 %v472
        %v488 = vunpack.c.l.b16 %v473
        %v489 = vpack.c.b16 %v486, %v485
        %v490 = vpack.c.b16 %v488, %v487
        %v494 = vsel %vm440, %v469, 0
        %496 = vmatprep.subr.bf16.mxu0 0
        %497 = vmatpush1.bf16.msra.mxu0 %v489
        %498 = vmatprep.subr.bf16.mxu0 0
        %499 = vmatpush1.bf16.msra.mxu0 %v490
        %500 = vmatprep.subr.bf16.mxu0 0
        %501 = vmatpush1.bf16.msra.mxu0 0
        %502 = vmatprep.subr.bf16.mxu0 0
        %503 = vmatpush1.bf16.msra.mxu0 0
        %504 = vmatprep.subr.bf16.mxu0 0
        %505 = vmatpush1.bf16.msra.mxu0 0
        %506 = vmatprep.subr.bf16.mxu0 0
        %507 = vmatpush1.bf16.msra.mxu0 0
        %508 = vmatprep.subr.bf16.mxu0 0
        %509 = vmatpush1.bf16.msra.mxu0 0
        %510 = vmatprep.subr.bf16.mxu0 0
        %511 = vmatpush1.bf16.msra.mxu0 0
        %512 = vmatprep.subr.bf16.mxu0 0
        %513 = vmatpush1.bf16.msra.mxu0 0
        %514 = vmatprep.subr.bf16.mxu0 0
        %515 = vmatpush1.bf16.msra.mxu0 0
        %516 = vmatprep.subr.bf16.mxu0 0
        %517 = vmatpush1.bf16.msra.mxu0 0
        %518 = vmatprep.subr.bf16.mxu0 0
        %519 = vmatpush1.bf16.msra.mxu0 0
        %520 = vmatprep.subr.bf16.mxu0 0
        %521 = vmatpush1.bf16.msra.mxu0 0
        %522 = vmatprep.subr.bf16.mxu0 0
        %523 = vmatpush1.bf16.msra.mxu0 0
        %524 = vmatprep.subr.bf16.mxu0 0
        %525 = vmatpush1.bf16.msra.mxu0 0
        %526 = vmatprep.subr.bf16.mxu0 0
        %527 = vmatpush1.bf16.msra.mxu0 0
        %528 = vmatprep.mubr.bf16.mxu0 0
        %529 = vmatmul.mubr.bf16.gmra.mrb[0].mxu0 %v494
        %v530 = vpop.f32.mrb[0].mxu0
        %v531 = vadd.f32 %v479, %v530
        %v532 = vpop.f32.mrb[0].mxu0
        %v533 = vpop.f32.mrb[0].mxu0
        %v534 = vpop.f32.mrb[0].mxu0
        %535 = vdwg.mxu0
        %v536 = vpack.c.bf16 %v531, %v531
        %vm537 = vcmask 781312
        %538 = vst.msk [vmem:[#allocation2] sm:$0xf] %vm537, %v536
        %v539 = vlaneseq
        %v540 = vshrl.u32 %v539, 7
        %v541 = vlaneseq
        %v542 = vand.u32 %v541, 127
        %vm543 = vcmp.gt.s32.totalorder %v542, %v540
        %v544 = vsel %vm543, -1e+30, 0.0
        %v545 = vld [vmem:[#allocation2] sm:$0xf]
        %v547 = vunpack.c.l.b16 %v545
        %v548 = vpack.c.b16 %v547, %v547
        %549 = vrot.lane.b32.xlu0 %v548, 96
        %v550 = vpop.permute.xlu0 %549
        %vm551 = vcmask 64512
        %v553 = vsel %vm551, %v545, 0
        %v556 = vsel %vm551, %v550, 0
        %558 = vmatprep.subr.bf16.mxu0 0
        %559 = vmatpush1.bf16.xpose.msra.mxu0 %v556
        %560 = vmatprep.subr.bf16.mxu0 0
        %561 = vmatpush1.bf16.xpose.msra.mxu0 0
        %562 = vmatprep.subr.bf16.mxu0 0
        %563 = vmatpush1.bf16.xpose.msra.mxu0 0
        %564 = vmatprep.subr.bf16.mxu0 0
        %565 = vmatpush1.bf16.xpose.msra.mxu0 0
        %566 = vmatprep.subr.bf16.mxu0 0
        %567 = vmatpush1.bf16.xpose.msra.mxu0 0
        %568 = vmatprep.subr.bf16.mxu0 0
        %569 = vmatpush1.bf16.xpose.msra.mxu0 0
        %570 = vmatprep.subr.bf16.mxu0 0
        %571 = vmatpush1.bf16.xpose.msra.mxu0 0
        %572 = vmatprep.subr.bf16.mxu0 0
        %573 = vmatpush1.bf16.xpose.msra.mxu0 0
        %574 = vmatprep.subr.bf16.mxu0 0
        %575 = vmatpush1.bf16.xpose.msra.mxu0 0
        %576 = vmatprep.subr.bf16.mxu0 0
        %577 = vmatpush1.bf16.xpose.msra.mxu0 0
        %578 = vmatprep.subr.bf16.mxu0 0
        %579 = vmatpush1.bf16.xpose.msra.mxu0 0
        %580 = vmatprep.subr.bf16.mxu0 0
        %581 = vmatpush1.bf16.xpose.msra.mxu0 0
        %582 = vmatprep.subr.bf16.mxu0 0
        %583 = vmatpush1.bf16.xpose.msra.mxu0 0
        %584 = vmatprep.subr.bf16.mxu0 0
        %585 = vmatpush1.bf16.xpose.msra.mxu0 0
        %586 = vmatprep.subr.bf16.mxu0 0
        %587 = vmatpush1.bf16.xpose.msra.mxu0 0
        %588 = vmatprep.subr.bf16.mxu0 0
        %589 = vmatpush1.bf16.xpose.msra.mxu0 0
        %590 = vmatprep.mubr.bf16.mxu0 0
        %591 = vmatmul.mubr.bf16.gmra.mrb[0].mxu0 %v553
        %v592 = vpop.f32.mrb[0].mxu0
        %v593 = vadd.f32 %v544, %v592
        %v594 = vpop.f32.mrb[0].mxu0
        %v595 = vpop.f32.mrb[0].mxu0
        %v596 = vpop.f32.mrb[0].mxu0
        %597 = vdwg.mxu0
        %v598 = vsel %vm551, %v593, -inf
        %599 = vmax.xlane.f32.xlu0 %v598
        %v600 = vpop.xlane.xlu0 %599
        %v601 = vsub.f32 %v593, %v600
        %v602 = vmul.f32 %v601, 1.442695
        %v603 = vpow.pop %v602
        %v604 = vsel %vm551, %v603, 0.0
        %605 = vadd.xlane.f32.xlu0 %v604
        %v606 = vpop.xlane.xlu0 %605
        %v607 = vrcp.pop %v606
        %v608 = vmul.f32 %v603, %v607
        %v609 = vpack.c.bf16 %v608, %v608
        %610 = vrot.lane.b32.xlu0 %v548, 64
        %v611 = vpop.permute.xlu0 %610
        %v613 = vsel %vm551, %v609, 0
        %vm615 = vcmask 1043456
        %v617 = vsel %vm615, %v611, 0
        %619 = vmatprep.subr.bf16.mxu0 0
        %620 = vmatpush1.bf16.msra.mxu0 %v617
        %621 = vmatprep.subr.bf16.mxu0 0
        %622 = vmatpush1.bf16.msra.mxu0 0
        %623 = vmatprep.subr.bf16.mxu0 0
        %624 = vmatpush1.bf16.msra.mxu0 0
        %625 = vmatprep.subr.bf16.mxu0 0
        %626 = vmatpush1.bf16.msra.mxu0 0
        %627 = vmatprep.subr.bf16.mxu0 0
        %628 = vmatpush1.bf16.msra.mxu0 0
        %629 = vmatprep.subr.bf16.mxu0 0
        %630 = vmatpush1.bf16.msra.mxu0 0
        %631 = vmatprep.subr.bf16.mxu0 0
        %632 = vmatpush1.bf16.msra.mxu0 0
        %633 = vmatprep.subr.bf16.mxu0 0
        %634 = vmatpush1.bf16.msra.mxu0 0
        %635 = vmatprep.subr.bf16.mxu0 0
        %636 = vmatpush1.bf16.msra.mxu0 0
        %637 = vmatprep.subr.bf16.mxu0 0
        %638 = vmatpush1.bf16.msra.mxu0 0
        %639 = vmatprep.subr.bf16.mxu0 0
        %640 = vmatpush1.bf16.msra.mxu0 0
        %641 = vmatprep.subr.bf16.mxu0 0
        %642 = vmatpush1.bf16.msra.mxu0 0
        %643 = vmatprep.subr.bf16.mxu0 0
        %644 = vmatpush1.bf16.msra.mxu0 0
        %645 = vmatprep.subr.bf16.mxu0 0
        %646 = vmatpush1.bf16.msra.mxu0 0
        %647 = vmatprep.subr.bf16.mxu0 0
        %648 = vmatpush1.bf16.msra.mxu0 0
        %649 = vmatprep.subr.bf16.mxu0 0
        %650 = vmatpush1.bf16.msra.mxu0 0
        %651 = vmatprep.mubr.bf16.mxu0 0
        %652 = vmatmul.mubr.bf16.gmra.mrb[0].mxu0 %v613
        %v653 = vpop.f32.mrb[0].mxu0
        %v654 = vadd.f32 0.0, %v653
        %v655 = vpop.f32.mrb[0].mxu0
        %v656 = vpop.f32.mrb[0].mxu0
        %v657 = vpop.f32.mrb[0].mxu0
        %658 = vdwg.mxu0
        %v659 = vpack.c.bf16 %v654, %v654
        %vm660 = vcmask 60416
        %661 = vst.msk [vmem:[#allocation3] sm:$0xf] %vm660, %v659
        %v662 = vld [vmem:[#allocation2] sm:$0xf]
        %v664 = vunpack.c.l.b16 %v662
        %v665 = vpack.c.b16 %v664, %v664
        %666 = vrot.lane.b32.xlu0 %v665, 120
        %v667 = vpop.permute.xlu0 %666
        %668 = vrot.lane.b32.xlu0 %v665, 88
        %v669 = vpop.permute.xlu0 %668
        %v671 = vsel %vm551, %v667, 0
        %v674 = vsel %vm551, %v669, 0
        %676 = vmatprep.subr.bf16.mxu0 0
        %677 = vmatpush1.bf16.xpose.msra.mxu0 %v674
        %678 = vmatprep.subr.bf16.mxu0 0
        %679 = vmatpush1.bf16.xpose.msra.mxu0 0
        %680 = vmatprep.subr.bf16.mxu0 0
        %681 = vmatpush1.bf16.xpose.msra.mxu0 0
        %682 = vmatprep.subr.bf16.mxu0 0
        %683 = vmatpush1.bf16.xpose.msra.mxu0 0
        %684 = vmatprep.subr.bf16.mxu0 0
        %685 = vmatpush1.bf16.xpose.msra.mxu0 0
        %686 = vmatprep.subr.bf16.mxu0 0
        %687 = vmatpush1.bf16.xpose.msra.mxu0 0
        %688 = vmatprep.subr.bf16.mxu0 0
        %689 = vmatpush1.bf16.xpose.msra.mxu0 0
        %690 = vmatprep.subr.bf16.mxu0 0
        %691 = vmatpush1.bf16.xpose.msra.mxu0 0
        %692 = vmatprep.subr.bf16.mxu0 0
        %693 = vmatpush1.bf16.xpose.msra.mxu0 0
        %694 = vmatprep.subr.bf16.mxu0 0
        %695 = vmatpush1.bf16.xpose.msra.mxu0 0
        %696 = vmatprep.subr.bf16.mxu0 0
        %697 = vmatpush1.bf16.xpose.msra.mxu0 0
        %698 = vmatprep.subr.bf16.mxu0 0
        %699 = vmatpush1.bf16.xpose.msra.mxu0 0
        %700 = vmatprep.subr.bf16.mxu0 0
        %701 = vmatpush1.bf16.xpose.msra.mxu0 0
        %702 = vmatprep.subr.bf16.mxu0 0
        %703 = vmatpush1.bf16.xpose.msra.mxu0 0
        %704 = vmatprep.subr.bf16.mxu0 0
        %705 = vmatpush1.bf16.xpose.msra.mxu0 0
        %706 = vmatprep.subr.bf16.mxu0 0
        %707 = vmatpush1.bf16.xpose.msra.mxu0 0
        %708 = vmatprep.mubr.bf16.mxu0 0
        %709 = vmatmul.mubr.bf16.gmra.mrb[0].mxu0 %v671
        %v710 = vpop.f32.mrb[0].mxu0
        %v711 = vadd.f32 %v544, %v710
        %v712 = vpop.f32.mrb[0].mxu0
        %v713 = vpop.f32.mrb[0].mxu0
        %v714 = vpop.f32.mrb[0].mxu0
        %715 = vdwg.mxu0
        %v716 = vsel %vm551, %v711, -inf
        %717 = vmax.xlane.f32.xlu0 %v716
        %v718 = vpop.xlane.xlu0 %717
        %v719 = vsub.f32 %v711, %v718
        %v720 = vmul.f32 %v719, 1.442695
        %v721 = vpow.pop %v720
        %v722 = vsel %vm551, %v721, 0.0
        %723 = vadd.xlane.f32.xlu0 %v722
        %v724 = vpop.xlane.xlu0 %723
        %v725 = vrcp.pop %v724
        %v726 = vmul.f32 %v721, %v725
        %v727 = vpack.c.bf16 %v726, %v726
        %728 = vrot.lane.b32.xlu0 %v665, 56
        %v729 = vpop.permute.xlu0 %728
        %v731 = vsel %vm551, %v727, 0
        %v734 = vsel %vm615, %v729, 0
        %736 = vmatprep.subr.bf16.mxu0 0
        %737 = vmatpush1.bf16.msra.mxu0 %v734
        %738 = vmatprep.subr.bf16.mxu0 0
        %739 = vmatpush1.bf16.msra.mxu0 0
        %740 = vmatprep.subr.bf16.mxu0 0
        %741 = vmatpush1.bf16.msra.mxu0 0
        %742 = vmatprep.subr.bf16.mxu0 0
        %743 = vmatpush1.bf16.msra.mxu0 0
        %744 = vmatprep.subr.bf16.mxu0 0
        %745 = vmatpush1.bf16.msra.mxu0 0
        %746 = vmatprep.subr.bf16.mxu0 0
        %747 = vmatpush1.bf16.msra.mxu0 0
        %748 = vmatprep.subr.bf16.mxu0 0
        %749 = vmatpush1.bf16.msra.mxu0 0
        %750 = vmatprep.subr.bf16.mxu0 0
        %751 = vmatpush1.bf16.msra.mxu0 0
        %752 = vmatprep.subr.bf16.mxu0 0
        %753 = vmatpush1.bf16.msra.mxu0 0
        %754 = vmatprep.subr.bf16.mxu0 0
        %755 = vmatpush1.bf16.msra.mxu0 0
        %756 = vmatprep.subr.bf16.mxu0 0
        %757 = vmatpush1.bf16.msra.mxu0 0
        %758 = vmatprep.subr.bf16.mxu0 0
        %759 = vmatpush1.bf16.msra.mxu0 0
        %760 = vmatprep.subr.bf16.mxu0 0
        %761 = vmatpush1.bf16.msra.mxu0 0
        %762 = vmatprep.subr.bf16.mxu0 0
        %763 = vmatpush1.bf16.msra.mxu0 0
        %764 = vmatprep.subr.bf16.mxu0 0
        %765 = vmatpush1.bf16.msra.mxu0 0
        %766 = vmatprep.subr.bf16.mxu0 0
        %767 = vmatpush1.bf16.msra.mxu0 0
        %768 = vmatprep.mubr.bf16.mxu0 0
        %769 = vmatmul.mubr.bf16.gmra.mrb[0].mxu0 %v731
        %v770 = vpop.f32.mrb[0].mxu0
        %v771 = vadd.f32 0.0, %v770
        %v772 = vpop.f32.mrb[0].mxu0
        %v773 = vpop.f32.mrb[0].mxu0
        %v774 = vpop.f32.mrb[0].mxu0
        %775 = vdwg.mxu0
        %v776 = vpack.c.bf16 %v771, %v771
        %v778 = vunpack.c.l.b16 %v776
        %v779 = vpack.c.b16 %v778, %v778
        %780 = vrot.lane.b32.xlu0 %v779, 8
        %v781 = vpop.permute.xlu0 %780
        %vm783 = vcmask 126016
        %784 = vst.msk [vmem:[#allocation3] sm:$0xf] %vm783, %v781
        %v785 = vld [vmem:[#allocation2] sm:$0xf]
        %v787 = vunpack.c.l.b16 %v785
        %v788 = vpack.c.b16 %v787, %v787
        %789 = vrot.lane.b32.xlu0 %v788, 112
        %v790 = vpop.permute.xlu0 %789
        %791 = vrot.lane.b32.xlu0 %v788, 80
        %v792 = vpop.permute.xlu0 %791
        %v794 = vsel %vm551, %v790, 0
        %v797 = vsel %vm551, %v792, 0
        %799 = vmatprep.subr.bf16.mxu0 0
        %800 = vmatpush1.bf16.xpose.msra.mxu0 %v797
        %801 = vmatprep.subr.bf16.mxu0 0
        %802 = vmatpush1.bf16.xpose.msra.mxu0 0
        %803 = vmatprep.subr.bf16.mxu0 0
        %804 = vmatpush1.bf16.xpose.msra.mxu0 0
        %805 = vmatprep.subr.bf16.mxu0 0
        %806 = vmatpush1.bf16.xpose.msra.mxu0 0
        %807 = vmatprep.subr.bf16.mxu0 0
        %808 = vmatpush1.bf16.xpose.msra.mxu0 0
        %809 = vmatprep.subr.bf16.mxu0 0
        %810 = vmatpush1.bf16.xpose.msra.mxu0 0
        %811 = vmatprep.subr.bf16.mxu0 0
        %812 = vmatpush1.bf16.xpose.msra.mxu0 0
        %813 = vmatprep.subr.bf16.mxu0 0
        %814 = vmatpush1.bf16.xpose.msra.mxu0 0
        %815 = vmatprep.subr.bf16.mxu0 0
        %816 = vmatpush1.bf16.xpose.msra.mxu0 0
        %817 = vmatprep.subr.bf16.mxu0 0
        %818 = vmatpush1.bf16.xpose.msra.mxu0 0
        %819 = vmatprep.subr.bf16.mxu0 0
        %820 = vmatpush1.bf16.xpose.msra.mxu0 0
        %821 = vmatprep.subr.bf16.mxu0 0
        %822 = vmatpush1.bf16.xpose.msra.mxu0 0
        %823 = vmatprep.subr.bf16.mxu0 0
        %824 = vmatpush1.bf16.xpose.msra.mxu0 0
        %825 = vmatprep.subr.bf16.mxu0 0
        %826 = vmatpush1.bf16.xpose.msra.mxu0 0
        %827 = vmatprep.subr.bf16.mxu0 0
        %828 = vmatpush1.bf16.xpose.msra.mxu0 0
        %829 = vmatprep.subr.bf16.mxu0 0
        %830 = vmatpush1.bf16.xpose.msra.mxu0 0
        %831 = vmatprep.mubr.bf16.mxu0 0
        %832 = vmatmul.mubr.bf16.gmra.mrb[0].mxu0 %v794
        %v833 = vpop.f32.mrb[0].mxu0
        %v834 = vadd.f32 %v544, %v833
        %v835 = vpop.f32.mrb[0].mxu0
        %v836 = vpop.f32.mrb[0].mxu0
        %v837 = vpop.f32.mrb[0].mxu0
        %838 = vdwg.mxu0
        %v839 = vsel %vm551, %v834, -inf
        %840 = vmax.xlane.f32.xlu0 %v839
        %v841 = vpop.xlane.xlu0 %840
        %v842 = vsub.f32 %v834, %v841
        %v843 = vmul.f32 %v842, 1.442695
        %v844 = vpow.pop %v843
        %v845 = vsel %vm551, %v844, 0.0
        %846 = vadd.xlane.f32.xlu0 %v845
        %v847 = vpop.xlane.xlu0 %846
        %v848 = vrcp.pop %v847
        %v849 = vmul.f32 %v844, %v848
        %v850 = vpack.c.bf16 %v849, %v849
        %851 = vrot.lane.b32.xlu0 %v788, 48
        %v852 = vpop.permute.xlu0 %851
        %v854 = vsel %vm551, %v850, 0
        %v857 = vsel %vm615, %v852, 0
        %859 = vmatprep.subr.bf16.mxu0 0
        %860 = vmatpush1.bf16.msra.mxu0 %v857
        %861 = vmatprep.subr.bf16.mxu0 0
        %862 = vmatpush1.bf16.msra.mxu0 0
        %863 = vmatprep.subr.bf16.mxu0 0
        %864 = vmatpush1.bf16.msra.mxu0 0
        %865 = vmatprep.subr.bf16.mxu0 0
        %866 = vmatpush1.bf16.msra.mxu0 0
        %867 = vmatprep.subr.bf16.mxu0 0
        %868 = vmatpush1.bf16.msra.mxu0 0
        %869 = vmatprep.subr.bf16.mxu0 0
        %870 = vmatpush1.bf16.msra.mxu0 0
        %871 = vmatprep.subr.bf16.mxu0 0
        %872 = vmatpush1.bf16.msra.mxu0 0
        %873 = vmatprep.subr.bf16.mxu0 0
        %874 = vmatpush1.bf16.msra.mxu0 0
        %875 = vmatprep.subr.bf16.mxu0 0
        %876 = vmatpush1.bf16.msra.mxu0 0
        %877 = vmatprep.subr.bf16.mxu0 0
        %878 = vmatpush1.bf16.msra.mxu0 0
        %879 = vmatprep.subr.bf16.mxu0 0
        %880 = vmatpush1.bf16.msra.mxu0 0
        %881 = vmatprep.subr.bf16.mxu0 0
        %882 = vmatpush1.bf16.msra.mxu0 0
        %883 = vmatprep.subr.bf16.mxu0 0
        %884 = vmatpush1.bf16.msra.mxu0 0
        %885 = vmatprep.subr.bf16.mxu0 0
        %886 = vmatpush1.bf16.msra.mxu0 0
        %887 = vmatprep.subr.bf16.mxu0 0
        %888 = vmatpush1.bf16.msra.mxu0 0
        %889 = vmatprep.subr.bf16.mxu0 0
        %890 = vmatpush1.bf16.msra.mxu0 0
        %891 = vmatprep.mubr.bf16.mxu0 0
        %892 = vmatmul.mubr.bf16.gmra.mrb[0].mxu0 %v854
        %v893 = vpop.f32.mrb[0].mxu0
        %v894 = vadd.f32 0.0, %v893
        %v895 = vpop.f32.mrb[0].mxu0
        %v896 = vpop.f32.mrb[0].mxu0
        %v897 = vpop.f32.mrb[0].mxu0
        %898 = vdwg.mxu0
        %v899 = vpack.c.bf16 %v894, %v894
        %v901 = vunpack.c.l.b16 %v899
        %v902 = vpack.c.b16 %v901, %v901
        %903 = vrot.lane.b32.xlu0 %v902, 16
        %v904 = vpop.permute.xlu0 %903
        %vm906 = vcmask 191616
        %907 = vst.msk [vmem:[#allocation3] sm:$0xf] %vm906, %v904
        %v908 = vld [vmem:[#allocation2] sm:$0xf]
        %v910 = vunpack.c.l.b16 %v908
        %v911 = vpack.c.b16 %v910, %v910
        %912 = vrot.lane.b32.xlu0 %v911, 104
        %v913 = vpop.permute.xlu0 %912
        %914 = vrot.lane.b32.xlu0 %v911, 72
        %v915 = vpop.permute.xlu0 %914
        %v917 = vsel %vm551, %v913, 0
        %v920 = vsel %vm551, %v915, 0
        %922 = vmatprep.subr.bf16.mxu0 0
        %923 = vmatpush1.bf16.xpose.msra.mxu0 %v920
        %924 = vmatprep.subr.bf16.mxu0 0
        %925 = vmatpush1.bf16.xpose.msra.mxu0 0
        %926 = vmatprep.subr.bf16.mxu0 0
        %927 = vmatpush1.bf16.xpose.msra.mxu0 0
        %928 = vmatprep.subr.bf16.mxu0 0
        %929 = vmatpush1.bf16.xpose.msra.mxu0 0
        %930 = vmatprep.subr.bf16.mxu0 0
        %931 = vmatpush1.bf16.xpose.msra.mxu0 0
        %932 = vmatprep.subr.bf16.mxu0 0
        %933 = vmatpush1.bf16.xpose.msra.mxu0 0
        %934 = vmatprep.subr.bf16.mxu0 0
        %935 = vmatpush1.bf16.xpose.msra.mxu0 0
        %936 = vmatprep.subr.bf16.mxu0 0
        %937 = vmatpush1.bf16.xpose.msra.mxu0 0
        %938 = vmatprep.subr.bf16.mxu0 0
        %939 = vmatpush1.bf16.xpose.msra.mxu0 0
        %940 = vmatprep.subr.bf16.mxu0 0
        %941 = vmatpush1.bf16.xpose.msra.mxu0 0
        %942 = vmatprep.subr.bf16.mxu0 0
        %943 = vmatpush1.bf16.xpose.msra.mxu0 0
        %944 = vmatprep.subr.bf16.mxu0 0
        %945 = vmatpush1.bf16.xpose.msra.mxu0 0
        %946 = vmatprep.subr.bf16.mxu0 0
        %947 = vmatpush1.bf16.xpose.msra.mxu0 0
        %948 = vmatprep.subr.bf16.mxu0 0
        %949 = vmatpush1.bf16.xpose.msra.mxu0 0
        %950 = vmatprep.subr.bf16.mxu0 0
        %951 = vmatpush1.bf16.xpose.msra.mxu0 0
        %952 = vmatprep.subr.bf16.mxu0 0
        %953 = vmatpush1.bf16.xpose.msra.mxu0 0
        %954 = vmatprep.mubr.bf16.mxu0 0
        %955 = vmatmul.mubr.bf16.gmra.mrb[0].mxu0 %v917
        %v956 = vpop.f32.mrb[0].mxu0
        %v957 = vadd.f32 %v544, %v956
        %v958 = vpop.f32.mrb[0].mxu0
        %v959 = vpop.f32.mrb[0].mxu0
        %v960 = vpop.f32.mrb[0].mxu0
        %961 = vdwg.mxu0
        %v962 = vsel %vm551, %v957, -inf
        %963 = vmax.xlane.f32.xlu0 %v962
        %v964 = vpop.xlane.xlu0 %963
        %v965 = vsub.f32 %v957, %v964
        %v966 = vmul.f32 %v965, 1.442695
        %v967 = vpow.pop %v966
        %v968 = vsel %vm551, %v967, 0.0
        %969 = vadd.xlane.f32.xlu0 %v968
        %v970 = vpop.xlane.xlu0 %969
        %v971 = vrcp.pop %v970
        %v972 = vmul.f32 %v967, %v971
        %v973 = vpack.c.bf16 %v972, %v972
        %974 = vrot.lane.b32.xlu0 %v911, 40
        %v975 = vpop.permute.xlu0 %974
        %v977 = vsel %vm551, %v973, 0
        %v980 = vsel %vm615, %v975, 0
        %982 = vmatprep.subr.bf16.mxu0 0
        %983 = vmatpush1.bf16.msra.mxu0 %v980
        %984 = vmatprep.subr.bf16.mxu0 0
        %985 = vmatpush1.bf16.msra.mxu0 0
        %986 = vmatprep.subr.bf16.mxu0 0
        %987 = vmatpush1.bf16.msra.mxu0 0
        %988 = vmatprep.subr.bf16.mxu0 0
        %989 = vmatpush1.bf16.msra.mxu0 0
        %990 = vmatprep.subr.bf16.mxu0 0
        %991 = vmatpush1.bf16.msra.mxu0 0
        %992 = vmatprep.subr.bf16.mxu0 0
        %993 = vmatpush1.bf16.msra.mxu0 0
        %994 = vmatprep.subr.bf16.mxu0 0
        %995 = vmatpush1.bf16.msra.mxu0 0
        %996 = vmatprep.subr.bf16.mxu0 0
        %997 = vmatpush1.bf16.msra.mxu0 0
        %998 = vmatprep.subr.bf16.mxu0 0
        %999 = vmatpush1.bf16.msra.mxu0 0
        %1000 = vmatprep.subr.bf16.mxu0 0
        %1001 = vmatpush1.bf16.msra.mxu0 0
        %1002 = vmatprep.subr.bf16.mxu0 0
        %1003 = vmatpush1.bf16.msra.mxu0 0
        %1004 = vmatprep.subr.bf16.mxu0 0
        %1005 = vmatpush1.bf16.msra.mxu0 0
        %1006 = vmatprep.subr.bf16.mxu0 0
        %1007 = vmatpush1.bf16.msra.mxu0 0
        %1008 = vmatprep.subr.bf16.mxu0 0
        %1009 = vmatpush1.bf16.msra.mxu0 0
        %1010 = vmatprep.subr.bf16.mxu0 0
        %1011 = vmatpush1.bf16.msra.mxu0 0
        %1012 = vmatprep.subr.bf16.mxu0 0
        %1013 = vmatpush1.bf16.msra.mxu0 0
        %1014 = vmatprep.mubr.bf16.mxu0 0
        %1015 = vmatmul.mubr.bf16.gmra.mrb[0].mxu0 %v977
        %v1016 = vpop.f32.mrb[0].mxu0
        %v1017 = vadd.f32 0.0, %v1016
        %v1018 = vpop.f32.mrb[0].mxu0
        %v1019 = vpop.f32.mrb[0].mxu0
        %v1020 = vpop.f32.mrb[0].mxu0
        %1021 = vdwg.mxu0
        %v1022 = vpack.c.bf16 %v1017, %v1017
        %v1024 = vunpack.c.l.b16 %v1022
        %v1025 = vpack.c.b16 %v1024, %v1024
        %1026 = vrot.lane.b32.xlu0 %v1025, 24
        %v1027 = vpop.permute.xlu0 %1026
        %vm1029 = vcmask 257216
        %1030 = vst.msk [vmem:[#allocation3] sm:$0xf] %vm1029, %v1027
        %v1031 = vld [vmem:[#allocation3] sm:$0xf]
        %v1032 = vld [vmem:[%s5] sm:$0xf]
        %v1033 = vld [vmem:[%s5 + $0x4] sm:$0xf]
        %v1034 = vld [vmem:[%s5 + $0x8] sm:$0xf]
        %v1035 = vld [vmem:[%s5 + $0xc] sm:$0xf]
        %v1036 = vld [vmem:[%s6] sm:$0x1]
        %v1038 = vlaneseq
        %v1039 = vshrl.u32 %v1038, 7
        %v1040 = vsub.s32 0, %v1039
        %v1041 = vrot.slane %v1036, %v1040
        %v1047 = vunpack.c.l.b16 %v1032
        %v1048 = vunpack.c.l.b16 %v1033
        %v1049 = vunpack.c.l.b16 %v1034
        %v1050 = vunpack.c.l.b16 %v1035
        %v1051 = vpack.c.b16 %v1048, %v1047
        %v1052 = vpack.c.b16 %v1050, %v1049
        %v1056 = vsel %vm440, %v1031, 0
        %1058 = vmatprep.subr.bf16.mxu0 0
        %1059 = vmatpush1.bf16.msra.mxu0 %v1051
        %1060 = vmatprep.subr.bf16.mxu0 0
        %1061 = vmatpush1.bf16.msra.mxu0 %v1052
        %1062 = vmatprep.subr.bf16.mxu0 0
        %1063 = vmatpush1.bf16.msra.mxu0 0
        %1064 = vmatprep.subr.bf16.mxu0 0
        %1065 = vmatpush1.bf16.msra.mxu0 0
        %1066 = vmatprep.subr.bf16.mxu0 0
        %1067 = vmatpush1.bf16.msra.mxu0 0
        %1068 = vmatprep.subr.bf16.mxu0 0
        %1069 = vmatpush1.bf16.msra.mxu0 0
        %1070 = vmatprep.subr.bf16.mxu0 0
        %1071 = vmatpush1.bf16.msra.mxu0 0
        %1072 = vmatprep.subr.bf16.mxu0 0
        %1073 = vmatpush1.bf16.msra.mxu0 0
        %1074 = vmatprep.subr.bf16.mxu0 0
        %1075 = vmatpush1.bf16.msra.mxu0 0
        %1076 = vmatprep.subr.bf16.mxu0 0
        %1077 = vmatpush1.bf16.msra.mxu0 0
        %1078 = vmatprep.subr.bf16.mxu0 0
        %1079 = vmatpush1.bf16.msra.mxu0 0
        %1080 = vmatprep.subr.bf16.mxu0 0
        %1081 = vmatpush1.bf16.msra.mxu0 0
        %1082 = vmatprep.subr.bf16.mxu0 0
        %1083 = vmatpush1.bf16.msra.mxu0 0
        %1084 = vmatprep.subr.bf16.mxu0 0
        %1085 = vmatpush1.bf16.msra.mxu0 0
        %1086 = vmatprep.subr.bf16.mxu0 0
        %1087 = vmatpush1.bf16.msra.mxu0 0
        %1088 = vmatprep.subr.bf16.mxu0 0
        %1089 = vmatpush1.bf16.msra.mxu0 0
        %1090 = vmatprep.mubr.bf16.mxu0 0
        %1091 = vmatmul.mubr.bf16.gmra.mrb[0].mxu0 %v1056
        %v1092 = vpop.f32.mrb[0].mxu0
        %v1093 = vadd.f32 %v1041, %v1092
        %v1094 = vpop.f32.mrb[0].mxu0
        %v1095 = vpop.f32.mrb[0].mxu0
        %v1096 = vpop.f32.mrb[0].mxu0
        %1097 = vdwg.mxu0
        %v1098 = vld [vmem:[%s435] sm:$0xff]
        %v1099 = vadd.f32 %v1093, %v1098
        %v1100 = vld [vmem:[%s7] sm:$0x1]
        %v1101 = vld [vmem:[%s8] sm:$0x1]
        %v1102 = vsel %vm440, %v1099, 0.0
        %1103 = vadd.xlane.f32.xlu0 %v1102
        %v1104 = vpop.xlane.xlu0 %1103
        %v1105 = vmul.f32 %v1104, %v444
        %v1106 = vsub.f32 %v1099, %v1105
        %v1107 = vmul.f32 %v1106, %v1106
        %v1108 = vsel %vm440, %v1107, 0.0
        %1109 = vadd.xlane.f32.xlu0 %v1108
        %v1110 = vpop.xlane.xlu0 %1109
        %v1111 = vmul.f32 %v1110, %v444
        %v1112 = vadd.f32 %v1111, 1e-05
        %v1113 = vrsqrt.pop %v1112
        %v1114 = vmul.f32 %v1106, %v1113
        %v1116 = vlaneseq
        %v1117 = vshrl.u32 %v1116, 7
        %v1118 = vsub.s32 0, %v1117
        %v1119 = vrot.slane %v1100, %v1118
        %v1121 = vmul.f32 %v1114, %v1119
        %v1123 = vlaneseq
        %v1124 = vshrl.u32 %v1123, 7
        %v1125 = vsub.s32 0, %v1124
        %v1126 = vrot.slane %v1101, %v1125
        %v1128 = vadd.f32 %v1121, %v1126
        %v1129 = vpack.c.bf16 %v1128, %v1128
        %v1130 = vld [vmem:[%s9] sm:$0xf]
        %v1131 = vld [vmem:[%s9 + $0x4] sm:$0xf]
        %v1132 = vld [vmem:[%s9 + $0x8] sm:$0xf]
        %v1133 = vld [vmem:[%s9 + $0xc] sm:$0xf]
        %v1134 = vld [vmem:[%s10] sm:$0x1]
        %v1136 = vlaneseq
        %v1137 = vshrl.u32 %v1136, 7
        %v1138 = vsub.s32 0, %v1137
        %v1139 = vrot.slane %v1134, %v1138
        %v1145 = vunpack.c.l.b16 %v1130
        %v1146 = vunpack.c.l.b16 %v1131
        %v1147 = vunpack.c.l.b16 %v1132
        %v1148 = vunpack.c.l.b16 %v1133
        %v1149 = vpack.c.b16 %v1146, %v1145
        %v1150 = vpack.c.b16 %v1148, %v1147
        %v1154 = vsel %vm440, %v1129, 0
        %1156 = vmatprep.subr.bf16.mxu0 0
        %1157 = vmatpush1.bf16.msra.mxu0 %v1149
        %1158 = vmatprep.subr.bf16.mxu0 0
        %1159 = vmatpush1.bf16.msra.mxu0 %v1150
        %1160 = vmatprep.subr.bf16.mxu0 0
        %1161 = vmatpush1.bf16.msra.mxu0 0
        %1162 = vmatprep.subr.bf16.mxu0 0
        %1163 = vmatpush1.bf16.msra.mxu0 0
        %1164 = vmatprep.subr.bf16.mxu0 0
        %1165 = vmatpush1.bf16.msra.mxu0 0
        %1166 = vmatprep.subr.bf16.mxu0 0
        %1167 = vmatpush1.bf16.msra.mxu0 0
        %1168 = vmatprep.subr.bf16.mxu0 0
        %1169 = vmatpush1.bf16.msra.mxu0 0
        %1170 = vmatprep.subr.bf16.mxu0 0
        %1171 = vmatpush1.bf16.msra.mxu0 0
        %1172 = vmatprep.subr.bf16.mxu0 0
        %1173 = vmatpush1.bf16.msra.mxu0 0
        %1174 = vmatprep.subr.bf16.mxu0 0
        %1175 = vmatpush1.bf16.msra.mxu0 0
        %1176 = vmatprep.subr.bf16.mxu0 0
        %1177 = vmatpush1.bf16.msra.mxu0 0
        %1178 = vmatprep.subr.bf16.mxu0 0
        %1179 = vmatpush1.bf16.msra.mxu0 0
        %1180 = vmatprep.subr.bf16.mxu0 0
        %1181 = vmatpush1.bf16.msra.mxu0 0
        %1182 = vmatprep.subr.bf16.mxu0 0
        %1183 = vmatpush1.bf16.msra.mxu0 0
        %1184 = vmatprep.subr.bf16.mxu0 0
        %1185 = vmatpush1.bf16.msra.mxu0 0
        %1186 = vmatprep.subr.bf16.mxu0 0
        %1187 = vmatpush1.bf16.msra.mxu0 0
        %1188 = vmatprep.mubr.bf16.mxu0 0
        %1189 = vmatmul.mubr.bf16.gmra.mrb[0].mxu0 %v1154
        %v1190 = vpop.f32.mrb[0].mxu0
        %v1191 = vadd.f32 %v1139, %v1190
        %v1192 = vpop.f32.mrb[0].mxu0
        %v1193 = vpop.f32.mrb[0].mxu0
        %v1194 = vpop.f32.mrb[0].mxu0
        %1195 = vdwg.mxu0
        %v1196 = vmul.f32 %v1191, 1.702
        %v1197 = vxor.u32 %v1196, 2147483648
        %v1198 = vmul.f32 %v1197, 1.442695
        %v1199 = vpow.pop %v1198
        %v1200 = vadd.f32 %v1199, 1.0
        %v1201 = vrcp.pop %v1200
        %v1202 = vmul.f32 1.0, %v1201
        %v1203 = vmul.f32 %v1191, %v1202
        %v1204 = vpack.c.bf16 %v1203, %v1203
        %v1205 = vld [vmem:[%s11] sm:$0xf]
        %v1206 = vld [vmem:[%s11 + $0x4] sm:$0xf]
        %v1207 = vld [vmem:[%s11 + $0x8] sm:$0xf]
        %v1208 = vld [vmem:[%s11 + $0xc] sm:$0xf]
        %v1209 = vld [vmem:[%s11 + $0x10] sm:$0xf]
        %v1210 = vld [vmem:[%s11 + $0x14] sm:$0xf]
        %v1211 = vld [vmem:[%s11 + $0x18] sm:$0xf]
        %v1212 = vld [vmem:[%s11 + $0x1c] sm:$0xf]
        %v1213 = vld [vmem:[%s11 + $0x20] sm:$0xf]
        %v1214 = vld [vmem:[%s11 + $0x24] sm:$0xf]
        %v1215 = vld [vmem:[%s11 + $0x28] sm:$0xf]
        %v1216 = vld [vmem:[%s11 + $0x2c] sm:$0xf]
        %v1217 = vld [vmem:[%s11 + $0x30] sm:$0xf]
        %v1218 = vld [vmem:[%s11 + $0x34] sm:$0xf]
        %v1219 = vld [vmem:[%s11 + $0x38] sm:$0xf]
        %v1220 = vld [vmem:[%s11 + $0x3c] sm:$0xf]
        %v1221 = vld [vmem:[%s12] sm:$0x1]
        %v1223 = vlaneseq
        %v1224 = vshrl.u32 %v1223, 7
        %v1225 = vsub.s32 0, %v1224
        %v1226 = vrot.slane %v1221, %v1225
        %v1244 = vunpack.c.l.b16 %v1205
        %v1245 = vunpack.c.l.b16 %v1206
        %v1246 = vunpack.c.l.b16 %v1207
        %v1247 = vunpack.c.l.b16 %v1208
        %v1248 = vunpack.c.l.b16 %v1209
        %v1249 = vunpack.c.l.b16 %v1210
        %v1250 = vunpack.c.l.b16 %v1211
        %v1251 = vunpack.c.l.b16 %v1212
        %v1252 = vunpack.c.l.b16 %v1213
        %v1253 = vunpack.c.l.b16 %v1214
        %v1254 = vunpack.c.l.b16 %v1215
        %v1255 = vunpack.c.l.b16 %v1216
        %v1256 = vunpack.c.l.b16 %v1217
        %v1257 = vunpack.c.l.b16 %v1218
        %v1258 = vunpack.c.l.b16 %v1219
        %v1259 = vunpack.c.l.b16 %v1220
        %v1260 = vpack.c.b16 %v1245, %v1244
        %v1261 = vpack.c.b16 %v1247, %v1246
        %v1262 = vpack.c.b16 %v1249, %v1248
        %v1263 = vpack.c.b16 %v1251, %v1250
        %v1264 = vpack.c.b16 %v1253, %v1252
        %v1265 = vpack.c.b16 %v1255, %v1254
        %v1266 = vpack.c.b16 %v1257, %v1256
        %v1267 = vpack.c.b16 %v1259, %v1258
        %1276 = vmatprep.subr.bf16.mxu0 0
        %1277 = vmatpush1.bf16.msra.mxu0 %v1260
        %1278 = vmatprep.subr.bf16.mxu0 0
        %1279 = vmatpush1.bf16.msra.mxu0 %v1261
        %1280 = vmatprep.subr.bf16.mxu0 0
        %1281 = vmatpush1.bf16.msra.mxu0 %v1262
        %1282 = vmatprep.subr.bf16.mxu0 0
        %1283 = vmatpush1.bf16.msra.mxu0 %v1263
        %1284 = vmatprep.subr.bf16.mxu0 0
        %1285 = vmatpush1.bf16.msra.mxu0 %v1264
        %1286 = vmatprep.subr.bf16.mxu0 0
        %1287 = vmatpush1.bf16.msra.mxu0 %v1265
        %1288 = vmatprep.subr.bf16.mxu0 0
        %1289 = vmatpush1.bf16.msra.mxu0 %v1266
        %1290 = vmatprep.subr.bf16.mxu0 0
        %1291 = vmatpush1.bf16.msra.mxu0 %v1267
        %1292 = vmatprep.subr.bf16.mxu0 0
        %1293 = vmatpush1.bf16.msra.mxu0 0
        %1294 = vmatprep.subr.bf16.mxu0 0
        %1295 = vmatpush1.bf16.msra.mxu0 0
        %1296 = vmatprep.subr.bf16.mxu0 0
        %1297 = vmatpush1.bf16.msra.mxu0 0
        %1298 = vmatprep.subr.bf16.mxu0 0
        %1299 = vmatpush1.bf16.msra.mxu0 0
        %1300 = vmatprep.subr.bf16.mxu0 0
        %1301 = vmatpush1.bf16.msra.mxu0 0
        %1302 = vmatprep.subr.bf16.mxu0 0
        %1303 = vmatpush1.bf16.msra.mxu0 0
        %1304 = vmatprep.subr.bf16.mxu0 0
        %1305 = vmatpush1.bf16.msra.mxu0 0
        %1306 = vmatprep.subr.bf16.mxu0 0
        %1307 = vmatpush1.bf16.msra.mxu0 0
        %1308 = vmatprep.mubr.bf16.mxu0 0
        %1309 = vmatmul.mubr.bf16.gmra.mrb[0].mxu0 %v1204
        %v1310 = vpop.f32.mrb[0].mxu0
        %v1311 = vadd.f32 %v1226, %v1310
        %v1312 = vpop.f32.mrb[0].mxu0
        %v1313 = vpop.f32.mrb[0].mxu0
        %v1314 = vpop.f32.mrb[0].mxu0
        %1315 = vdwg.mxu0
        %v1316 = vadd.f32 %v1311, %v1099
        %1317 = vst.msk [vmem:[%s431] sm:$0xff] %vm440, %v1316
        %s1318 = sand.u32 %s313, 1
        %s1319 = scalar_lea.sflag [#allocation5], %s1318
        %s1320 = sand.u32 %s313, 1
        %s1321 = smul.addr %s1320, 8
        %s1322 = scalar_lea.vmem [#allocation4], %s1321
        // Predicated region
        $region73: #{tpu_custom_call.1} parent=71 // pred_check
          %p1323 = pneg %p323
        $region74: #{tpu_custom_call.1} parent=71 // pred_check_branch
          %1325 = sbr.rel (%p1323) target = $region76
        $region75: #{tpu_custom_call.1} parent=71 // pred_region
          %s1327 = ssub.s32 128, 128
          %1328 = vsyncadd %s1319, %s1327
          %s1329 = smul.addr %s27, 128
          %s1330 = scalar_lea.hbm %s13, %s1329
          %s1332 = sshll.u32 %s1322, 4
          %s1333 = int_to_ptr.vmem [resolvable:$true] %s1332
          %1335 = dma.vmem_to_hbm [thread:$0]  %s1333, 128, %s1330, %s1319
        $region76: #{tpu_custom_call.1} parent=71 // pred_fallthru
          _
      $region72: #{tpu_custom_call.1} parent=5 // pred_fallthru
        _
      %p1336 = scmp.le.s32.totalorder 2, %s22
      // Predicated region
      $region77: #{tpu_custom_call.1} parent=5 // pred_check
        %p1337 = pneg %p1336
      $region78: #{tpu_custom_call.1} parent=5 // pred_check_branch
        %1339 = sbr.rel (%p1337) target = $region80
      $region79: #{tpu_custom_call.1} parent=5 // pred_region
        %s1340 = ssub.s32 %s22, 2
        // Predicated region
        $region81: #{tpu_custom_call.1} parent=79 // pred_check
          %p1341 = pneg %p329
        $region82: #{tpu_custom_call.1} parent=79 // pred_check_branch
          %1343 = sbr.rel (%p1341) target = $region84
        $region83: #{tpu_custom_call.1} parent=79 // pred_region
          %s1344 = sand.u32 %s314, 1
          %s1345 = scalar_lea.sflag [#allocation5], %s1344
          %s1346 = sand.u32 %s314, 1
          %s1347 = smul.addr %s1346, 8
          %s1348 = scalar_lea.vmem [#allocation4], %s1347
          %1349 = dma.done %s1345, 128
        $region84: #{tpu_custom_call.1} parent=79 // pred_fallthru
          _
      $region80: #{tpu_custom_call.1} parent=5 // pred_fallthru
        _
    $region6: #{tpu_custom_call.1} parent=1 // loop_footer
      %s26 = sadd.s32 1, %s22
    $region7: #{tpu_custom_call.1} parent=1 // loop_footer_branch
      %21 = sbr.rel target = $region3
    $region8: #{tpu_custom_call.1} parent=1 // loop_exit
      _
    %1350 = vsyncpa [#allocation5], 1
    %s1351 = scalar_lea.sflag [#allocation5], 1
    %1352 = vsyncpa %s1351, 1

</llo_original>
